<compile_context>
chip_gen: v5e
topology: v5e:2x2
jax: 0.10.0
libtpu: 0.0.40
codegen_flags: <defaults>
</compile_context>

<pallas_src>
import functools

import jax
import jax.numpy as jnp
import numpy as np
from jax.experimental import pallas as pl
from jax.experimental.pallas import tpu as pltpu

_NEG = float("-inf")


@functools.lru_cache(maxsize=None)
def _prefix_tri(tk: int):
    # Strictly upper-triangular 0/1 matrix: (in_radius @ tri)[i, k] = exclusive
    # prefix count of in-radius neighbors with index < k.  Cached per tile size
    # so it is built / uploaded once, not every forward call.
    return (jnp.arange(tk)[:, None] < jnp.arange(tk)[None, :]).astype(jnp.bfloat16)


def _pointrnn_cell_kernel(xq_ref, dlq_ref, ak_ref, wq_ref, tri_ref, out_ref,
                          m_ref, cnt_ref, fb_ref, *, radius, nsamples, c_out):
    kt = pl.program_id(2)

    xq = xq_ref[0]            # (C_in+4, TI)   [X1 ; P1^T ; 1]            query slab
    dlq = dlq_ref[0]          # (TI, 5)        [P1, |P1|^2, 1]            distance lhs
    ak = ak_ref[0]            # (C_out+5, TK)  [A ; -2*P2^T ; 1 ; |P2|^2] neighbor slab
    tri = tri_ref[...]        # (TK, TK) bf16  strictly upper triangular  (resident)
    tk = tri.shape[0]

    a_t = ak[:c_out, :]       # (C_out, TK)  neighbor-only conv part A for this tile
    dr = ak[c_out:, :]        # (5, TK)

    # ---- pairwise squared distance: single K=5 MXU matmul (NN form)
    #   d2[i,k] = -2*P1[i]·P2[k] + |P1[i]|^2 + |P2[k]|^2
    d2 = jnp.dot(dlq, dr, preferred_element_type=jnp.float32)         # (TI, TK)
    in_r = d2 < jnp.float32(radius * radius)                          # strict <

    @pl.when(kt == 0)
    def _():
        cnt_ref[...] = jnp.zeros_like(cnt_ref)    # per-query in-radius count so far
        fb_ref[...] = a_t[:, 0:1]                 # ball_query fallback column (idx 0)

    # ---- exclusive prefix count (index order) -> keep first `nsamples` hits
    in_bf = in_r.astype(jnp.bfloat16)
    rank = cnt_ref[...] + jnp.dot(in_bf, tri, preferred_element_type=jnp.float32)
    sel = in_r & (rank < jnp.float32(nsamples))                       # (TI, TK)

    # ---- masked neighbor max, lane-reduced to (C_out, TI) right away
    tile_max = jnp.max(
        jnp.where(sel[None, :, :], a_t[:, None, :], _NEG), axis=-1)   # (C_out, TI)

    @pl.when(kt == 0)
    def _():
        m_ref[...] = tile_max                     # fold the -inf init into tile 0

    @pl.when(kt > 0)
    def _():
        m_ref[...] = jnp.maximum(m_ref[...], tile_max)

    # carry the total in-radius count into the next neighbor tile
    cnt_ref[...] = rank[:, tk - 1:tk] + in_r[:, tk - 1:tk].astype(jnp.float32)

    @pl.when(kt == pl.num_programs(2) - 1)
    def _():
        # query-only conv part (+bias folded via the ones row), once per query tile
        bq = jnp.dot(wq_ref[...], xq, preferred_element_type=jnp.float32)  # (C_out, TI)
        m = m_ref[...]
        # ball_query fallback: no point within radius -> idx stays 0 -> neighbor {0}.
        # (Checks channel 0 against the -inf sentinel; assumes finite A values.)
        no_nb = m[0:1, :] == _NEG                                          # (1, TI)
        m = jnp.where(no_nb, fb_ref[...], m)
        out_ref[0] = (m + bq).astype(out_ref.dtype)


def pointrnn_cell_forward(inputs, states=None, *, weight, bias, radius, nsamples):
    """Mirrors PointRNNCell.forward. inputs=(P1, X1), states=(P2, S2) or None."""
    P1, X1 = inputs
    B, N, _ = P1.shape
    C_in = X1.shape[1]
    C_out = weight.shape[0]

    if states is None:                      # PointRNNCell.init_state
        P2 = jnp.zeros((B, N, 3), jnp.float32)
        S2 = jnp.zeros((B, C_out, N), jnp.float32)
    else:
        P2, S2 = states

    # Pad N up to a multiple of 128: lane-dense output stores, (8,128)-aligned tiles.
    TI = TK = 128
    Np = ((N + 127) // 128) * 128
    pad = Np - N
    if pad:
        P1p = jnp.pad(P1, ((0, 0), (0, pad), (0, 0)))
        P2p = jnp.pad(P2, ((0, 0), (0, pad), (0, 0)))
        X1p = jnp.pad(X1, ((0, 0), (0, 0), (0, pad)))
        S2p = jnp.pad(S2, ((0, 0), (0, 0), (0, pad)))
    else:
        P1p, P2p, X1p, S2p = P1, P2, X1, S2

    f32 = jnp.float32
    P1t = jnp.transpose(P1p, (0, 2, 1))                    # (B, 3, Np)
    P2t = jnp.transpose(P2p, (0, 2, 1))                    # (B, 3, Np)
    n1 = jnp.sum(P1p * P1p, axis=-1, keepdims=True)        # (B, Np, 1)
    n2 = jnp.sum(P2t * P2t, axis=1, keepdims=True)         # (B, 1, Np)
    if pad:                                                # padded neighbors: never in radius
        n2 = n2.at[:, :, N:].set(f32(1e30))
    ones_q = jnp.ones((B, Np, 1), f32)
    ones_n = jnp.ones((B, 1, Np), f32)

    # ---- weight split + fusion, bias folding (wrapper-side glue)
    W_s = weight[:, :C_out]                                # acts on S2_grouped
    W_x = weight[:, C_out:C_out + C_in]                    # acts on X1_repeated
    W_d = weight[:, C_out + C_in:]                         # acts on displacement
    # Neighbor-only conv half, computed ONCE per batch as a plain XLA matmul
    # (depends only on b, so it is not redone per query tile inside the kernel).
    A = jnp.einsum('oc,bcn->bon',
                   jnp.concatenate([W_s, W_d], axis=1),
                   jnp.concatenate([S2p, P2t], axis=1),
                   precision='highest')                    # (B, C_out, Np)

    AK = jnp.concatenate([A, -2.0 * P2t, ones_n, n2], axis=1)        # (B, C_out+5, Np)
    XQ = jnp.concatenate([X1p, P1t, ones_n], axis=1)                 # (B, C_in+4, Np)
    DLQ = jnp.concatenate([P1p, n1, ones_q], axis=-1)                # (B, Np, 5)
    W_xq = jnp.concatenate([W_x, -W_d, bias[:, None]], axis=1)       # (C_out, C_in+4)
    tri = _prefix_tri(TK)

    kernel = functools.partial(_pointrnn_cell_kernel, radius=float(radius),
                               nsamples=int(nsamples), c_out=int(C_out))

    S1p = pl.pallas_call(
        kernel,
        out_shape=jax.ShapeDtypeStruct((B, C_out, Np), jnp.float32),
        grid_spec=pltpu.PrefetchScalarGridSpec(
            num_scalar_prefetch=0,
            grid=(B, Np // TI, Np // TK),                  # neighbor (reduction) axis last
            in_specs=[
                pl.BlockSpec((1, C_in + 4, TI), lambda b, it, kt: (b, 0, it)),   # XQ tile
                pl.BlockSpec((1, TI, 5), lambda b, it, kt: (b, it, 0)),          # DLQ tile
                pl.BlockSpec((1, C_out + 5, TK), lambda b, it, kt: (b, 0, kt)),  # AK (streamed over kt)
                pl.BlockSpec((C_out, C_in + 4), lambda b, it, kt: (0, 0)),       # W_xq (resident)
                pl.BlockSpec((TK, TK), lambda b, it, kt: (0, 0)),                # tri (resident)
            ],
            out_specs=pl.BlockSpec((1, C_out, TI), lambda b, it, kt: (b, 0, it)),
            scratch_shapes=[
                pltpu.VMEM((C_out, TI), jnp.float32),      # running masked max (16 KiB)
                pltpu.VMEM((TI, 1), jnp.float32),          # running in-radius count
                pltpu.VMEM((C_out, 1), jnp.float32),       # fallback column A[:, 0]
            ],
        ),
        compiler_params=pltpu.CompilerParams(
            dimension_semantics=("parallel", "parallel", "arbitrary")),
    )(XQ, DLQ, AK, W_xq, tri)

    S1 = S1p[:, :, :N] if pad else S1p
    return P1, S1


def _reference_forward(P1, X1, P2, S2, W, bias, radius, nsamples):
    """Literal pure-JAX port of the PyTorch module (ball_query + gather + conv + maxpool)."""
    B, N, _ = P1.shape
    C_in = X1.shape[1]
    d2 = jnp.zeros((B, N, N), jnp.float32)
    for d in range(3):
        d2 = d2 + (P1[:, :, None, d] - P2[:, None, :, d]) ** 2
    in_r = d2 < radius * radius
    k_idx = jnp.broadcast_to(jnp.arange(N, dtype=jnp.int32)[None, None, :], (B, N, N))
    key = jnp.where(in_r, k_idx, N)
    order = jnp.sort(key, axis=-1)[..., :nsamples]                    # (B, N, ns)
    cnt = jnp.sum(in_r, axis=-1, keepdims=True)                       # (B, N, 1)
    first = order[..., :1]
    pos = jnp.arange(nsamples, dtype=jnp.int32)[None, None, :]
    idx = jnp.where(pos < cnt, order, first)
    idx = jnp.where(cnt > 0, idx, 0)                                  # (B, N, ns)

    gather = jax.vmap(lambda f, i: f[:, i])                           # (C,N),(N,ns)->(C,N,ns)
    P2_grouped = gather(jnp.transpose(P2, (0, 2, 1)), idx)            # (B, 3, N, ns)
    S2_grouped = gather(S2, idx)                                      # (B, C_out, N, ns)
    disp = P2_grouped - jnp.transpose(P1, (0, 2, 1))[:, :, :, None]
    X1_rep = jnp.broadcast_to(X1[:, :, :, None], (B, C_in, N, nsamples))
    corr = jnp.concatenate([S2_grouped, X1_rep, disp], axis=1)
    S1 = jnp.einsum('oc,bcns->bons', W, corr, precision='highest') + bias[None, :, None, None]
    return jnp.max(S1, axis=-1)


if __name__ == "__main__":
    B, N, C_in, C_out = 2, 128, 8, 32
    nsamples = 8

    key = jax.random.PRNGKey(0)
    k1, k2, k3, k4, k5, k6 = jax.random.split(key, 6)
    P1 = jax.random.uniform(k1, (B, N, 3), jnp.float32)
    P2 = jax.random.uniform(k2, (B, N, 3), jnp.float32)
    X1 = jax.random.normal(k3, (B, C_in, N), jnp.float32)
    S2 = jax.random.normal(k4, (B, C_out, N), jnp.float32)
    # 1x1 Conv2d parameters: weight (C_out, C_out + C_in + 3, 1, 1) squeezed, bias (C_out,)
    W = 0.1 * jax.random.normal(k5, (C_out, C_out + C_in + 3), jnp.float32)
    bias = 0.1 * jax.random.normal(k6, (C_out,), jnp.float32)

    # Place the radius in the middle of a gap of the pairwise-distance spectrum (near 0.25)
    # so the strict d2 < r^2 test is insensitive to f32 rounding of either d2 formulation.
    P1n = np.asarray(P1, np.float64)
    P2n = np.asarray(P2, np.float64)
    d2_all = np.sort(np.unique(((P1n[:, :, None, :] - P2n[:, None, :, :]) ** 2).sum(-1).ravel()))
    j = int(np.searchsorted(d2_all, 0.0625))
    lo, hi = max(j - 8, 0), min(j + 8, d2_all.size - 1)
    kbest = max(range(lo, hi), key=lambda k: d2_all[k + 1] - d2_all[k])
    radius = float(np.sqrt(0.5 * (d2_all[kbest] + d2_all[kbest + 1])))

    P1_out, S1 = pointrnn_cell_forward(
        (P1, X1), (P2, S2), weight=W, bias=bias, radius=radius, nsamples=nsamples)
    jax.block_until_ready(S1)

    S1_ref = _reference_forward(P1, X1, P2, S2, W, bias, radius, nsamples)
    np.testing.assert_allclose(np.asarray(S1), np.asarray(S1_ref), rtol=1e-2, atol=1e-2)
    assert P1_out.shape == (B, N, 3) and S1.shape == (B, C_out, N)
    print("KERNEL_OK")
</pallas_src>

<mosaic_0001>
module attributes {stable_mosaic.version = 11 : i64} {
  func.func @_pointrnn_cell_kernel(%arg0: i32, %arg1: i32, %arg2: i32, %arg3: memref<1x12x128xf32, #tpu.memory_space<vmem>>, %arg4: memref<1x128x5xf32, #tpu.memory_space<vmem>>, %arg5: memref<1x37x128xf32, #tpu.memory_space<vmem>>, %arg6: memref<32x12xf32, #tpu.memory_space<vmem>>, %arg7: memref<128x128xbf16, #tpu.memory_space<vmem>>, %arg8: memref<1x32x128xf32, #tpu.memory_space<vmem>>, %arg9: memref<32x128xf32, #tpu.memory_space<vmem>>, %arg10: memref<128x1xf32, #tpu.memory_space<vmem>>, %arg11: memref<32x1xf32, #tpu.memory_space<vmem>>) attributes {dimension_semantics = [#tpu.dimension_semantics<parallel>, #tpu.dimension_semantics<parallel>, #tpu.dimension_semantics<arbitrary>], iteration_bounds = array<i64: 2, 1, 1>, scalar_prefetch = 0 : i64, scratch_operands = 3 : i64, tpu.core_type = #tpu.core_type<tc>, window_params = [{transform_indices = @transform_0, window_bounds = array<i64: 1, 12, 128>}, {transform_indices = @transform_1, window_bounds = array<i64: 1, 128, 5>}, {transform_indices = @transform_2, window_bounds = array<i64: 1, 37, 128>}, {pipeline_mode = #tpu.pipeline_mode<synchronous>, transform_indices = @transform_3, window_bounds = array<i64: 32, 12>}, {pipeline_mode = #tpu.pipeline_mode<synchronous>, transform_indices = @transform_4, window_bounds = array<i64: 128, 128>}, {transform_indices = @transform_5, window_bounds = array<i64: 1, 32, 128>}]} {
    %c0 = arith.constant 0 : index
    %c0_0 = arith.constant 0 : index
    %c0_1 = arith.constant 0 : index
    %0 = vector.load %arg3[%c0, %c0_0, %c0_1] : memref<1x12x128xf32, #tpu.memory_space<vmem>>, vector<1x12x128xf32>
    %1 = vector.shape_cast %0 : vector<1x12x128xf32> to vector<12x128xf32>
    %c0_2 = arith.constant 0 : index
    %c0_3 = arith.constant 0 : index
    %c0_4 = arith.constant 0 : index
    %2 = vector.load %arg4[%c0_2, %c0_3, %c0_4] : memref<1x128x5xf32, #tpu.memory_space<vmem>>, vector<1x128x5xf32>
    %3 = vector.shape_cast %2 : vector<1x128x5xf32> to vector<128x5xf32>
    %c0_5 = arith.constant 0 : index
    %c0_6 = arith.constant 0 : index
    %c0_7 = arith.constant 0 : index
    %4 = vector.load %arg5[%c0_5, %c0_6, %c0_7] : memref<1x37x128xf32, #tpu.memory_space<vmem>>, vector<1x37x128xf32>
    %5 = vector.shape_cast %4 : vector<1x37x128xf32> to vector<37x128xf32>
    %c0_8 = arith.constant 0 : index
    %c0_9 = arith.constant 0 : index
    %6 = vector.load %arg7[%c0_8, %c0_9] : memref<128x128xbf16, #tpu.memory_space<vmem>>, vector<128x128xbf16>
    %7 = vector.extract_strided_slice %5 {offsets = [0, 0], sizes = [32, 128], strides = [1, 1]} : vector<37x128xf32> to vector<32x128xf32>
    %8 = vector.extract_strided_slice %5 {offsets = [32, 0], sizes = [5, 128], strides = [1, 1]} : vector<37x128xf32> to vector<5x128xf32>
    %cst = arith.constant dense<0.000000e+00> : vector<128x128xf32>
    %9 = tpu.matmul %3, %8, %cst {dimension_numbers = #tpu.dot_dimension_numbers<[1], [0], [0], [1], [0, 0, 1, 1], [], []>} : vector<128x5xf32>, vector<5x128xf32>, vector<128x128xf32> -> vector<128x128xf32>
    %cst_10 = arith.constant 0.062490683 : f32
    %10 = vector.broadcast %cst_10 : f32 to vector<128x128xf32>
    %11 = arith.cmpf olt, %9, %10 : vector<128x128xf32>
    %c0_i32 = arith.constant 0 : i32
    %12 = arith.cmpi eq, %arg2, %c0_i32 : i32
    %13 = arith.extui %12 : i1 to i32
    %c0_i32_11 = arith.constant 0 : i32
    %14 = arith.cmpi ne, %13, %c0_i32_11 : i32
    scf.if %14 {
      %cst_26 = arith.constant 0.000000e+00 : f32
      %49 = vector.broadcast %cst_26 : f32 to vector<128x1xf32>
      %c0_27 = arith.constant 0 : index
      %c0_28 = arith.constant 0 : index
      %50 = vector.load %arg10[%c0_27, %c0_28] : memref<128x1xf32, #tpu.memory_space<vmem>>, vector<128x1xf32>
      tpu.vector_store %arg10[%c0_27, %c0_28], %49 {strides = array<i32>} : memref<128x1xf32, #tpu.memory_space<vmem>>, vector<128x1xf32>,
      %51 = vector.extract_strided_slice %7 {offsets = [0, 0], sizes = [32, 1], strides = [1, 1]} : vector<32x128xf32> to vector<32x1xf32>
      %c0_29 = arith.constant 0 : index
      %c0_30 = arith.constant 0 : index
      %52 = vector.load %arg11[%c0_29, %c0_30] : memref<32x1xf32, #tpu.memory_space<vmem>>, vector<32x1xf32>
      tpu.vector_store %arg11[%c0_29, %c0_30], %51 {strides = array<i32>} : memref<32x1xf32, #tpu.memory_space<vmem>>, vector<32x1xf32>,
    } else {
    }
    %15 = arith.extui %11 : vector<128x128xi1> to vector<128x128xi32>
    %16 = arith.sitofp %15 : vector<128x128xi32> to vector<128x128xf32>
    %17 = arith.truncf %16 : vector<128x128xf32> to vector<128x128xbf16>
    %c0_12 = arith.constant 0 : index
    %c0_13 = arith.constant 0 : index
    %18 = vector.load %arg10[%c0_12, %c0_13] : memref<128x1xf32, #tpu.memory_space<vmem>>, vector<128x1xf32>
    %cst_14 = arith.constant dense<0.000000e+00> : vector<128x128xf32>
    %19 = tpu.matmul %17, %6, %cst_14 {dimension_numbers = #tpu.dot_dimension_numbers<[1], [0], [0], [1], [0, 0, 1, 1], [], []>} : vector<128x128xbf16>, vector<128x128xbf16>, vector<128x128xf32> -> vector<128x128xf32>
    %20 = vector.broadcast %18 : vector<128x1xf32> to vector<128x128xf32>
    %21 = arith.addf %20, %19 : vector<128x128xf32>
    %cst_15 = arith.constant 8.000000e+00 : f32
    %22 = vector.broadcast %cst_15 : f32 to vector<128x128xf32>
    %23 = arith.cmpf olt, %21, %22 : vector<128x128xf32>
    %24 = arith.andi %11, %23 : vector<128x128xi1>
    %25 = vector.shape_cast %24 : vector<128x128xi1> to vector<1x128x128xi1>
    %26 = vector.shape_cast %7 : vector<32x128xf32> to vector<32x1x128xf32>
    %cst_16 = arith.constant 0xFF800000 : f32
    %27 = vector.shape_cast %25 : vector<1x128x128xi1> to vector<1x128x128xi1>
    %28 = vector.broadcast %27 : vector<1x128x128xi1> to vector<32x128x128xi1>
    %29 = vector.shape_cast %26 : vector<32x1x128xf32> to vector<32x1x128xf32>
    %30 = vector.broadcast %29 : vector<32x1x128xf32> to vector<32x128x128xf32>
    %31 = vector.broadcast %cst_16 : f32 to vector<32x128x128xf32>
    %32 = arith.select %28, %30, %31 : vector<32x128x128xi1>, vector<32x128x128xf32>
    %cst_17 = arith.constant dense<0xFF800000> : vector<32x128xf32>
    %33 = vector.multi_reduction <maximumf>, %32, %cst_17 [2] : vector<32x128x128xf32> to vector<32x128xf32>
    %c0_i32_18 = arith.constant 0 : i32
    %34 = arith.cmpi eq, %arg2, %c0_i32_18 : i32
    %35 = arith.extui %34 : i1 to i32
    %c0_i32_19 = arith.constant 0 : i32
    %36 = arith.cmpi ne, %35, %c0_i32_19 : i32
    scf.if %36 {
      %c0_26 = arith.constant 0 : index
      %c0_27 = arith.constant 0 : index
      %49 = vector.load %arg9[%c0_26, %c0_27] : memref<32x128xf32, #tpu.memory_space<vmem>>, vector<32x128xf32>
      tpu.vector_store %arg9[%c0_26, %c0_27], %33 {strides = array<i32>} : memref<32x128xf32, #tpu.memory_space<vmem>>, vector<32x128xf32>,
    } else {
    }
    %c0_i32_20 = arith.constant 0 : i32
    %37 = arith.cmpi sgt, %arg2, %c0_i32_20 : i32
    %38 = arith.extui %37 : i1 to i32
    %c0_i32_21 = arith.constant 0 : i32
    %39 = arith.cmpi ne, %38, %c0_i32_21 : i32
    scf.if %39 {
      %c0_26 = arith.constant 0 : index
      %c0_27 = arith.constant 0 : index
      %49 = vector.load %arg9[%c0_26, %c0_27] : memref<32x128xf32, #tpu.memory_space<vmem>>, vector<32x128xf32>
      %50 = arith.maximumf %49, %33 : vector<32x128xf32>
      %c0_28 = arith.constant 0 : index
      %c0_29 = arith.constant 0 : index
      %51 = vector.load %arg9[%c0_28, %c0_29] : memref<32x128xf32, #tpu.memory_space<vmem>>, vector<32x128xf32>
      tpu.vector_store %arg9[%c0_28, %c0_29], %50 {strides = array<i32>} : memref<32x128xf32, #tpu.memory_space<vmem>>, vector<32x128xf32>,
    } else {
    }
    %40 = vector.extract_strided_slice %21 {offsets = [0, 127], sizes = [128, 1], strides = [1, 1]} : vector<128x128xf32> to vector<128x1xf32>
    %41 = vector.extract_strided_slice %11 {offsets = [0, 127], sizes = [128, 1], strides = [1, 1]} : vector<128x128xi1> to vector<128x1xi1>
    %42 = arith.extui %41 : vector<128x1xi1> to vector<128x1xi32>
    %43 = arith.sitofp %42 : vector<128x1xi32> to vector<128x1xf32>
    %44 = arith.addf %40, %43 : vector<128x1xf32>
    %c0_22 = arith.constant 0 : index
    %c0_23 = arith.constant 0 : index
    %45 = vector.load %arg10[%c0_22, %c0_23] : memref<128x1xf32, #tpu.memory_space<vmem>>, vector<128x1xf32>
    tpu.vector_store %arg10[%c0_22, %c0_23], %44 {strides = array<i32>} : memref<128x1xf32, #tpu.memory_space<vmem>>, vector<128x1xf32>,
    %c0_i32_24 = arith.constant 0 : i32
    %46 = arith.cmpi eq, %arg2, %c0_i32_24 : i32
    %47 = arith.extui %46 : i1 to i32
    %c0_i32_25 = arith.constant 0 : i32
    %48 = arith.cmpi ne, %47, %c0_i32_25 : i32
    scf.if %48 {
      %c0_26 = arith.constant 0 : index
      %c0_27 = arith.constant 0 : index
      %49 = vector.load %arg6[%c0_26, %c0_27] : memref<32x12xf32, #tpu.memory_space<vmem>>, vector<32x12xf32>
      %cst_28 = arith.constant dense<0.000000e+00> : vector<32x128xf32>
      %50 = tpu.matmul %49, %1, %cst_28 {dimension_numbers = #tpu.dot_dimension_numbers<[1], [0], [0], [1], [0, 0, 1, 1], [], []>} : vector<32x12xf32>, vector<12x128xf32>, vector<32x128xf32> -> vector<32x128xf32>
      %c0_29 = arith.constant 0 : index
      %c0_30 = arith.constant 0 : index
      %51 = vector.load %arg9[%c0_29, %c0_30] : memref<32x128xf32, #tpu.memory_space<vmem>>, vector<32x128xf32>
      %52 = vector.extract_strided_slice %51 {offsets = [0, 0], sizes = [1, 128], strides = [1, 1]} : vector<32x128xf32> to vector<1x128xf32>
      %cst_31 = arith.constant 0xFF800000 : f32
      %53 = vector.broadcast %cst_31 : f32 to vector<1x128xf32>
      %54 = arith.cmpf oeq, %52, %53 : vector<1x128xf32>
      %c0_32 = arith.constant 0 : index
      %c0_33 = arith.constant 0 : index
      %55 = vector.load %arg11[%c0_32, %c0_33] : memref<32x1xf32, #tpu.memory_space<vmem>>, vector<32x1xf32>
      %56 = vector.shape_cast %54 : vector<1x128xi1> to vector<1x128xi1>
      %57 = vector.broadcast %56 : vector<1x128xi1> to vector<32x128xi1>
      %58 = vector.shape_cast %55 : vector<32x1xf32> to vector<32x1xf32>
      %59 = vector.broadcast %58 : vector<32x1xf32> to vector<32x128xf32>
      %60 = arith.select %57, %59, %51 : vector<32x128xi1>, vector<32x128xf32>
      %61 = arith.addf %60, %50 : vector<32x128xf32>
      %c0_34 = arith.constant 0 : index
      %c0_35 = arith.constant 0 : index
      %c0_36 = arith.constant 0 : index
      %62 = vector.load %arg8[%c0_34, %c0_35, %c0_36] : memref<1x32x128xf32, #tpu.memory_space<vmem>>, vector<1x32x128xf32>
      %63 = vector.shape_cast %62 : vector<1x32x128xf32> to vector<32x128xf32>
      %64 = vector.shape_cast %61 : vector<32x128xf32> to vector<1x32x128xf32>
      tpu.vector_store %arg8[%c0_34, %c0_35, %c0_36], %64 {strides = array<i32>} : memref<1x32x128xf32, #tpu.memory_space<vmem>>, vector<1x32x128xf32>,
    } else {
    }
    return
  }
  func.func @transform_0(%arg0: i32, %arg1: i32, %arg2: i32) -> (i32, i32, i32) {
    %c0_i32 = arith.constant 0 : i32
    %c0_i32_0 = arith.constant 0 : i32
    return %arg0, %c0_i32, %arg1 : i32, i32, i32
  }
  func.func @transform_1(%arg0: i32, %arg1: i32, %arg2: i32) -> (i32, i32, i32) {
    %c0_i32 = arith.constant 0 : i32
    %c0_i32_0 = arith.constant 0 : i32
    return %arg0, %arg1, %c0_i32 : i32, i32, i32
  }
  func.func @transform_2(%arg0: i32, %arg1: i32, %arg2: i32) -> (i32, i32, i32) {
    %c0_i32 = arith.constant 0 : i32
    %c0_i32_0 = arith.constant 0 : i32
    return %arg0, %c0_i32, %arg2 : i32, i32, i32
  }
  func.func @transform_3(%arg0: i32, %arg1: i32, %arg2: i32) -> (i32, i32) {
    %c0_i32 = arith.constant 0 : i32
    %c0_i32_0 = arith.constant 0 : i32
    %c0_i32_1 = arith.constant 0 : i32
    return %c0_i32, %c0_i32_0 : i32, i32
  }
  func.func @transform_4(%arg0: i32, %arg1: i32, %arg2: i32) -> (i32, i32) {
    %c0_i32 = arith.constant 0 : i32
    %c0_i32_0 = arith.constant 0 : i32
    %c0_i32_1 = arith.constant 0 : i32
    return %c0_i32, %c0_i32_0 : i32, i32
  }
  func.func @transform_5(%arg0: i32, %arg1: i32, %arg2: i32) -> (i32, i32, i32) {
    %c0_i32 = arith.constant 0 : i32
    %c0_i32_0 = arith.constant 0 : i32
    return %arg0, %c0_i32, %arg1 : i32, i32, i32
  }
}

</mosaic_0001>

<llo_original>
// kernel: tpu_custom_call.1
$region0: #{tpu_custom_call.1}
  #allocation0 [shape = 'u32[]', space=smem, size = 0x4, offset = 0x4, fixed_abs, tag = 'smem constant byte address 0x4 - core index']
  #allocation1 [shape = 'u32[72,128]{1,0:T(1,128)}', space=vmem, size = 0x9000, scoped, tag = 'internal scratch']
  #allocation2 [shape = 'f32[32,128]{1,0:T(8,128)}', space=vmem, size = 0x4000, scoped, tag = 'scratch operand']
  #allocation3 [shape = 'f32[128,1]{1,0:T(8,128)}', space=vmem, size = 0x10000, scoped, tag = 'scratch operand']
  #allocation4 [shape = 'f32[32,1]{1,0:T(8,128)}', space=vmem, size = 0x4000, scoped, tag = 'scratch operand']
  %s0 = inlined_call_operand.vmem [shape: f32[2,12,128], index: 0, kind: input, shape index: {}]
  %s1 = inlined_call_operand.vmem [shape: f32[2,128,5], index: 1, kind: input, shape index: {}]
  %s2 = inlined_call_operand.vmem [shape: f32[2,37,128], index: 2, kind: input, shape index: {}]
  %s3 = inlined_call_operand.vmem [shape: f32[32,12], index: 3, kind: input, shape index: {}]
  %s4 = inlined_call_operand.vmem [shape: bf16[128,128], index: 4, kind: input, shape index: {}]
  %s5 = inlined_call_operand.hbm [shape: f32[2,32,128], index: 5, kind: output, shape index: {}]
  %s6 = sld [smem:[#allocation0]]
  $region69: #{tpu_custom_call.1} parent=0
    _
  %s8 = ssub.s32 1, %s6
  %s9 = scalar_select 0, %s8, %s6
  $region1: #{tpu_custom_call.1} parent=0
    #allocation5 [shape = 'u8[32768]{0}', space=vmem, size = 0x8000, scoped, tag = 'output window, operand 0']
    #allocation6 [shape = 's32[2]{0}', space=sflag, size = 0x8, scoped, tag = 'scoped memory for tpu_custom_call.1']
    %10 = vsyncpa [#allocation6], 0
    %s11 = scalar_lea.sflag [#allocation6], 1
    %12 = vsyncpa %s11, 0
    loop: start=0, step=1, limit=4
    $region2: #{tpu_custom_call.1} parent=1 // loop_pre_header
      _
    $region3: #{tpu_custom_call.1} parent=1 // loop_header
      %s14 = sphi 0, %s18
      %p15 = scmp.ge.s32.totalorder %s14, 4
      %s21 = sphi 0, %s40
      %s22 = sphi 0, %s36
      %s23 = sphi 0, %s32
      %s24 = sphi 0, %s21
      %s25 = sphi 0, %s22
      %s26 = sphi 0, %s23
      %s27 = sphi 0, %s24
      %s28 = sphi 0, %s25
      %s29 = sphi 0, %s26
      %s45 = sphi 0, %s47
      %s48 = sphi 0, %s45
      %s49 = sphi 0, %s48
      %s65 = sphi 0, %s49
      %s73 = sphi 0, %s75
      %s76 = sphi 0, %s73
      %s77 = sphi 0, %s76
      %s93 = sphi 0, %s77
      %s101 = sphi 0, %s103
      %s104 = sphi 0, %s101
      %s105 = sphi 0, %s104
      %s121 = sphi 0, %s105
      %s125 = sphi 0, %s125
      %s127 = sphi 0, %s125
      %s128 = sphi 0, %s127
      %s142 = sphi 0, %s128
      %s146 = sphi 0, %s146
      %s148 = sphi 0, %s146
      %s149 = sphi 0, %s148
      %s163 = sphi 0, %s149
      %s171 = sphi 0, %s173
      %s174 = sphi 0, %s171
      %s175 = sphi 0, %s174
      %s191 = sphi 0, %s175
    $region4: #{tpu_custom_call.1} parent=1 // loop_header_branch
      %17 = sbr.rel (%p15) target = $region8
    $region5: #{tpu_custom_call.1} parent=1 // loop_body
      %s19 = ssub.s32 %s14, 1
      %s20 = ssub.s32 %s14, 2
      %s30 = sadd.s32 1, %s23
      %p31 = scmp.ge.s32.totalorder %s30, 1
      %s32 = scalar_select %p31, 0, %s30
      %s33 = sadd.s32 1, %s22
      %s34 = scalar_select %p31, %s33, %s22
      %p35 = scmp.ge.s32.totalorder %s34, 1
      %s36 = scalar_select %p35, 0, %s34
      %s37 = sadd.s32 1, %s21
      %s38 = scalar_select %p35, %s37, %s21
      %p39 = scmp.ge.s32.totalorder %s38, 2
      %s40 = scalar_select %p39, 0, %s38
      %s41 = ssub.s32 %s21, %s40
      %s42 = ssub.s32 %s22, %s36
      %s43 = sor.u32 %s41, %s42
      %p44 = scmp.eq.s32.totalorder %s43, 0
      %s46 = sadd.s32 %s45, 1
      %s47 = scalar_select %p44, %s45, %s46
      %p50 = pneg %p44
      %p51 = scmp.eq.s32.totalorder %s14, 1
      %p52 = por %p50, %p51
      %p53 = scmp.ne.s32.totalorder %s45, %s48
      %p54 = scmp.eq.s32.totalorder %s14, 0
      %p55 = por %p53, %p54
      %p56 = scmp.ne.s32.totalorder %s45, %s48
      %p57 = scmp.eq.s32.totalorder %s19, 1
      %p58 = por %p56, %p57
      %p59 = scmp.ne.s32.totalorder %s48, %s49
      %p60 = scmp.eq.s32.totalorder %s19, 0
      %p61 = por %p59, %p60
      %p62 = scmp.ne.s32.totalorder %s48, %s49
      %p63 = scmp.eq.s32.totalorder %s20, 1
      %p64 = por %p62, %p63
      %p66 = scmp.ne.s32.totalorder %s49, %s65
      %p67 = scmp.eq.s32.totalorder %s20, 0
      %p68 = por %p66, %p67
      %s69 = ssub.s32 %s21, %s40
      %s70 = ssub.s32 %s22, %s36
      %s71 = sor.u32 %s69, %s70
      %p72 = scmp.eq.s32.totalorder %s71, 0
      %s74 = sadd.s32 %s73, 1
      %s75 = scalar_select %p72, %s73, %s74
      %p78 = pneg %p72
      %p79 = scmp.eq.s32.totalorder %s14, 1
      %p80 = por %p78, %p79
      %p81 = scmp.ne.s32.totalorder %s73, %s76
      %p82 = scmp.eq.s32.totalorder %s14, 0
      %p83 = por %p81, %p82
      %p84 = scmp.ne.s32.totalorder %s73, %s76
      %p85 = scmp.eq.s32.totalorder %s19, 1
      %p86 = por %p84, %p85
      %p87 = scmp.ne.s32.totalorder %s76, %s77
      %p88 = scmp.eq.s32.totalorder %s19, 0
      %p89 = por %p87, %p88
      %p90 = scmp.ne.s32.totalorder %s76, %s77
      %p91 = scmp.eq.s32.totalorder %s20, 1
      %p92 = por %p90, %p91
      %p94 = scmp.ne.s32.totalorder %s77, %s93
      %p95 = scmp.eq.s32.totalorder %s20, 0
      %p96 = por %p94, %p95
      %s97 = ssub.s32 %s21, %s40
      %s98 = ssub.s32 %s23, %s32
      %s99 = sor.u32 %s97, %s98
      %p100 = scmp.eq.s32.totalorder %s99, 0
      %s102 = sadd.s32 %s101, 1
      %s103 = scalar_select %p100, %s101, %s102
      %p106 = pneg %p100
      %p107 = scmp.eq.s32.totalorder %s14, 1
      %p108 = por %p106, %p107
      %p109 = scmp.ne.s32.totalorder %s101, %s104
      %p110 = scmp.eq.s32.totalorder %s14, 0
      %p111 = por %p109, %p110
      %p112 = scmp.ne.s32.totalorder %s101, %s104
      %p113 = scmp.eq.s32.totalorder %s19, 1
      %p114 = por %p112, %p113
      %p115 = scmp.ne.s32.totalorder %s104, %s105
      %p116 = scmp.eq.s32.totalorder %s19, 0
      %p117 = por %p115, %p116
      %p118 = scmp.ne.s32.totalorder %s104, %s105
      %p119 = scmp.eq.s32.totalorder %s20, 1
      %p120 = por %p118, %p119
      %p122 = scmp.ne.s32.totalorder %s105, %s121
      %p123 = scmp.eq.s32.totalorder %s20, 0
      %p124 = por %p122, %p123
      %s126 = sadd.s32 %s125, 1
      %p129 = scmp.eq.s32.totalorder %s14, 1
      %p130 = scmp.ne.s32.totalorder %s125, %s127
      %p131 = scmp.eq.s32.totalorder %s14, 0
      %p132 = por %p130, %p131
      %p133 = scmp.ne.s32.totalorder %s125, %s127
      %p134 = scmp.eq.s32.totalorder %s19, 1
      %p135 = por %p133, %p134
      %p136 = scmp.ne.s32.totalorder %s127, %s128
      %p137 = scmp.eq.s32.totalorder %s19, 0
      %p138 = por %p136, %p137
      %p139 = scmp.ne.s32.totalorder %s127, %s128
      %p140 = scmp.eq.s32.totalorder %s20, 1
      %p141 = por %p139, %p140
      %p143 = scmp.ne.s32.totalorder %s128, %s142
      %p144 = scmp.eq.s32.totalorder %s20, 0
      %p145 = por %p143, %p144
      %s147 = sadd.s32 %s146, 1
      %p150 = scmp.eq.s32.totalorder %s14, 1
      %p151 = scmp.ne.s32.totalorder %s146, %s148
      %p152 = scmp.eq.s32.totalorder %s14, 0
      %p153 = por %p151, %p152
      %p154 = scmp.ne.s32.totalorder %s146, %s148
      %p155 = scmp.eq.s32.totalorder %s19, 1
      %p156 = por %p154, %p155
      %p157 = scmp.ne.s32.totalorder %s148, %s149
      %p158 = scmp.eq.s32.totalorder %s19, 0
      %p159 = por %p157, %p158
      %p160 = scmp.ne.s32.totalorder %s148, %s149
      %p161 = scmp.eq.s32.totalorder %s20, 1
      %p162 = por %p160, %p161
      %p164 = scmp.ne.s32.totalorder %s149, %s163
      %p165 = scmp.eq.s32.totalorder %s20, 0
      %p166 = por %p164, %p165
      %s167 = ssub.s32 %s21, %s40
      %s168 = ssub.s32 %s22, %s36
      %s169 = sor.u32 %s167, %s168
      %p170 = scmp.eq.s32.totalorder %s169, 0
      %s172 = sadd.s32 %s171, 1
      %s173 = scalar_select %p170, %s171, %s172
      %p176 = pneg %p170
      %p177 = scmp.eq.s32.totalorder %s14, 1
      %p178 = por %p176, %p177
      %p179 = scmp.ne.s32.totalorder %s171, %s174
      %p180 = scmp.eq.s32.totalorder %s14, 0
      %p181 = por %p179, %p180
      %p182 = scmp.ne.s32.totalorder %s171, %s174
      %p183 = scmp.eq.s32.totalorder %s19, 1
      %p184 = por %p182, %p183
      %p185 = scmp.ne.s32.totalorder %s174, %s175
      %p186 = scmp.eq.s32.totalorder %s19, 0
      %p187 = por %p185, %p186
      %p188 = scmp.ne.s32.totalorder %s174, %s175
      %p189 = scmp.eq.s32.totalorder %s20, 1
      %p190 = por %p188, %p189
      %p192 = scmp.ne.s32.totalorder %s175, %s191
      %p193 = scmp.eq.s32.totalorder %s20, 0
      %p194 = por %p192, %p193
      %p195 = scmp.le.s32.totalorder 1, %s14
      %p196 = scmp.lt.s32.totalorder %s14, 3
      %p197 = pnand %p195, %p196
      %p198 = pneg %p197
      // Predicated region
      $region9: #{tpu_custom_call.1} parent=5 // pred_check
        _
      $region10: #{tpu_custom_call.1} parent=5 // pred_check_branch
        %200 = sbr.rel (%p197) target = $region12
      $region11: #{tpu_custom_call.1} parent=5 // pred_region
        %s201 = ssub.s32 %s14, 1
        // Predicated region
        $region13: #{tpu_custom_call.1} parent=11 // pred_check
          %p202 = pneg %p138
        $region14: #{tpu_custom_call.1} parent=11 // pred_check_branch
          %204 = sbr.rel (%p202) target = $region16
        $region15: #{tpu_custom_call.1} parent=11 // pred_region
          _
        $region16: #{tpu_custom_call.1} parent=11 // pred_fallthru
          _
        // Predicated region
        $region17: #{tpu_custom_call.1} parent=11 // pred_check
          %p205 = pneg %p159
        $region18: #{tpu_custom_call.1} parent=11 // pred_check_branch
          %207 = sbr.rel (%p205) target = $region20
        $region19: #{tpu_custom_call.1} parent=11 // pred_region
          _
        $region20: #{tpu_custom_call.1} parent=11 // pred_fallthru
          _
      $region12: #{tpu_custom_call.1} parent=5 // pred_fallthru
        _
      %p208 = scmp.lt.s32.totalorder %s14, 2
      // Predicated region
      $region21: #{tpu_custom_call.1} parent=5 // pred_check
        %p209 = pneg %p208
      $region22: #{tpu_custom_call.1} parent=5 // pred_check_branch
        %211 = sbr.rel (%p209) target = $region24
      $region23: #{tpu_custom_call.1} parent=5 // pred_region
        // Predicated region
        $region25: #{tpu_custom_call.1} parent=23 // pred_check
          %p212 = pneg %p55
        $region26: #{tpu_custom_call.1} parent=23 // pred_check_branch
          %214 = sbr.rel (%p212) target = $region28
        $region27: #{tpu_custom_call.1} parent=23 // pred_region
          %p215 = scmp.lt.s32.totalorder %s21, 1
          %s216 = scalar_select %p215, %s21, 1
          %p217 = scmp.lt.s32.totalorder %s22, 0
          %s218 = scalar_select %p217, %s22, 0
          %s219 = smul.addr %s216, 2
          %s220 = sadd.s32 %s218, %s219
          %s221 = smul.addr %s220, 8
          %s222 = scalar_lea.vmem %s0, %s221
        $region28: #{tpu_custom_call.1} parent=23 // pred_fallthru
          _
        // Predicated region
        $region29: #{tpu_custom_call.1} parent=23 // pred_check
          %p223 = pneg %p83
        $region30: #{tpu_custom_call.1} parent=23 // pred_check_branch
          %225 = sbr.rel (%p223) target = $region32
        $region31: #{tpu_custom_call.1} parent=23 // pred_region
          %s226 = smul.u32 16, %s22
          %p227 = scmp.lt.s32.totalorder %s21, 1
          %s228 = scalar_select %p227, %s21, 1
          %p229 = scmp.lt.s32.totalorder %s226, 15
          %s230 = scalar_select %p229, %s226, 15
          %s231 = smul.addr %s228, 16
          %s232 = sadd.s32 %s230, %s231
          %s233 = smul.addr %s232, 8
          %s234 = scalar_lea.vmem %s1, %s233
          %s235 = smul.u32 16, %s22
        $region32: #{tpu_custom_call.1} parent=23 // pred_fallthru
          _
        // Predicated region
        $region33: #{tpu_custom_call.1} parent=23 // pred_check
          %p236 = pneg %p111
        $region34: #{tpu_custom_call.1} parent=23 // pred_check_branch
          %238 = sbr.rel (%p236) target = $region36
        $region35: #{tpu_custom_call.1} parent=23 // pred_region
          %p239 = scmp.lt.s32.totalorder %s21, 1
          %s240 = scalar_select %p239, %s21, 1
          %p241 = scmp.lt.s32.totalorder %s23, 0
          %s242 = scalar_select %p241, %s23, 0
          %s243 = smul.addr %s240, 5
          %s244 = sadd.s32 %s242, %s243
          %s245 = smul.addr %s244, 8
          %s246 = scalar_lea.vmem %s2, %s245
        $region36: #{tpu_custom_call.1} parent=23 // pred_fallthru
          _
      $region24: #{tpu_custom_call.1} parent=5 // pred_fallthru
        _
      %p247 = scmp.le.s32.totalorder 1, %s14
      %p248 = scmp.lt.s32.totalorder %s14, 3
      %p249 = pnand %p247, %p248
      %p250 = pneg %p249
      // Predicated region
      $region37: #{tpu_custom_call.1} parent=5 // pred_check
        _
      $region38: #{tpu_custom_call.1} parent=5 // pred_check_branch
        %252 = sbr.rel (%p249) target = $region40
      $region39: #{tpu_custom_call.1} parent=5 // pred_region
        %s253 = ssub.s32 %s14, 1
        %p254 = scmp.lt.s32.totalorder %s24, 1
        %s255 = scalar_select %p254, %s24, 1
        %p256 = scmp.lt.s32.totalorder %s25, 0
        %s257 = scalar_select %p256, %s25, 0
        %s258 = smul.addr %s255, 2
        %s259 = sadd.s32 %s257, %s258
        %s260 = smul.addr %s259, 8
        %s261 = scalar_lea.vmem %s0, %s260
        %p262 = pneg %p61
        %p263 = pneg %p58
        %s264 = smul.u32 16, %s25
        %p265 = scmp.lt.s32.totalorder %s24, 1
        %s266 = scalar_select %p265, %s24, 1
        %p267 = scmp.lt.s32.totalorder %s264, 15
        %s268 = scalar_select %p267, %s264, 15
        %s269 = smul.addr %s266, 16
        %s270 = sadd.s32 %s268, %s269
        %s271 = smul.addr %s270, 8
        %s272 = scalar_lea.vmem %s1, %s271
        %p273 = pneg %p89
        %p274 = pneg %p86
        %p275 = scmp.lt.s32.totalorder %s24, 1
        %s276 = scalar_select %p275, %s24, 1
        %p277 = scmp.lt.s32.totalorder %s26, 0
        %s278 = scalar_select %p277, %s26, 0
        %s279 = smul.addr %s276, 5
        %s280 = sadd.s32 %s278, %s279
        %s281 = smul.addr %s280, 8
        %s282 = scalar_lea.vmem %s2, %s281
        %p283 = pneg %p117
        %p284 = pneg %p114
        %p285 = pneg %p138
        %p286 = pneg %p135
        %p287 = pneg %p159
        %p288 = pneg %p156
        %p289 = pneg %p187
        %p290 = pneg %p184
        %s291 = sand.u32 %s174, 1
        %s292 = scalar_lea.sflag [#allocation6], %s291
        %s293 = sand.u32 %s174, 1
        %s294 = smul.addr %s293, 32
        %s295 = scalar_lea.vmem [#allocation5], %s294
        %p296 = scmp.lt.s32.totalorder %s24, 1
        %s297 = scalar_select %p296, %s24, 1
        %p298 = scmp.lt.s32.totalorder %s25, 0
        %s299 = scalar_select %p298, %s25, 0
        %s300 = smul.addr %s297, 2
        %s301 = sadd.s32 %s299, %s300
        %s302 = smul.addr %s301, 8
        %s303 = scalar_lea.vmem %s0, %s302
        %s304 = smul.u32 16, %s25
        %p305 = scmp.lt.s32.totalorder %s24, 1
        %s306 = scalar_select %p305, %s24, 1
        %p307 = scmp.lt.s32.totalorder %s304, 15
        %s308 = scalar_select %p307, %s304, 15
        %s309 = smul.addr %s306, 16
        %s310 = sadd.s32 %s308, %s309
        %s311 = smul.addr %s310, 8
        %s312 = scalar_lea.vmem %s1, %s311
        %s313 = smul.u32 16, %s25
        %p314 = scmp.lt.s32.totalorder %s24, 1
        %s315 = scalar_select %p314, %s24, 1
        %p316 = scmp.lt.s32.totalorder %s26, 0
        %s317 = scalar_select %p316, %s26, 0
        %s318 = smul.addr %s315, 5
        %s319 = sadd.s32 %s317, %s318
        %s320 = smul.addr %s319, 8
        %s321 = scalar_lea.vmem %s2, %s320
        %v322 = vld [vmem:[%s303] sm:$0xff]
        %v323 = vld [vmem:[%s303 + $0x8] sm:$0xf]
        %v324 = vld [vmem:[%s312] sm:$0xff]
        %v325 = vld [vmem:[%s312 + $0x8] sm:$0xff]
        %v326 = vld [vmem:[%s312 + $0x10] sm:$0xff]
        %v327 = vld [vmem:[%s312 + $0x18] sm:$0xff]
        %v328 = vld [vmem:[%s312 + $0x20] sm:$0xff]
        %v329 = vld [vmem:[%s312 + $0x28] sm:$0xff]
        %v330 = vld [vmem:[%s312 + $0x30] sm:$0xff]
        %v331 = vld [vmem:[%s312 + $0x38] sm:$0xff]
        %v332 = vld [vmem:[%s312 + $0x40] sm:$0xff]
        %v333 = vld [vmem:[%s312 + $0x48] sm:$0xff]
        %v334 = vld [vmem:[%s312 + $0x50] sm:$0xff]
        %v335 = vld [vmem:[%s312 + $0x58] sm:$0xff]
        %v336 = vld [vmem:[%s312 + $0x60] sm:$0xff]
        %v337 = vld [vmem:[%s312 + $0x68] sm:$0xff]
        %v338 = vld [vmem:[%s312 + $0x70] sm:$0xff]
        %v339 = vld [vmem:[%s312 + $0x78] sm:$0xff]
        %v340 = vld [vmem:[%s321] sm:$0xff]
        %v341 = vld [vmem:[%s321 + $0x8] sm:$0xff]
        %v342 = vld [vmem:[%s321 + $0x10] sm:$0xff]
        %v343 = vld [vmem:[%s321 + $0x18] sm:$0xff]
        %v344 = vld [vmem:[%s321 + $0x20] sm:$0x1f]
        %v345 = vld [vmem:[%s4] sm:$0xf]
        %v346 = vld [vmem:[%s4 + $0x4] sm:$0xf]
        %v347 = vld [vmem:[%s4 + $0x8] sm:$0xf]
        %v348 = vld [vmem:[%s4 + $0xc] sm:$0xf]
        %v349 = vld [vmem:[%s4 + $0x10] sm:$0xf]
        %v350 = vld [vmem:[%s4 + $0x14] sm:$0xf]
        %v351 = vld [vmem:[%s4 + $0x18] sm:$0xf]
        %v352 = vld [vmem:[%s4 + $0x1c] sm:$0xf]
        %v353 = vld [vmem:[%s4 + $0x20] sm:$0xf]
        %v354 = vld [vmem:[%s4 + $0x24] sm:$0xf]
        %v355 = vld [vmem:[%s4 + $0x28] sm:$0xf]
        %v356 = vld [vmem:[%s4 + $0x2c] sm:$0xf]
        %v357 = vld [vmem:[%s4 + $0x30] sm:$0xf]
        %v358 = vld [vmem:[%s4 + $0x34] sm:$0xf]
        %v359 = vld [vmem:[%s4 + $0x38] sm:$0xf]
        %v360 = vld [vmem:[%s4 + $0x3c] sm:$0xf]
        %vm361 = vcmask 39936
        %v363 = vsel %vm361, %v324, 0
        %v366 = vsel %vm361, %v325, 0
        %v369 = vsel %vm361, %v326, 0
        %v372 = vsel %vm361, %v327, 0
        %v375 = vsel %vm361, %v328, 0
        %v378 = vsel %vm361, %v329, 0
        %v381 = vsel %vm361, %v330, 0
        %v384 = vsel %vm361, %v331, 0
        %v387 = vsel %vm361, %v332, 0
        %v390 = vsel %vm361, %v333, 0
        %v393 = vsel %vm361, %v334, 0
        %v396 = vsel %vm361, %v335, 0
        %v399 = vsel %vm361, %v336, 0
        %v402 = vsel %vm361, %v337, 0
        %v405 = vsel %vm361, %v338, 0
        %v408 = vsel %vm361, %v339, 0
        %vm410 = vcmask 1044480
        %v412 = vsel %vm410, %v344, 0
        %414 = vmatpush.msra.mxu0 0.0
        %415 = vmatpush.msra.mxu0 0.0
        %416 = vmatpush.msra.mxu0 0.0
        %417 = vmatpush.msra.mxu0 0.0
        %418 = vmatpush.msra.mxu0 0.0
        %419 = vmatpush.msra.mxu0 0.0
        %420 = vmatpush.msra.mxu0 0.0
        %421 = vmatpush.msra.mxu0 0.0
        %422 = vmatpush.msra.mxu0 0.0
        %423 = vmatpush.msra.mxu0 0.0
        %424 = vmatpush.msra.mxu0 0.0
        %425 = vmatpush.msra.mxu0 0.0
        %426 = vmatpush.msra.mxu0 0.0
        %427 = vmatpush.msra.mxu0 0.0
        %428 = vmatpush.msra.mxu0 0.0
        %429 = vmatpush.msra.mxu0 %v412
        %430 = vmatmul.f32.gmra.mxu0 %v363
        %v431 = vpop.f32.mrf.mxu0
        %v432 = vadd.f32 0.0, %v431
        %433 = vmatmul.f32.gmra.mxu0 %v366
        %v434 = vpop.f32.mrf.mxu0
        %v435 = vadd.f32 0.0, %v434
        %436 = vmatmul.f32.gmra.mxu0 %v369
        %v437 = vpop.f32.mrf.mxu0
        %v438 = vadd.f32 0.0, %v437
        %439 = vmatmul.f32.gmra.mxu0 %v372
        %v440 = vpop.f32.mrf.mxu0
        %v441 = vadd.f32 0.0, %v440
        %442 = vmatmul.f32.gmra.mxu0 %v375
        %v443 = vpop.f32.mrf.mxu0
        %v444 = vadd.f32 0.0, %v443
        %445 = vmatmul.f32.gmra.mxu0 %v378
        %v446 = vpop.f32.mrf.mxu0
        %v447 = vadd.f32 0.0, %v446
        %448 = vmatmul.f32.gmra.mxu0 %v381
        %v449 = vpop.f32.mrf.mxu0
        %v450 = vadd.f32 0.0, %v449
        %451 = vmatmul.f32.gmra.mxu0 %v384
        %v452 = vpop.f32.mrf.mxu0
        %v453 = vadd.f32 0.0, %v452
        %454 = vmatmul.f32.gmra.mxu0 %v387
        %v455 = vpop.f32.mrf.mxu0
        %v456 = vadd.f32 0.0, %v455
        %457 = vmatmul.f32.gmra.mxu0 %v390
        %v458 = vpop.f32.mrf.mxu0
        %v459 = vadd.f32 0.0, %v458
        %460 = vmatmul.f32.gmra.mxu0 %v393
        %v461 = vpop.f32.mrf.mxu0
        %v462 = vadd.f32 0.0, %v461
        %463 = vmatmul.f32.gmra.mxu0 %v396
        %v464 = vpop.f32.mrf.mxu0
        %v465 = vadd.f32 0.0, %v464
        %466 = vmatmul.f32.gmra.mxu0 %v399
        %v467 = vpop.f32.mrf.mxu0
        %v468 = vadd.f32 0.0, %v467
        %469 = vmatmul.f32.gmra.mxu0 %v402
        %v470 = vpop.f32.mrf.mxu0
        %v471 = vadd.f32 0.0, %v470
        %472 = vmatmul.f32.gmra.mxu0 %v405
        %v473 = vpop.f32.mrf.mxu0
        %v474 = vadd.f32 0.0, %v473
        %475 = vmatmul.f32.gmra.mxu0 %v408
        %v476 = vpop.f32.mrf.mxu0
        %v477 = vadd.f32 0.0, %v476
        %478 = vdwg.mxu0
        %vm479 = vcmp.lt.f32.partialorder %v432, 0.062490683
        %vm480 = vcmp.lt.f32.partialorder %v435, 0.062490683
        %vm481 = vcmp.lt.f32.partialorder %v438, 0.062490683
        %vm482 = vcmp.lt.f32.partialorder %v441, 0.062490683
        %vm483 = vcmp.lt.f32.partialorder %v444, 0.062490683
        %vm484 = vcmp.lt.f32.partialorder %v447, 0.062490683
        %vm485 = vcmp.lt.f32.partialorder %v450, 0.062490683
        %vm486 = vcmp.lt.f32.partialorder %v453, 0.062490683
        %vm487 = vcmp.lt.f32.partialorder %v456, 0.062490683
        %vm488 = vcmp.lt.f32.partialorder %v459, 0.062490683
        %vm489 = vcmp.lt.f32.partialorder %v462, 0.062490683
        %vm490 = vcmp.lt.f32.partialorder %v465, 0.062490683
        %vm491 = vcmp.lt.f32.partialorder %v468, 0.062490683
        %vm492 = vcmp.lt.f32.partialorder %v471, 0.062490683
        %vm493 = vcmp.lt.f32.partialorder %v474, 0.062490683
        %vm494 = vcmp.lt.f32.partialorder %v477, 0.062490683
        %p495 = scmp.eq.s32.totalorder %s26, 0
        // Predicated region
        $region41: #{tpu_custom_call.1} parent=39 // pred_check
          %p496 = pneg %p495
        $region42: #{tpu_custom_call.1} parent=39 // pred_check_branch
          %498 = sbr.rel (%p496) target = $region44
        $region43: #{tpu_custom_call.1} parent=39 // pred_region
          %vm499 = vcmask 7168
          %500 = vst.msk [vmem:[#allocation3] sm:$0xff] %vm499, 0.0
          %501 = vst.msk [vmem:[#allocation3 + $0x8] sm:$0xff] %vm499, 0.0
          %502 = vst.msk [vmem:[#allocation3 + $0x10] sm:$0xff] %vm499, 0.0
          %503 = vst.msk [vmem:[#allocation3 + $0x18] sm:$0xff] %vm499, 0.0
          %504 = vst.msk [vmem:[#allocation3 + $0x20] sm:$0xff] %vm499, 0.0
          %505 = vst.msk [vmem:[#allocation3 + $0x28] sm:$0xff] %vm499, 0.0
          %506 = vst.msk [vmem:[#allocation3 + $0x30] sm:$0xff] %vm499, 0.0
          %507 = vst.msk [vmem:[#allocation3 + $0x38] sm:$0xff] %vm499, 0.0
          %508 = vst.msk [vmem:[#allocation3 + $0x40] sm:$0xff] %vm499, 0.0
          %509 = vst.msk [vmem:[#allocation3 + $0x48] sm:$0xff] %vm499, 0.0
          %510 = vst.msk [vmem:[#allocation3 + $0x50] sm:$0xff] %vm499, 0.0
          %511 = vst.msk [vmem:[#allocation3 + $0x58] sm:$0xff] %vm499, 0.0
          %512 = vst.msk [vmem:[#allocation3 + $0x60] sm:$0xff] %vm499, 0.0
          %513 = vst.msk [vmem:[#allocation3 + $0x68] sm:$0xff] %vm499, 0.0
          %514 = vst.msk [vmem:[#allocation3 + $0x70] sm:$0xff] %vm499, 0.0
          %515 = vst.msk [vmem:[#allocation3 + $0x78] sm:$0xff] %vm499, 0.0
          %516 = vst.msk [vmem:[#allocation4] sm:$0xff] %vm499, %v340
          %517 = vst.msk [vmem:[#allocation4 + $0x8] sm:$0xff] %vm499, %v341
          %518 = vst.msk [vmem:[#allocation4 + $0x10] sm:$0xff] %vm499, %v342
          %519 = vst.msk [vmem:[#allocation4 + $0x18] sm:$0xff] %vm499, %v343
        $region44: #{tpu_custom_call.1} parent=39 // pred_fallthru
          _
        %v520 = vsel %vm479, 1, 0
        %v521 = vsel %vm480, 1, 0
        %v522 = vsel %vm481, 1, 0
        %v523 = vsel %vm482, 1, 0
        %v524 = vsel %vm483, 1, 0
        %v525 = vsel %vm484, 1, 0
        %v526 = vsel %vm485, 1, 0
        %v527 = vsel %vm486, 1, 0
        %v528 = vsel %vm487, 1, 0
        %v529 = vsel %vm488, 1, 0
        %v530 = vsel %vm489, 1, 0
        %v531 = vsel %vm490, 1, 0
        %v532 = vsel %vm491, 1, 0
        %v533 = vsel %vm492, 1, 0
        %v534 = vsel %vm493, 1, 0
        %v535 = vsel %vm494, 1, 0
        %v536 = vcvt.s32.f32 %v520
        %v537 = vcvt.s32.f32 %v521
        %v538 = vcvt.s32.f32 %v522
        %v539 = vcvt.s32.f32 %v523
        %v540 = vcvt.s32.f32 %v524
        %v541 = vcvt.s32.f32 %v525
        %v542 = vcvt.s32.f32 %v526
        %v543 = vcvt.s32.f32 %v527
        %v544 = vcvt.s32.f32 %v528
        %v545 = vcvt.s32.f32 %v529
        %v546 = vcvt.s32.f32 %v530
        %v547 = vcvt.s32.f32 %v531
        %v548 = vcvt.s32.f32 %v532
        %v549 = vcvt.s32.f32 %v533
        %v550 = vcvt.s32.f32 %v534
        %v551 = vcvt.s32.f32 %v535
        %v552 = vpack.c.bf16 %v537, %v536
        %v553 = vpack.c.bf16 %v539, %v538
        %v554 = vpack.c.bf16 %v541, %v540
        %v555 = vpack.c.bf16 %v543, %v542
        %v556 = vpack.c.bf16 %v545, %v544
        %v557 = vpack.c.bf16 %v547, %v546
        %v558 = vpack.c.bf16 %v549, %v548
        %v559 = vpack.c.bf16 %v551, %v550
        %v560 = vld [vmem:[#allocation3] sm:$0xff]
        %v561 = vld [vmem:[#allocation3 + $0x8] sm:$0xff]
        %v562 = vld [vmem:[#allocation3 + $0x10] sm:$0xff]
        %v563 = vld [vmem:[#allocation3 + $0x18] sm:$0xff]
        %v564 = vld [vmem:[#allocation3 + $0x20] sm:$0xff]
        %v565 = vld [vmem:[#allocation3 + $0x28] sm:$0xff]
        %v566 = vld [vmem:[#allocation3 + $0x30] sm:$0xff]
        %v567 = vld [vmem:[#allocation3 + $0x38] sm:$0xff]
        %v568 = vld [vmem:[#allocation3 + $0x40] sm:$0xff]
        %v569 = vld [vmem:[#allocation3 + $0x48] sm:$0xff]
        %v570 = vld [vmem:[#allocation3 + $0x50] sm:$0xff]
        %v571 = vld [vmem:[#allocation3 + $0x58] sm:$0xff]
        %v572 = vld [vmem:[#allocation3 + $0x60] sm:$0xff]
        %v573 = vld [vmem:[#allocation3 + $0x68] sm:$0xff]
        %v574 = vld [vmem:[#allocation3 + $0x70] sm:$0xff]
        %v575 = vld [vmem:[#allocation3 + $0x78] sm:$0xff]
        %v592 = vunpack.c.l.b16 %v345
        %v593 = vunpack.c.l.b16 %v346
        %v594 = vunpack.c.l.b16 %v347
        %v595 = vunpack.c.l.b16 %v348
        %v596 = vunpack.c.l.b16 %v349
        %v597 = vunpack.c.l.b16 %v350
        %v598 = vunpack.c.l.b16 %v351
        %v599 = vunpack.c.l.b16 %v352
        %v600 = vunpack.c.l.b16 %v353
        %v601 = vunpack.c.l.b16 %v354
        %v602 = vunpack.c.l.b16 %v355
        %v603 = vunpack.c.l.b16 %v356
        %v604 = vunpack.c.l.b16 %v357
        %v605 = vunpack.c.l.b16 %v358
        %v606 = vunpack.c.l.b16 %v359
        %v607 = vunpack.c.l.b16 %v360
        %v608 = vpack.c.b16 %v593, %v592
        %v609 = vpack.c.b16 %v595, %v594
        %v610 = vpack.c.b16 %v597, %v596
        %v611 = vpack.c.b16 %v599, %v598
        %v612 = vpack.c.b16 %v601, %v600
        %v613 = vpack.c.b16 %v603, %v602
        %v614 = vpack.c.b16 %v605, %v604
        %v615 = vpack.c.b16 %v607, %v606
        %624 = vmatpush.bf16.msra.mxu0 %v615
        %625 = vmatpush.bf16.msra.mxu0 %v614
        %626 = vmatpush.bf16.msra.mxu0 %v613
        %627 = vmatpush.bf16.msra.mxu0 %v612
        %628 = vmatpush.bf16.msra.mxu0 %v611
        %629 = vmatpush.bf16.msra.mxu0 %v610
        %630 = vmatpush.bf16.msra.mxu0 %v609
        %631 = vmatpush.bf16.msra.mxu0 %v608
        %632 = vmatmul.bf16.gmra.mxu0 %v552
        %v633 = vpop.f32.mrf.mxu0
        %v634 = vadd.f32 0.0, %v633
        %v635 = vpop.f32.mrf.mxu0
        %v636 = vadd.f32 0.0, %v635
        %637 = vmatmul.bf16.gmra.mxu0 %v553
        %v638 = vpop.f32.mrf.mxu0
        %v639 = vadd.f32 0.0, %v638
        %v640 = vpop.f32.mrf.mxu0
        %v641 = vadd.f32 0.0, %v640
        %642 = vmatmul.bf16.gmra.mxu0 %v554
        %v643 = vpop.f32.mrf.mxu0
        %v644 = vadd.f32 0.0, %v643
        %v645 = vpop.f32.mrf.mxu0
        %v646 = vadd.f32 0.0, %v645
        %647 = vmatmul.bf16.gmra.mxu0 %v555
        %v648 = vpop.f32.mrf.mxu0
        %v649 = vadd.f32 0.0, %v648
        %v650 = vpop.f32.mrf.mxu0
        %v651 = vadd.f32 0.0, %v650
        %652 = vmatmul.bf16.gmra.mxu0 %v556
        %v653 = vpop.f32.mrf.mxu0
        %v654 = vadd.f32 0.0, %v653
        %v655 = vpop.f32.mrf.mxu0
        %v656 = vadd.f32 0.0, %v655
        %657 = vmatmul.bf16.gmra.mxu0 %v557
        %v658 = vpop.f32.mrf.mxu0
        %v659 = vadd.f32 0.0, %v658
        %v660 = vpop.f32.mrf.mxu0
        %v661 = vadd.f32 0.0, %v660
        %662 = vmatmul.bf16.gmra.mxu0 %v558
        %v663 = vpop.f32.mrf.mxu0
        %v664 = vadd.f32 0.0, %v663
        %v665 = vpop.f32.mrf.mxu0
        %v666 = vadd.f32 0.0, %v665
        %667 = vmatmul.bf16.gmra.mxu0 %v559
        %v668 = vpop.f32.mrf.mxu0
        %v669 = vadd.f32 0.0, %v668
        %v670 = vpop.f32.mrf.mxu0
        %v671 = vadd.f32 0.0, %v670
        %672 = vdwg.mxu0
        %674 = vset.pattern.permute.xlu0 0
        %675 = vperm.xlu0 %674, %v560
        %v676 = vpop.permute.xlu0 %675
        %679 = vset.pattern.permute.xlu0 0
        %680 = vperm.xlu0 %679, %v561
        %v681 = vpop.permute.xlu0 %680
        %684 = vset.pattern.permute.xlu0 0
        %685 = vperm.xlu0 %684, %v562
        %v686 = vpop.permute.xlu0 %685
        %689 = vset.pattern.permute.xlu0 0
        %690 = vperm.xlu0 %689, %v563
        %v691 = vpop.permute.xlu0 %690
        %694 = vset.pattern.permute.xlu0 0
        %695 = vperm.xlu0 %694, %v564
        %v696 = vpop.permute.xlu0 %695
        %699 = vset.pattern.permute.xlu0 0
        %700 = vperm.xlu0 %699, %v565
        %v701 = vpop.permute.xlu0 %700
        %704 = vset.pattern.permute.xlu0 0
        %705 = vperm.xlu0 %704, %v566
        %v706 = vpop.permute.xlu0 %705
        %709 = vset.pattern.permute.xlu0 0
        %710 = vperm.xlu0 %709, %v567
        %v711 = vpop.permute.xlu0 %710
        %714 = vset.pattern.permute.xlu0 0
        %715 = vperm.xlu0 %714, %v568
        %v716 = vpop.permute.xlu0 %715
        %719 = vset.pattern.permute.xlu0 0
        %720 = vperm.xlu0 %719, %v569
        %v721 = vpop.permute.xlu0 %720
        %724 = vset.pattern.permute.xlu0 0
        %725 = vperm.xlu0 %724, %v570
        %v726 = vpop.permute.xlu0 %725
        %729 = vset.pattern.permute.xlu0 0
        %730 = vperm.xlu0 %729, %v571
        %v731 = vpop.permute.xlu0 %730
        %734 = vset.pattern.permute.xlu0 0
        %735 = vperm.xlu0 %734, %v572
        %v736 = vpop.permute.xlu0 %735
        %739 = vset.pattern.permute.xlu0 0
        %740 = vperm.xlu0 %739, %v573
        %v741 = vpop.permute.xlu0 %740
        %744 = vset.pattern.permute.xlu0 0
        %745 = vperm.xlu0 %744, %v574
        %v746 = vpop.permute.xlu0 %745
        %749 = vset.pattern.permute.xlu0 0
        %750 = vperm.xlu0 %749, %v575
        %v751 = vpop.permute.xlu0 %750
        %v753 = vadd.f32 %v676, %v634
        %v754 = vadd.f32 %v681, %v636
        %v755 = vadd.f32 %v686, %v639
        %v756 = vadd.f32 %v691, %v641
        %v757 = vadd.f32 %v696, %v644
        %v758 = vadd.f32 %v701, %v646
        %v759 = vadd.f32 %v706, %v649
        %v760 = vadd.f32 %v711, %v651
        %v761 = vadd.f32 %v716, %v654
        %v762 = vadd.f32 %v721, %v656
        %v763 = vadd.f32 %v726, %v659
        %v764 = vadd.f32 %v731, %v661
        %v765 = vadd.f32 %v736, %v664
        %v766 = vadd.f32 %v741, %v666
        %v767 = vadd.f32 %v746, %v669
        %v768 = vadd.f32 %v751, %v671
        %vm769 = vcmp.lt.f32.partialorder %v753, 8.0
        %vm770 = vcmp.lt.f32.partialorder %v754, 8.0
        %vm771 = vcmp.lt.f32.partialorder %v755, 8.0
        %vm772 = vcmp.lt.f32.partialorder %v756, 8.0
        %vm773 = vcmp.lt.f32.partialorder %v757, 8.0
        %vm774 = vcmp.lt.f32.partialorder %v758, 8.0
        %vm775 = vcmp.lt.f32.partialorder %v759, 8.0
        %vm776 = vcmp.lt.f32.partialorder %v760, 8.0
        %vm777 = vcmp.lt.f32.partialorder %v761, 8.0
        %vm778 = vcmp.lt.f32.partialorder %v762, 8.0
        %vm779 = vcmp.lt.f32.partialorder %v763, 8.0
        %vm780 = vcmp.lt.f32.partialorder %v764, 8.0
        %vm781 = vcmp.lt.f32.partialorder %v765, 8.0
        %vm782 = vcmp.lt.f32.partialorder %v766, 8.0
        %vm783 = vcmp.lt.f32.partialorder %v767, 8.0
        %vm784 = vcmp.lt.f32.partialorder %v768, 8.0
        %vm785 = vmand %vm479, %vm769
        %vm786 = vmand %vm480, %vm770
        %vm787 = vmand %vm481, %vm771
        %vm788 = vmand %vm482, %vm772
        %vm789 = vmand %vm483, %vm773
        %vm790 = vmand %vm484, %vm774
        %vm791 = vmand %vm485, %vm775
        %vm792 = vmand %vm486, %vm776
        %vm793 = vmand %vm487, %vm777
        %vm794 = vmand %vm488, %vm778
        %vm795 = vmand %vm489, %vm779
        %vm796 = vmand %vm490, %vm780
        %vm797 = vmand %vm491, %vm781
        %vm798 = vmand %vm492, %vm782
        %vm799 = vmand %vm493, %vm783
        %vm800 = vmand %vm494, %vm784
        %v805 = vrot.slane %v340, 1
        %v806 = vrot.slane %v340, 2
        %v807 = vrot.slane %v340, 3
        %v808 = vrot.slane %v340, 4
        %v809 = vrot.slane %v340, 5
        %v810 = vrot.slane %v340, 6
        %v811 = vrot.slane %v340, 7
        %v812 = vrot.slane %v341, 1
        %v813 = vrot.slane %v341, 2
        %v814 = vrot.slane %v341, 3
        %v815 = vrot.slane %v341, 4
        %v816 = vrot.slane %v341, 5
        %v817 = vrot.slane %v341, 6
        %v818 = vrot.slane %v341, 7
        %v819 = vrot.slane %v342, 1
        %v820 = vrot.slane %v342, 2
        %v821 = vrot.slane %v342, 3
        %v822 = vrot.slane %v342, 4
        %v823 = vrot.slane %v342, 5
        %v824 = vrot.slane %v342, 6
        %v825 = vrot.slane %v342, 7
        %v826 = vrot.slane %v343, 1
        %v827 = vrot.slane %v343, 2
        %v828 = vrot.slane %v343, 3
        %v829 = vrot.slane %v343, 4
        %v830 = vrot.slane %v343, 5
        %v831 = vrot.slane %v343, 6
        %v832 = vrot.slane %v343, 7
        %v833 = vsel %vm785, 1, 0
        %v834 = vsel %vm786, 1, 0
        %v835 = vsel %vm787, 1, 0
        %v836 = vsel %vm788, 1, 0
        %v837 = vsel %vm789, 1, 0
        %v838 = vsel %vm790, 1, 0
        %v839 = vsel %vm791, 1, 0
        %v840 = vsel %vm792, 1, 0
        %v841 = vsel %vm793, 1, 0
        %v842 = vsel %vm794, 1, 0
        %v843 = vsel %vm795, 1, 0
        %v844 = vsel %vm796, 1, 0
        %v845 = vsel %vm797, 1, 0
        %v846 = vsel %vm798, 1, 0
        %v847 = vsel %vm799, 1, 0
        %v848 = vsel %vm800, 1, 0
        %vm849 = vcmp.eq.s32.totalorder %v833, 1
        %vm850 = vcmp.eq.s32.totalorder %v834, 1
        %vm851 = vcmp.eq.s32.totalorder %v835, 1
        %vm852 = vcmp.eq.s32.totalorder %v836, 1
        %vm853 = vcmp.eq.s32.totalorder %v837, 1
        %vm854 = vcmp.eq.s32.totalorder %v838, 1
        %vm855 = vcmp.eq.s32.totalorder %v839, 1
        %vm856 = vcmp.eq.s32.totalorder %v840, 1
        %vm857 = vcmp.eq.s32.totalorder %v841, 1
        %vm858 = vcmp.eq.s32.totalorder %v842, 1
        %vm859 = vcmp.eq.s32.totalorder %v843, 1
        %vm860 = vcmp.eq.s32.totalorder %v844, 1
        %vm861 = vcmp.eq.s32.totalorder %v845, 1
        %vm862 = vcmp.eq.s32.totalorder %v846, 1
        %vm863 = vcmp.eq.s32.totalorder %v847, 1
        %vm864 = vcmp.eq.s32.totalorder %v848, 1
        %v865 = vperm.slane %v340, 0
        %v866 = vperm.slane %v805, 0
        %v867 = vperm.slane %v806, 0
        %v868 = vperm.slane %v807, 0
        %v869 = vperm.slane %v808, 0
        %v870 = vperm.slane %v809, 0
        %v871 = vperm.slane %v810, 0
        %v872 = vperm.slane %v811, 0
        %v873 = vperm.slane %v341, 0
        %v874 = vperm.slane %v812, 0
        %v875 = vperm.slane %v813, 0
        %v876 = vperm.slane %v814, 0
        %v877 = vperm.slane %v815, 0
        %v878 = vperm.slane %v816, 0
        %v879 = vperm.slane %v817, 0
        %v880 = vperm.slane %v818, 0
        %v881 = vperm.slane %v342, 0
        %v882 = vperm.slane %v819, 0
        %v883 = vperm.slane %v820, 0
        %v884 = vperm.slane %v821, 0
        %v885 = vperm.slane %v822, 0
        %v886 = vperm.slane %v823, 0
        %v887 = vperm.slane %v824, 0
        %v888 = vperm.slane %v825, 0
        %v889 = vperm.slane %v343, 0
        %v890 = vperm.slane %v826, 0
        %v891 = vperm.slane %v827, 0
        %v892 = vperm.slane %v828, 0
        %v893 = vperm.slane %v829, 0
        %v894 = vperm.slane %v830, 0
        %v895 = vperm.slane %v831, 0
        %v896 = vperm.slane %v832, 0
        %v929 = vsel %vm849, %v865, -inf
        %v930 = vsel %vm850, %v865, -inf
        %v931 = vsel %vm851, %v865, -inf
        %v932 = vsel %vm852, %v865, -inf
        %v933 = vsel %vm853, %v865, -inf
        %v934 = vsel %vm854, %v865, -inf
        %v935 = vsel %vm855, %v865, -inf
        %v936 = vsel %vm856, %v865, -inf
        %v937 = vsel %vm857, %v865, -inf
        %v938 = vsel %vm858, %v865, -inf
        %v939 = vsel %vm859, %v865, -inf
        %v940 = vsel %vm860, %v865, -inf
        %v941 = vsel %vm861, %v865, -inf
        %v942 = vsel %vm862, %v865, -inf
        %v943 = vsel %vm863, %v865, -inf
        %v944 = vsel %vm864, %v865, -inf
        %v945 = vsel %vm849, %v866, -inf
        %v946 = vsel %vm850, %v866, -inf
        %v947 = vsel %vm851, %v866, -inf
        %v948 = vsel %vm852, %v866, -inf
        %v949 = vsel %vm853, %v866, -inf
        %v950 = vsel %vm854, %v866, -inf
        %v951 = vsel %vm855, %v866, -inf
        %v952 = vsel %vm856, %v866, -inf
        %v953 = vsel %vm857, %v866, -inf
        %v954 = vsel %vm858, %v866, -inf
        %v955 = vsel %vm859, %v866, -inf
        %v956 = vsel %vm860, %v866, -inf
        %v957 = vsel %vm861, %v866, -inf
        %v958 = vsel %vm862, %v866, -inf
        %v959 = vsel %vm863, %v866, -inf
        %v960 = vsel %vm864, %v866, -inf
        %v961 = vsel %vm849, %v867, -inf
        %v962 = vsel %vm850, %v867, -inf
        %v963 = vsel %vm851, %v867, -inf
        %v964 = vsel %vm852, %v867, -inf
        %v965 = vsel %vm853, %v867, -inf
        %v966 = vsel %vm854, %v867, -inf
        %v967 = vsel %vm855, %v867, -inf
        %v968 = vsel %vm856, %v867, -inf
        %v969 = vsel %vm857, %v867, -inf
        %v970 = vsel %vm858, %v867, -inf
        %v971 = vsel %vm859, %v867, -inf
        %v972 = vsel %vm860, %v867, -inf
        %v973 = vsel %vm861, %v867, -inf
        %v974 = vsel %vm862, %v867, -inf
        %v975 = vsel %vm863, %v867, -inf
        %v976 = vsel %vm864, %v867, -inf
        %v977 = vsel %vm849, %v868, -inf
        %v978 = vsel %vm850, %v868, -inf
        %v979 = vsel %vm851, %v868, -inf
        %v980 = vsel %vm852, %v868, -inf
        %v981 = vsel %vm853, %v868, -inf
        %v982 = vsel %vm854, %v868, -inf
        %v983 = vsel %vm855, %v868, -inf
        %v984 = vsel %vm856, %v868, -inf
        %v985 = vsel %vm857, %v868, -inf
        %v986 = vsel %vm858, %v868, -inf
        %v987 = vsel %vm859, %v868, -inf
        %v988 = vsel %vm860, %v868, -inf
        %v989 = vsel %vm861, %v868, -inf
        %v990 = vsel %vm862, %v868, -inf
        %v991 = vsel %vm863, %v868, -inf
        %v992 = vsel %vm864, %v868, -inf
        %v993 = vsel %vm849, %v869, -inf
        %v994 = vsel %vm850, %v869, -inf
        %v995 = vsel %vm851, %v869, -inf
        %v996 = vsel %vm852, %v869, -inf
        %v997 = vsel %vm853, %v869, -inf
        %v998 = vsel %vm854, %v869, -inf
        %v999 = vsel %vm855, %v869, -inf
        %v1000 = vsel %vm856, %v869, -inf
        %v1001 = vsel %vm857, %v869, -inf
        %v1002 = vsel %vm858, %v869, -inf
        %v1003 = vsel %vm859, %v869, -inf
        %v1004 = vsel %vm860, %v869, -inf
        %v1005 = vsel %vm861, %v869, -inf
        %v1006 = vsel %vm862, %v869, -inf
        %v1007 = vsel %vm863, %v869, -inf
        %v1008 = vsel %vm864, %v869, -inf
        %v1009 = vsel %vm849, %v870, -inf
        %v1010 = vsel %vm850, %v870, -inf
        %v1011 = vsel %vm851, %v870, -inf
        %v1012 = vsel %vm852, %v870, -inf
        %v1013 = vsel %vm853, %v870, -inf
        %v1014 = vsel %vm854, %v870, -inf
        %v1015 = vsel %vm855, %v870, -inf
        %v1016 = vsel %vm856, %v870, -inf
        %v1017 = vsel %vm857, %v870, -inf
        %v1018 = vsel %vm858, %v870, -inf
        %v1019 = vsel %vm859, %v870, -inf
        %v1020 = vsel %vm860, %v870, -inf
        %v1021 = vsel %vm861, %v870, -inf
        %v1022 = vsel %vm862, %v870, -inf
        %v1023 = vsel %vm863, %v870, -inf
        %v1024 = vsel %vm864, %v870, -inf
        %v1025 = vsel %vm849, %v871, -inf
        %v1026 = vsel %vm850, %v871, -inf
        %v1027 = vsel %vm851, %v871, -inf
        %v1028 = vsel %vm852, %v871, -inf
        %v1029 = vsel %vm853, %v871, -inf
        %v1030 = vsel %vm854, %v871, -inf
        %v1031 = vsel %vm855, %v871, -inf
        %v1032 = vsel %vm856, %v871, -inf
        %v1033 = vsel %vm857, %v871, -inf
        %v1034 = vsel %vm858, %v871, -inf
        %v1035 = vsel %vm859, %v871, -inf
        %v1036 = vsel %vm860, %v871, -inf
        %v1037 = vsel %vm861, %v871, -inf
        %v1038 = vsel %vm862, %v871, -inf
        %v1039 = vsel %vm863, %v871, -inf
        %v1040 = vsel %vm864, %v871, -inf
        %v1041 = vsel %vm849, %v872, -inf
        %v1042 = vsel %vm850, %v872, -inf
        %v1043 = vsel %vm851, %v872, -inf
        %v1044 = vsel %vm852, %v872, -inf
        %v1045 = vsel %vm853, %v872, -inf
        %v1046 = vsel %vm854, %v872, -inf
        %v1047 = vsel %vm855, %v872, -inf
        %v1048 = vsel %vm856, %v872, -inf
        %v1049 = vsel %vm857, %v872, -inf
        %v1050 = vsel %vm858, %v872, -inf
        %v1051 = vsel %vm859, %v872, -inf
        %v1052 = vsel %vm860, %v872, -inf
        %v1053 = vsel %vm861, %v872, -inf
        %v1054 = vsel %vm862, %v872, -inf
        %v1055 = vsel %vm863, %v872, -inf
        %v1056 = vsel %vm864, %v872, -inf
        %v1057 = vsel %vm849, %v873, -inf
        %v1058 = vsel %vm850, %v873, -inf
        %v1059 = vsel %vm851, %v873, -inf
        %v1060 = vsel %vm852, %v873, -inf
        %v1061 = vsel %vm853, %v873, -inf
        %v1062 = vsel %vm854, %v873, -inf
        %v1063 = vsel %vm855, %v873, -inf
        %v1064 = vsel %vm856, %v873, -inf
        %v1065 = vsel %vm857, %v873, -inf
        %v1066 = vsel %vm858, %v873, -inf
        %v1067 = vsel %vm859, %v873, -inf
        %v1068 = vsel %vm860, %v873, -inf
        %v1069 = vsel %vm861, %v873, -inf
        %v1070 = vsel %vm862, %v873, -inf
        %v1071 = vsel %vm863, %v873, -inf
        %v1072 = vsel %vm864, %v873, -inf
        %v1073 = vsel %vm849, %v874, -inf
        %v1074 = vsel %vm850, %v874, -inf
        %v1075 = vsel %vm851, %v874, -inf
        %v1076 = vsel %vm852, %v874, -inf
        %v1077 = vsel %vm853, %v874, -inf
        %v1078 = vsel %vm854, %v874, -inf
        %v1079 = vsel %vm855, %v874, -inf
        %v1080 = vsel %vm856, %v874, -inf
        %v1081 = vsel %vm857, %v874, -inf
        %v1082 = vsel %vm858, %v874, -inf
        %v1083 = vsel %vm859, %v874, -inf
        %v1084 = vsel %vm860, %v874, -inf
        %v1085 = vsel %vm861, %v874, -inf
        %v1086 = vsel %vm862, %v874, -inf
        %v1087 = vsel %vm863, %v874, -inf
        %v1088 = vsel %vm864, %v874, -inf
        %v1089 = vsel %vm849, %v875, -inf
        %v1090 = vsel %vm850, %v875, -inf
        %v1091 = vsel %vm851, %v875, -inf
        %v1092 = vsel %vm852, %v875, -inf
        %v1093 = vsel %vm853, %v875, -inf
        %v1094 = vsel %vm854, %v875, -inf
        %v1095 = vsel %vm855, %v875, -inf
        %v1096 = vsel %vm856, %v875, -inf
        %v1097 = vsel %vm857, %v875, -inf
        %v1098 = vsel %vm858, %v875, -inf
        %v1099 = vsel %vm859, %v875, -inf
        %v1100 = vsel %vm860, %v875, -inf
        %v1101 = vsel %vm861, %v875, -inf
        %v1102 = vsel %vm862, %v875, -inf
        %v1103 = vsel %vm863, %v875, -inf
        %v1104 = vsel %vm864, %v875, -inf
        %v1105 = vsel %vm849, %v876, -inf
        %v1106 = vsel %vm850, %v876, -inf
        %v1107 = vsel %vm851, %v876, -inf
        %v1108 = vsel %vm852, %v876, -inf
        %v1109 = vsel %vm853, %v876, -inf
        %v1110 = vsel %vm854, %v876, -inf
        %v1111 = vsel %vm855, %v876, -inf
        %v1112 = vsel %vm856, %v876, -inf
        %v1113 = vsel %vm857, %v876, -inf
        %v1114 = vsel %vm858, %v876, -inf
        %v1115 = vsel %vm859, %v876, -inf
        %v1116 = vsel %vm860, %v876, -inf
        %v1117 = vsel %vm861, %v876, -inf
        %v1118 = vsel %vm862, %v876, -inf
        %v1119 = vsel %vm863, %v876, -inf
        %v1120 = vsel %vm864, %v876, -inf
        %v1121 = vsel %vm849, %v877, -inf
        %v1122 = vsel %vm850, %v877, -inf
        %v1123 = vsel %vm851, %v877, -inf
        %v1124 = vsel %vm852, %v877, -inf
        %v1125 = vsel %vm853, %v877, -inf
        %v1126 = vsel %vm854, %v877, -inf
        %v1127 = vsel %vm855, %v877, -inf
        %v1128 = vsel %vm856, %v877, -inf
        %v1129 = vsel %vm857, %v877, -inf
        %v1130 = vsel %vm858, %v877, -inf
        %v1131 = vsel %vm859, %v877, -inf
        %v1132 = vsel %vm860, %v877, -inf
        %v1133 = vsel %vm861, %v877, -inf
        %v1134 = vsel %vm862, %v877, -inf
        %v1135 = vsel %vm863, %v877, -inf
        %v1136 = vsel %vm864, %v877, -inf
        %v1137 = vsel %vm849, %v878, -inf
        %v1138 = vsel %vm850, %v878, -inf
        %v1139 = vsel %vm851, %v878, -inf
        %v1140 = vsel %vm852, %v878, -inf
        %v1141 = vsel %vm853, %v878, -inf
        %v1142 = vsel %vm854, %v878, -inf
        %v1143 = vsel %vm855, %v878, -inf
        %v1144 = vsel %vm856, %v878, -inf
        %v1145 = vsel %vm857, %v878, -inf
        %v1146 = vsel %vm858, %v878, -inf
        %v1147 = vsel %vm859, %v878, -inf
        %v1148 = vsel %vm860, %v878, -inf
        %v1149 = vsel %vm861, %v878, -inf
        %v1150 = vsel %vm862, %v878, -inf
        %v1151 = vsel %vm863, %v878, -inf
        %v1152 = vsel %vm864, %v878, -inf
        %v1153 = vsel %vm849, %v879, -inf
        %v1154 = vsel %vm850, %v879, -inf
        %v1155 = vsel %vm851, %v879, -inf
        %v1156 = vsel %vm852, %v879, -inf
        %v1157 = vsel %vm853, %v879, -inf
        %v1158 = vsel %vm854, %v879, -inf
        %v1159 = vsel %vm855, %v879, -inf
        %v1160 = vsel %vm856, %v879, -inf
        %v1161 = vsel %vm857, %v879, -inf
        %v1162 = vsel %vm858, %v879, -inf
        %v1163 = vsel %vm859, %v879, -inf
        %v1164 = vsel %vm860, %v879, -inf
        %v1165 = vsel %vm861, %v879, -inf
        %v1166 = vsel %vm862, %v879, -inf
        %v1167 = vsel %vm863, %v879, -inf
        %v1168 = vsel %vm864, %v879, -inf
        %v1169 = vsel %vm849, %v880, -inf
        %v1170 = vsel %vm850, %v880, -inf
        %v1171 = vsel %vm851, %v880, -inf
        %v1172 = vsel %vm852, %v880, -inf
        %v1173 = vsel %vm853, %v880, -inf
        %v1174 = vsel %vm854, %v880, -inf
        %v1175 = vsel %vm855, %v880, -inf
        %v1176 = vsel %vm856, %v880, -inf
        %v1177 = vsel %vm857, %v880, -inf
        %v1178 = vsel %vm858, %v880, -inf
        %v1179 = vsel %vm859, %v880, -inf
        %v1180 = vsel %vm860, %v880, -inf
        %v1181 = vsel %vm861, %v880, -inf
        %v1182 = vsel %vm862, %v880, -inf
        %v1183 = vsel %vm863, %v880, -inf
        %v1184 = vsel %vm864, %v880, -inf
        %v1185 = vsel %vm849, %v881, -inf
        %v1186 = vsel %vm850, %v881, -inf
        %v1187 = vsel %vm851, %v881, -inf
        %v1188 = vsel %vm852, %v881, -inf
        %v1189 = vsel %vm853, %v881, -inf
        %v1190 = vsel %vm854, %v881, -inf
        %v1191 = vsel %vm855, %v881, -inf
        %v1192 = vsel %vm856, %v881, -inf
        %v1193 = vsel %vm857, %v881, -inf
        %v1194 = vsel %vm858, %v881, -inf
        %v1195 = vsel %vm859, %v881, -inf
        %v1196 = vsel %vm860, %v881, -inf
        %v1197 = vsel %vm861, %v881, -inf
        %v1198 = vsel %vm862, %v881, -inf
        %v1199 = vsel %vm863, %v881, -inf
        %v1200 = vsel %vm864, %v881, -inf
        %v1201 = vsel %vm849, %v882, -inf
        %v1202 = vsel %vm850, %v882, -inf
        %v1203 = vsel %vm851, %v882, -inf
        %v1204 = vsel %vm852, %v882, -inf
        %v1205 = vsel %vm853, %v882, -inf
        %v1206 = vsel %vm854, %v882, -inf
        %v1207 = vsel %vm855, %v882, -inf
        %v1208 = vsel %vm856, %v882, -inf
        %v1209 = vsel %vm857, %v882, -inf
        %v1210 = vsel %vm858, %v882, -inf
        %v1211 = vsel %vm859, %v882, -inf
        %v1212 = vsel %vm860, %v882, -inf
        %v1213 = vsel %vm861, %v882, -inf
        %v1214 = vsel %vm862, %v882, -inf
        %v1215 = vsel %vm863, %v882, -inf
        %v1216 = vsel %vm864, %v882, -inf
        %v1217 = vsel %vm849, %v883, -inf
        %v1218 = vsel %vm850, %v883, -inf
        %v1219 = vsel %vm851, %v883, -inf
        %v1220 = vsel %vm852, %v883, -inf
        %v1221 = vsel %vm853, %v883, -inf
        %v1222 = vsel %vm854, %v883, -inf
        %v1223 = vsel %vm855, %v883, -inf
        %v1224 = vsel %vm856, %v883, -inf
        %v1225 = vsel %vm857, %v883, -inf
        %v1226 = vsel %vm858, %v883, -inf
        %v1227 = vsel %vm859, %v883, -inf
        %v1228 = vsel %vm860, %v883, -inf
        %v1229 = vsel %vm861, %v883, -inf
        %v1230 = vsel %vm862, %v883, -inf
        %v1231 = vsel %vm863, %v883, -inf
        %v1232 = vsel %vm864, %v883, -inf
        %v1233 = vsel %vm849, %v884, -inf
        %v1234 = vsel %vm850, %v884, -inf
        %v1235 = vsel %vm851, %v884, -inf
        %v1236 = vsel %vm852, %v884, -inf
        %v1237 = vsel %vm853, %v884, -inf
        %v1238 = vsel %vm854, %v884, -inf
        %v1239 = vsel %vm855, %v884, -inf
        %v1240 = vsel %vm856, %v884, -inf
        %v1241 = vsel %vm857, %v884, -inf
        %v1242 = vsel %vm858, %v884, -inf
        %v1243 = vsel %vm859, %v884, -inf
        %v1244 = vsel %vm860, %v884, -inf
        %v1245 = vsel %vm861, %v884, -inf
        %v1246 = vsel %vm862, %v884, -inf
        %v1247 = vsel %vm863, %v884, -inf
        %v1248 = vsel %vm864, %v884, -inf
        %v1249 = vsel %vm849, %v885, -inf
        %v1250 = vsel %vm850, %v885, -inf
        %v1251 = vsel %vm851, %v885, -inf
        %v1252 = vsel %vm852, %v885, -inf
        %v1253 = vsel %vm853, %v885, -inf
        %v1254 = vsel %vm854, %v885, -inf
        %v1255 = vsel %vm855, %v885, -inf
        %v1256 = vsel %vm856, %v885, -inf
        %v1257 = vsel %vm857, %v885, -inf
        %v1258 = vsel %vm858, %v885, -inf
        %v1259 = vsel %vm859, %v885, -inf
        %v1260 = vsel %vm860, %v885, -inf
        %v1261 = vsel %vm861, %v885, -inf
        %v1262 = vsel %vm862, %v885, -inf
        %v1263 = vsel %vm863, %v885, -inf
        %v1264 = vsel %vm864, %v885, -inf
        %v1265 = vsel %vm849, %v886, -inf
        %v1266 = vsel %vm850, %v886, -inf
        %v1267 = vsel %vm851, %v886, -inf
        %v1268 = vsel %vm852, %v886, -inf
        %v1269 = vsel %vm853, %v886, -inf
        %v1270 = vsel %vm854, %v886, -inf
        %v1271 = vsel %vm855, %v886, -inf
        %v1272 = vsel %vm856, %v886, -inf
        %v1273 = vsel %vm857, %v886, -inf
        %v1274 = vsel %vm858, %v886, -inf
        %v1275 = vsel %vm859, %v886, -inf
        %v1276 = vsel %vm860, %v886, -inf
        %v1277 = vsel %vm861, %v886, -inf
        %v1278 = vsel %vm862, %v886, -inf
        %v1279 = vsel %vm863, %v886, -inf
        %v1280 = vsel %vm864, %v886, -inf
        %v1281 = vsel %vm849, %v887, -inf
        %v1282 = vsel %vm850, %v887, -inf
        %v1283 = vsel %vm851, %v887, -inf
        %v1284 = vsel %vm852, %v887, -inf
        %v1285 = vsel %vm853, %v887, -inf
        %v1286 = vsel %vm854, %v887, -inf
        %v1287 = vsel %vm855, %v887, -inf
        %v1288 = vsel %vm856, %v887, -inf
        %v1289 = vsel %vm857, %v887, -inf
        %v1290 = vsel %vm858, %v887, -inf
        %v1291 = vsel %vm859, %v887, -inf
        %v1292 = vsel %vm860, %v887, -inf
        %v1293 = vsel %vm861, %v887, -inf
        %v1294 = vsel %vm862, %v887, -inf
        %v1295 = vsel %vm863, %v887, -inf
        %v1296 = vsel %vm864, %v887, -inf
        %v1297 = vsel %vm849, %v888, -inf
        %v1298 = vsel %vm850, %v888, -inf
        %v1299 = vsel %vm851, %v888, -inf
        %v1300 = vsel %vm852, %v888, -inf
        %v1301 = vsel %vm853, %v888, -inf
        %v1302 = vsel %vm854, %v888, -inf
        %v1303 = vsel %vm855, %v888, -inf
        %v1304 = vsel %vm856, %v888, -inf
        %v1305 = vsel %vm857, %v888, -inf
        %v1306 = vsel %vm858, %v888, -inf
        %v1307 = vsel %vm859, %v888, -inf
        %v1308 = vsel %vm860, %v888, -inf
        %v1309 = vsel %vm861, %v888, -inf
        %v1310 = vsel %vm862, %v888, -inf
        %v1311 = vsel %vm863, %v888, -inf
        %v1312 = vsel %vm864, %v888, -inf
        %v1313 = vsel %vm849, %v889, -inf
        %v1314 = vsel %vm850, %v889, -inf
        %v1315 = vsel %vm851, %v889, -inf
        %v1316 = vsel %vm852, %v889, -inf
        %v1317 = vsel %vm853, %v889, -inf
        %v1318 = vsel %vm854, %v889, -inf
        %v1319 = vsel %vm855, %v889, -inf
        %v1320 = vsel %vm856, %v889, -inf
        %v1321 = vsel %vm857, %v889, -inf
        %v1322 = vsel %vm858, %v889, -inf
        %v1323 = vsel %vm859, %v889, -inf
        %v1324 = vsel %vm860, %v889, -inf
        %v1325 = vsel %vm861, %v889, -inf
        %v1326 = vsel %vm862, %v889, -inf
        %v1327 = vsel %vm863, %v889, -inf
        %v1328 = vsel %vm864, %v889, -inf
        %v1329 = vsel %vm849, %v890, -inf
        %v1330 = vsel %vm850, %v890, -inf
        %v1331 = vsel %vm851, %v890, -inf
        %v1332 = vsel %vm852, %v890, -inf
        %v1333 = vsel %vm853, %v890, -inf
        %v1334 = vsel %vm854, %v890, -inf
        %v1335 = vsel %vm855, %v890, -inf
        %v1336 = vsel %vm856, %v890, -inf
        %v1337 = vsel %vm857, %v890, -inf
        %v1338 = vsel %vm858, %v890, -inf
        %v1339 = vsel %vm859, %v890, -inf
        %v1340 = vsel %vm860, %v890, -inf
        %v1341 = vsel %vm861, %v890, -inf
        %v1342 = vsel %vm862, %v890, -inf
        %v1343 = vsel %vm863, %v890, -inf
        %v1344 = vsel %vm864, %v890, -inf
        %v1345 = vsel %vm849, %v891, -inf
        %v1346 = vsel %vm850, %v891, -inf
        %v1347 = vsel %vm851, %v891, -inf
        %v1348 = vsel %vm852, %v891, -inf
        %v1349 = vsel %vm853, %v891, -inf
        %v1350 = vsel %vm854, %v891, -inf
        %v1351 = vsel %vm855, %v891, -inf
        %v1352 = vsel %vm856, %v891, -inf
        %v1353 = vsel %vm857, %v891, -inf
        %v1354 = vsel %vm858, %v891, -inf
        %v1355 = vsel %vm859, %v891, -inf
        %v1356 = vsel %vm860, %v891, -inf
        %v1357 = vsel %vm861, %v891, -inf
        %v1358 = vsel %vm862, %v891, -inf
        %v1359 = vsel %vm863, %v891, -inf
        %v1360 = vsel %vm864, %v891, -inf
        %v1361 = vsel %vm849, %v892, -inf
        %v1362 = vsel %vm850, %v892, -inf
        %v1363 = vsel %vm851, %v892, -inf
        %v1364 = vsel %vm852, %v892, -inf
        %v1365 = vsel %vm853, %v892, -inf
        %v1366 = vsel %vm854, %v892, -inf
        %v1367 = vsel %vm855, %v892, -inf
        %v1368 = vsel %vm856, %v892, -inf
        %v1369 = vsel %vm857, %v892, -inf
        %v1370 = vsel %vm858, %v892, -inf
        %v1371 = vsel %vm859, %v892, -inf
        %v1372 = vsel %vm860, %v892, -inf
        %v1373 = vsel %vm861, %v892, -inf
        %v1374 = vsel %vm862, %v892, -inf
        %v1375 = vsel %vm863, %v892, -inf
        %v1376 = vsel %vm864, %v892, -inf
        %v1377 = vsel %vm849, %v893, -inf
        %v1378 = vsel %vm850, %v893, -inf
        %v1379 = vsel %vm851, %v893, -inf
        %v1380 = vsel %vm852, %v893, -inf
        %v1381 = vsel %vm853, %v893, -inf
        %v1382 = vsel %vm854, %v893, -inf
        %v1383 = vsel %vm855, %v893, -inf
        %v1384 = vsel %vm856, %v893, -inf
        %v1385 = vsel %vm857, %v893, -inf
        %v1386 = vsel %vm858, %v893, -inf
        %v1387 = vsel %vm859, %v893, -inf
        %v1388 = vsel %vm860, %v893, -inf
        %v1389 = vsel %vm861, %v893, -inf
        %v1390 = vsel %vm862, %v893, -inf
        %v1391 = vsel %vm863, %v893, -inf
        %v1392 = vsel %vm864, %v893, -inf
        %v1393 = vsel %vm849, %v894, -inf
        %v1394 = vsel %vm850, %v894, -inf
        %v1395 = vsel %vm851, %v894, -inf
        %v1396 = vsel %vm852, %v894, -inf
        %v1397 = vsel %vm853, %v894, -inf
        %v1398 = vsel %vm854, %v894, -inf
        %v1399 = vsel %vm855, %v894, -inf
        %v1400 = vsel %vm856, %v894, -inf
        %v1401 = vsel %vm857, %v894, -inf
        %v1402 = vsel %vm858, %v894, -inf
        %v1403 = vsel %vm859, %v894, -inf
        %v1404 = vsel %vm860, %v894, -inf
        %v1405 = vsel %vm861, %v894, -inf
        %v1406 = vsel %vm862, %v894, -inf
        %v1407 = vsel %vm863, %v894, -inf
        %v1408 = vsel %vm864, %v894, -inf
        %v1409 = vsel %vm849, %v895, -inf
        %v1410 = vsel %vm850, %v895, -inf
        %v1411 = vsel %vm851, %v895, -inf
        %v1412 = vsel %vm852, %v895, -inf
        %v1413 = vsel %vm853, %v895, -inf
        %v1414 = vsel %vm854, %v895, -inf
        %v1415 = vsel %vm855, %v895, -inf
        %v1416 = vsel %vm856, %v895, -inf
        %v1417 = vsel %vm857, %v895, -inf
        %v1418 = vsel %vm858, %v895, -inf
        %v1419 = vsel %vm859, %v895, -inf
        %v1420 = vsel %vm860, %v895, -inf
        %v1421 = vsel %vm861, %v895, -inf
        %v1422 = vsel %vm862, %v895, -inf
        %v1423 = vsel %vm863, %v895, -inf
        %v1424 = vsel %vm864, %v895, -inf
        %v1425 = vsel %vm849, %v896, -inf
        %v1426 = vsel %vm850, %v896, -inf
        %v1427 = vsel %vm851, %v896, -inf
        %v1428 = vsel %vm852, %v896, -inf
        %v1429 = vsel %vm853, %v896, -inf
        %v1430 = vsel %vm854, %v896, -inf
        %v1431 = vsel %vm855, %v896, -inf
        %v1432 = vsel %vm856, %v896, -inf
        %v1433 = vsel %vm857, %v896, -inf
        %v1434 = vsel %vm858, %v896, -inf
        %v1435 = vsel %vm859, %v896, -inf
        %v1436 = vsel %vm860, %v896, -inf
        %v1437 = vsel %vm861, %v896, -inf
        %v1438 = vsel %vm862, %v896, -inf
        %v1439 = vsel %vm863, %v896, -inf
        %v1440 = vsel %vm864, %v896, -inf
        %1441 = vmax.xlane.f32.xlu0 %v929
        %v1442 = vpop.xlane.xlu0 %1441
        %1443 = vmax.xlane.f32.xlu0 %v930
        %v1444 = vpop.xlane.xlu0 %1443
        %1445 = vmax.xlane.f32.xlu0 %v931
        %v1446 = vpop.xlane.xlu0 %1445
        %1447 = vmax.xlane.f32.xlu0 %v932
        %v1448 = vpop.xlane.xlu0 %1447
        %1449 = vmax.xlane.f32.xlu0 %v933
        %v1450 = vpop.xlane.xlu0 %1449
        %1451 = vmax.xlane.f32.xlu0 %v934
        %v1452 = vpop.xlane.xlu0 %1451
        %1453 = vmax.xlane.f32.xlu0 %v935
        %v1454 = vpop.xlane.xlu0 %1453
        %1455 = vmax.xlane.f32.xlu0 %v936
        %v1456 = vpop.xlane.xlu0 %1455
        %1457 = vmax.xlane.f32.xlu0 %v937
        %v1458 = vpop.xlane.xlu0 %1457
        %1459 = vmax.xlane.f32.xlu0 %v938
        %v1460 = vpop.xlane.xlu0 %1459
        %1461 = vmax.xlane.f32.xlu0 %v939
        %v1462 = vpop.xlane.xlu0 %1461
        %1463 = vmax.xlane.f32.xlu0 %v940
        %v1464 = vpop.xlane.xlu0 %1463
        %1465 = vmax.xlane.f32.xlu0 %v941
        %v1466 = vpop.xlane.xlu0 %1465
        %1467 = vmax.xlane.f32.xlu0 %v942
        %v1468 = vpop.xlane.xlu0 %1467
        %1469 = vmax.xlane.f32.xlu0 %v943
        %v1470 = vpop.xlane.xlu0 %1469
        %1471 = vmax.xlane.f32.xlu0 %v944
        %v1472 = vpop.xlane.xlu0 %1471
        %1473 = vmax.xlane.f32.xlu0 %v945
        %v1474 = vpop.xlane.xlu0 %1473
        %1475 = vmax.xlane.f32.xlu0 %v946
        %v1476 = vpop.xlane.xlu0 %1475
        %1477 = vmax.xlane.f32.xlu0 %v947
        %v1478 = vpop.xlane.xlu0 %1477
        %1479 = vmax.xlane.f32.xlu0 %v948
        %v1480 = vpop.xlane.xlu0 %1479
        %1481 = vmax.xlane.f32.xlu0 %v949
        %v1482 = vpop.xlane.xlu0 %1481
        %1483 = vmax.xlane.f32.xlu0 %v950
        %v1484 = vpop.xlane.xlu0 %1483
        %1485 = vmax.xlane.f32.xlu0 %v951
        %v1486 = vpop.xlane.xlu0 %1485
        %1487 = vmax.xlane.f32.xlu0 %v952
        %v1488 = vpop.xlane.xlu0 %1487
        %1489 = vmax.xlane.f32.xlu0 %v953
        %v1490 = vpop.xlane.xlu0 %1489
        %1491 = vmax.xlane.f32.xlu0 %v954
        %v1492 = vpop.xlane.xlu0 %1491
        %1493 = vmax.xlane.f32.xlu0 %v955
        %v1494 = vpop.xlane.xlu0 %1493
        %1495 = vmax.xlane.f32.xlu0 %v956
        %v1496 = vpop.xlane.xlu0 %1495
        %1497 = vmax.xlane.f32.xlu0 %v957
        %v1498 = vpop.xlane.xlu0 %1497
        %1499 = vmax.xlane.f32.xlu0 %v958
        %v1500 = vpop.xlane.xlu0 %1499
        %1501 = vmax.xlane.f32.xlu0 %v959
        %v1502 = vpop.xlane.xlu0 %1501
        %1503 = vmax.xlane.f32.xlu0 %v960
        %v1504 = vpop.xlane.xlu0 %1503
        %1505 = vmax.xlane.f32.xlu0 %v961
        %v1506 = vpop.xlane.xlu0 %1505
        %1507 = vmax.xlane.f32.xlu0 %v962
        %v1508 = vpop.xlane.xlu0 %1507
        %1509 = vmax.xlane.f32.xlu0 %v963
        %v1510 = vpop.xlane.xlu0 %1509
        %1511 = vmax.xlane.f32.xlu0 %v964
        %v1512 = vpop.xlane.xlu0 %1511
        %1513 = vmax.xlane.f32.xlu0 %v965
        %v1514 = vpop.xlane.xlu0 %1513
        %1515 = vmax.xlane.f32.xlu0 %v966
        %v1516 = vpop.xlane.xlu0 %1515
        %1517 = vmax.xlane.f32.xlu0 %v967
        %v1518 = vpop.xlane.xlu0 %1517
        %1519 = vmax.xlane.f32.xlu0 %v968
        %v1520 = vpop.xlane.xlu0 %1519
        %1521 = vmax.xlane.f32.xlu0 %v969
        %v1522 = vpop.xlane.xlu0 %1521
        %1523 = vmax.xlane.f32.xlu0 %v970
        %v1524 = vpop.xlane.xlu0 %1523
        %1525 = vmax.xlane.f32.xlu0 %v971
        %v1526 = vpop.xlane.xlu0 %1525
        %1527 = vmax.xlane.f32.xlu0 %v972
        %v1528 = vpop.xlane.xlu0 %1527
        %1529 = vmax.xlane.f32.xlu0 %v973
        %v1530 = vpop.xlane.xlu0 %1529
        %1531 = vmax.xlane.f32.xlu0 %v974
        %v1532 = vpop.xlane.xlu0 %1531
        %1533 = vmax.xlane.f32.xlu0 %v975
        %v1534 = vpop.xlane.xlu0 %1533
        %1535 = vmax.xlane.f32.xlu0 %v976
        %v1536 = vpop.xlane.xlu0 %1535
        %1537 = vmax.xlane.f32.xlu0 %v977
        %v1538 = vpop.xlane.xlu0 %1537
        %1539 = vmax.xlane.f32.xlu0 %v978
        %v1540 = vpop.xlane.xlu0 %1539
        %1541 = vmax.xlane.f32.xlu0 %v979
        %v1542 = vpop.xlane.xlu0 %1541
        %1543 = vmax.xlane.f32.xlu0 %v980
        %v1544 = vpop.xlane.xlu0 %1543
        %1545 = vmax.xlane.f32.xlu0 %v981
        %v1546 = vpop.xlane.xlu0 %1545
        %1547 = vmax.xlane.f32.xlu0 %v982
        %v1548 = vpop.xlane.xlu0 %1547
        %1549 = vmax.xlane.f32.xlu0 %v983
        %v1550 = vpop.xlane.xlu0 %1549
        %1551 = vmax.xlane.f32.xlu0 %v984
        %v1552 = vpop.xlane.xlu0 %1551
        %1553 = vmax.xlane.f32.xlu0 %v985
        %v1554 = vpop.xlane.xlu0 %1553
        %1555 = vmax.xlane.f32.xlu0 %v986
        %v1556 = vpop.xlane.xlu0 %1555
        %1557 = vmax.xlane.f32.xlu0 %v987
        %v1558 = vpop.xlane.xlu0 %1557
        %1559 = vmax.xlane.f32.xlu0 %v988
        %v1560 = vpop.xlane.xlu0 %1559
        %1561 = vmax.xlane.f32.xlu0 %v989
        %v1562 = vpop.xlane.xlu0 %1561
        %1563 = vmax.xlane.f32.xlu0 %v990
        %v1564 = vpop.xlane.xlu0 %1563
        %1565 = vmax.xlane.f32.xlu0 %v991
        %v1566 = vpop.xlane.xlu0 %1565
        %1567 = vmax.xlane.f32.xlu0 %v992
        %v1568 = vpop.xlane.xlu0 %1567
        %1569 = vmax.xlane.f32.xlu0 %v993
        %v1570 = vpop.xlane.xlu0 %1569
        %1571 = vmax.xlane.f32.xlu0 %v994
        %v1572 = vpop.xlane.xlu0 %1571
        %1573 = vmax.xlane.f32.xlu0 %v995
        %v1574 = vpop.xlane.xlu0 %1573
        %1575 = vmax.xlane.f32.xlu0 %v996
        %v1576 = vpop.xlane.xlu0 %1575
        %1577 = vmax.xlane.f32.xlu0 %v997
        %v1578 = vpop.xlane.xlu0 %1577
        %1579 = vmax.xlane.f32.xlu0 %v998
        %v1580 = vpop.xlane.xlu0 %1579
        %1581 = vmax.xlane.f32.xlu0 %v999
        %v1582 = vpop.xlane.xlu0 %1581
        %1583 = vmax.xlane.f32.xlu0 %v1000
        %v1584 = vpop.xlane.xlu0 %1583
        %1585 = vmax.xlane.f32.xlu0 %v1001
        %v1586 = vpop.xlane.xlu0 %1585
        %1587 = vmax.xlane.f32.xlu0 %v1002
        %v1588 = vpop.xlane.xlu0 %1587
        %1589 = vmax.xlane.f32.xlu0 %v1003
        %v1590 = vpop.xlane.xlu0 %1589
        %1591 = vmax.xlane.f32.xlu0 %v1004
        %v1592 = vpop.xlane.xlu0 %1591
        %1593 = vmax.xlane.f32.xlu0 %v1005
        %v1594 = vpop.xlane.xlu0 %1593
        %1595 = vmax.xlane.f32.xlu0 %v1006
        %v1596 = vpop.xlane.xlu0 %1595
        %1597 = vmax.xlane.f32.xlu0 %v1007
        %v1598 = vpop.xlane.xlu0 %1597
        %1599 = vmax.xlane.f32.xlu0 %v1008
        %v1600 = vpop.xlane.xlu0 %1599
        %1601 = vmax.xlane.f32.xlu0 %v1009
        %v1602 = vpop.xlane.xlu0 %1601
        %1603 = vmax.xlane.f32.xlu0 %v1010
        %v1604 = vpop.xlane.xlu0 %1603
        %1605 = vmax.xlane.f32.xlu0 %v1011
        %v1606 = vpop.xlane.xlu0 %1605
        %1607 = vmax.xlane.f32.xlu0 %v1012
        %v1608 = vpop.xlane.xlu0 %1607
        %1609 = vmax.xlane.f32.xlu0 %v1013
        %v1610 = vpop.xlane.xlu0 %1609
        %1611 = vmax.xlane.f32.xlu0 %v1014
        %v1612 = vpop.xlane.xlu0 %1611
        %1613 = vmax.xlane.f32.xlu0 %v1015
        %v1614 = vpop.xlane.xlu0 %1613
        %1615 = vmax.xlane.f32.xlu0 %v1016
        %v1616 = vpop.xlane.xlu0 %1615
        %1617 = vmax.xlane.f32.xlu0 %v1017
        %v1618 = vpop.xlane.xlu0 %1617
        %1619 = vmax.xlane.f32.xlu0 %v1018
        %v1620 = vpop.xlane.xlu0 %1619
        %1621 = vmax.xlane.f32.xlu0 %v1019
        %v1622 = vpop.xlane.xlu0 %1621
        %1623 = vmax.xlane.f32.xlu0 %v1020
        %v1624 = vpop.xlane.xlu0 %1623
        %1625 = vmax.xlane.f32.xlu0 %v1021
        %v1626 = vpop.xlane.xlu0 %1625
        %1627 = vmax.xlane.f32.xlu0 %v1022
        %v1628 = vpop.xlane.xlu0 %1627
        %1629 = vmax.xlane.f32.xlu0 %v1023
        %v1630 = vpop.xlane.xlu0 %1629
        %1631 = vmax.xlane.f32.xlu0 %v1024
        %v1632 = vpop.xlane.xlu0 %1631
        %1633 = vmax.xlane.f32.xlu0 %v1025
        %v1634 = vpop.xlane.xlu0 %1633
        %1635 = vmax.xlane.f32.xlu0 %v1026
        %v1636 = vpop.xlane.xlu0 %1635
        %1637 = vmax.xlane.f32.xlu0 %v1027
        %v1638 = vpop.xlane.xlu0 %1637
        %1639 = vmax.xlane.f32.xlu0 %v1028
        %v1640 = vpop.xlane.xlu0 %1639
        %1641 = vmax.xlane.f32.xlu0 %v1029
        %v1642 = vpop.xlane.xlu0 %1641
        %1643 = vmax.xlane.f32.xlu0 %v1030
        %v1644 = vpop.xlane.xlu0 %1643
        %1645 = vmax.xlane.f32.xlu0 %v1031
        %v1646 = vpop.xlane.xlu0 %1645
        %1647 = vmax.xlane.f32.xlu0 %v1032
        %v1648 = vpop.xlane.xlu0 %1647
        %1649 = vmax.xlane.f32.xlu0 %v1033
        %v1650 = vpop.xlane.xlu0 %1649
        %1651 = vmax.xlane.f32.xlu0 %v1034
        %v1652 = vpop.xlane.xlu0 %1651
        %1653 = vmax.xlane.f32.xlu0 %v1035
        %v1654 = vpop.xlane.xlu0 %1653
        %1655 = vmax.xlane.f32.xlu0 %v1036
        %v1656 = vpop.xlane.xlu0 %1655
        %1657 = vmax.xlane.f32.xlu0 %v1037
        %v1658 = vpop.xlane.xlu0 %1657
        %1659 = vmax.xlane.f32.xlu0 %v1038
        %v1660 = vpop.xlane.xlu0 %1659
        %1661 = vmax.xlane.f32.xlu0 %v1039
        %v1662 = vpop.xlane.xlu0 %1661
        %1663 = vmax.xlane.f32.xlu0 %v1040
        %v1664 = vpop.xlane.xlu0 %1663
        %1665 = vmax.xlane.f32.xlu0 %v1041
        %v1666 = vpop.xlane.xlu0 %1665
        %1667 = vmax.xlane.f32.xlu0 %v1042
        %v1668 = vpop.xlane.xlu0 %1667
        %1669 = vmax.xlane.f32.xlu0 %v1043
        %v1670 = vpop.xlane.xlu0 %1669
        %1671 = vmax.xlane.f32.xlu0 %v1044
        %v1672 = vpop.xlane.xlu0 %1671
        %1673 = vmax.xlane.f32.xlu0 %v1045
        %v1674 = vpop.xlane.xlu0 %1673
        %1675 = vmax.xlane.f32.xlu0 %v1046
        %v1676 = vpop.xlane.xlu0 %1675
        %1677 = vmax.xlane.f32.xlu0 %v1047
        %v1678 = vpop.xlane.xlu0 %1677
        %1679 = vmax.xlane.f32.xlu0 %v1048
        %v1680 = vpop.xlane.xlu0 %1679
        %1681 = vmax.xlane.f32.xlu0 %v1049
        %v1682 = vpop.xlane.xlu0 %1681
        %1683 = vmax.xlane.f32.xlu0 %v1050
        %v1684 = vpop.xlane.xlu0 %1683
        %1685 = vmax.xlane.f32.xlu0 %v1051
        %v1686 = vpop.xlane.xlu0 %1685
        %1687 = vmax.xlane.f32.xlu0 %v1052
        %v1688 = vpop.xlane.xlu0 %1687
        %1689 = vmax.xlane.f32.xlu0 %v1053
        %v1690 = vpop.xlane.xlu0 %1689
        %1691 = vmax.xlane.f32.xlu0 %v1054
        %v1692 = vpop.xlane.xlu0 %1691
        %1693 = vmax.xlane.f32.xlu0 %v1055
        %v1694 = vpop.xlane.xlu0 %1693
        %1695 = vmax.xlane.f32.xlu0 %v1056
        %v1696 = vpop.xlane.xlu0 %1695
        %1697 = vmax.xlane.f32.xlu0 %v1057
        %v1698 = vpop.xlane.xlu0 %1697
        %1699 = vmax.xlane.f32.xlu0 %v1058
        %v1700 = vpop.xlane.xlu0 %1699
        %1701 = vmax.xlane.f32.xlu0 %v1059
        %v1702 = vpop.xlane.xlu0 %1701
        %1703 = vmax.xlane.f32.xlu0 %v1060
        %v1704 = vpop.xlane.xlu0 %1703
        %1705 = vmax.xlane.f32.xlu0 %v1061
        %v1706 = vpop.xlane.xlu0 %1705
        %1707 = vmax.xlane.f32.xlu0 %v1062
        %v1708 = vpop.xlane.xlu0 %1707
        %1709 = vmax.xlane.f32.xlu0 %v1063
        %v1710 = vpop.xlane.xlu0 %1709
        %1711 = vmax.xlane.f32.xlu0 %v1064
        %v1712 = vpop.xlane.xlu0 %1711
        %1713 = vmax.xlane.f32.xlu0 %v1065
        %v1714 = vpop.xlane.xlu0 %1713
        %1715 = vmax.xlane.f32.xlu0 %v1066
        %v1716 = vpop.xlane.xlu0 %1715
        %1717 = vmax.xlane.f32.xlu0 %v1067
        %v1718 = vpop.xlane.xlu0 %1717
        %1719 = vmax.xlane.f32.xlu0 %v1068
        %v1720 = vpop.xlane.xlu0 %1719
        %1721 = vmax.xlane.f32.xlu0 %v1069
        %v1722 = vpop.xlane.xlu0 %1721
        %1723 = vmax.xlane.f32.xlu0 %v1070
        %v1724 = vpop.xlane.xlu0 %1723
        %1725 = vmax.xlane.f32.xlu0 %v1071
        %v1726 = vpop.xlane.xlu0 %1725
        %1727 = vmax.xlane.f32.xlu0 %v1072
        %v1728 = vpop.xlane.xlu0 %1727
        %1729 = vmax.xlane.f32.xlu0 %v1073
        %v1730 = vpop.xlane.xlu0 %1729
        %1731 = vmax.xlane.f32.xlu0 %v1074
        %v1732 = vpop.xlane.xlu0 %1731
        %1733 = vmax.xlane.f32.xlu0 %v1075
        %v1734 = vpop.xlane.xlu0 %1733
        %1735 = vmax.xlane.f32.xlu0 %v1076
        %v1736 = vpop.xlane.xlu0 %1735
        %1737 = vmax.xlane.f32.xlu0 %v1077
        %v1738 = vpop.xlane.xlu0 %1737
        %1739 = vmax.xlane.f32.xlu0 %v1078
        %v1740 = vpop.xlane.xlu0 %1739
        %1741 = vmax.xlane.f32.xlu0 %v1079
        %v1742 = vpop.xlane.xlu0 %1741
        %1743 = vmax.xlane.f32.xlu0 %v1080
        %v1744 = vpop.xlane.xlu0 %1743
        %1745 = vmax.xlane.f32.xlu0 %v1081
        %v1746 = vpop.xlane.xlu0 %1745
        %1747 = vmax.xlane.f32.xlu0 %v1082
        %v1748 = vpop.xlane.xlu0 %1747
        %1749 = vmax.xlane.f32.xlu0 %v1083
        %v1750 = vpop.xlane.xlu0 %1749
        %1751 = vmax.xlane.f32.xlu0 %v1084
        %v1752 = vpop.xlane.xlu0 %1751
        %1753 = vmax.xlane.f32.xlu0 %v1085
        %v1754 = vpop.xlane.xlu0 %1753
        %1755 = vmax.xlane.f32.xlu0 %v1086
        %v1756 = vpop.xlane.xlu0 %1755
        %1757 = vmax.xlane.f32.xlu0 %v1087
        %v1758 = vpop.xlane.xlu0 %1757
        %1759 = vmax.xlane.f32.xlu0 %v1088
        %v1760 = vpop.xlane.xlu0 %1759
        %1761 = vmax.xlane.f32.xlu0 %v1089
        %v1762 = vpop.xlane.xlu0 %1761
        %1763 = vmax.xlane.f32.xlu0 %v1090
        %v1764 = vpop.xlane.xlu0 %1763
        %1765 = vmax.xlane.f32.xlu0 %v1091
        %v1766 = vpop.xlane.xlu0 %1765
        %1767 = vmax.xlane.f32.xlu0 %v1092
        %v1768 = vpop.xlane.xlu0 %1767
        %1769 = vmax.xlane.f32.xlu0 %v1093
        %v1770 = vpop.xlane.xlu0 %1769
        %1771 = vmax.xlane.f32.xlu0 %v1094
        %v1772 = vpop.xlane.xlu0 %1771
        %1773 = vmax.xlane.f32.xlu0 %v1095
        %v1774 = vpop.xlane.xlu0 %1773
        %1775 = vmax.xlane.f32.xlu0 %v1096
        %v1776 = vpop.xlane.xlu0 %1775
        %1777 = vmax.xlane.f32.xlu0 %v1097
        %v1778 = vpop.xlane.xlu0 %1777
        %1779 = vmax.xlane.f32.xlu0 %v1098
        %v1780 = vpop.xlane.xlu0 %1779
        %1781 = vmax.xlane.f32.xlu0 %v1099
        %v1782 = vpop.xlane.xlu0 %1781
        %1783 = vmax.xlane.f32.xlu0 %v1100
        %v1784 = vpop.xlane.xlu0 %1783
        %1785 = vmax.xlane.f32.xlu0 %v1101
        %v1786 = vpop.xlane.xlu0 %1785
        %1787 = vmax.xlane.f32.xlu0 %v1102
        %v1788 = vpop.xlane.xlu0 %1787
        %1789 = vmax.xlane.f32.xlu0 %v1103
        %v1790 = vpop.xlane.xlu0 %1789
        %1791 = vmax.xlane.f32.xlu0 %v1104
        %v1792 = vpop.xlane.xlu0 %1791
        %1793 = vmax.xlane.f32.xlu0 %v1105
        %v1794 = vpop.xlane.xlu0 %1793
        %1795 = vmax.xlane.f32.xlu0 %v1106
        %v1796 = vpop.xlane.xlu0 %1795
        %1797 = vmax.xlane.f32.xlu0 %v1107
        %v1798 = vpop.xlane.xlu0 %1797
        %1799 = vmax.xlane.f32.xlu0 %v1108
        %v1800 = vpop.xlane.xlu0 %1799
        %1801 = vmax.xlane.f32.xlu0 %v1109
        %v1802 = vpop.xlane.xlu0 %1801
        %1803 = vmax.xlane.f32.xlu0 %v1110
        %v1804 = vpop.xlane.xlu0 %1803
        %1805 = vmax.xlane.f32.xlu0 %v1111
        %v1806 = vpop.xlane.xlu0 %1805
        %1807 = vmax.xlane.f32.xlu0 %v1112
        %v1808 = vpop.xlane.xlu0 %1807
        %1809 = vmax.xlane.f32.xlu0 %v1113
        %v1810 = vpop.xlane.xlu0 %1809
        %1811 = vmax.xlane.f32.xlu0 %v1114
        %v1812 = vpop.xlane.xlu0 %1811
        %1813 = vmax.xlane.f32.xlu0 %v1115
        %v1814 = vpop.xlane.xlu0 %1813
        %1815 = vmax.xlane.f32.xlu0 %v1116
        %v1816 = vpop.xlane.xlu0 %1815
        %1817 = vmax.xlane.f32.xlu0 %v1117
        %v1818 = vpop.xlane.xlu0 %1817
        %1819 = vmax.xlane.f32.xlu0 %v1118
        %v1820 = vpop.xlane.xlu0 %1819
        %1821 = vmax.xlane.f32.xlu0 %v1119
        %v1822 = vpop.xlane.xlu0 %1821
        %1823 = vmax.xlane.f32.xlu0 %v1120
        %v1824 = vpop.xlane.xlu0 %1823
        %1825 = vmax.xlane.f32.xlu0 %v1121
        %v1826 = vpop.xlane.xlu0 %1825
        %1827 = vmax.xlane.f32.xlu0 %v1122
        %v1828 = vpop.xlane.xlu0 %1827
        %1829 = vmax.xlane.f32.xlu0 %v1123
        %v1830 = vpop.xlane.xlu0 %1829
        %1831 = vmax.xlane.f32.xlu0 %v1124
        %v1832 = vpop.xlane.xlu0 %1831
        %1833 = vmax.xlane.f32.xlu0 %v1125
        %v1834 = vpop.xlane.xlu0 %1833
        %1835 = vmax.xlane.f32.xlu0 %v1126
        %v1836 = vpop.xlane.xlu0 %1835
        %1837 = vmax.xlane.f32.xlu0 %v1127
        %v1838 = vpop.xlane.xlu0 %1837
        %1839 = vmax.xlane.f32.xlu0 %v1128
        %v1840 = vpop.xlane.xlu0 %1839
        %1841 = vmax.xlane.f32.xlu0 %v1129
        %v1842 = vpop.xlane.xlu0 %1841
        %1843 = vmax.xlane.f32.xlu0 %v1130
        %v1844 = vpop.xlane.xlu0 %1843
        %1845 = vmax.xlane.f32.xlu0 %v1131
        %v1846 = vpop.xlane.xlu0 %1845
        %1847 = vmax.xlane.f32.xlu0 %v1132
        %v1848 = vpop.xlane.xlu0 %1847
        %1849 = vmax.xlane.f32.xlu0 %v1133
        %v1850 = vpop.xlane.xlu0 %1849
        %1851 = vmax.xlane.f32.xlu0 %v1134
        %v1852 = vpop.xlane.xlu0 %1851
        %1853 = vmax.xlane.f32.xlu0 %v1135
        %v1854 = vpop.xlane.xlu0 %1853
        %1855 = vmax.xlane.f32.xlu0 %v1136
        %v1856 = vpop.xlane.xlu0 %1855
        %1857 = vmax.xlane.f32.xlu0 %v1137
        %v1858 = vpop.xlane.xlu0 %1857
        %1859 = vmax.xlane.f32.xlu0 %v1138
        %v1860 = vpop.xlane.xlu0 %1859
        %1861 = vmax.xlane.f32.xlu0 %v1139
        %v1862 = vpop.xlane.xlu0 %1861
        %1863 = vmax.xlane.f32.xlu0 %v1140
        %v1864 = vpop.xlane.xlu0 %1863
        %1865 = vmax.xlane.f32.xlu0 %v1141
        %v1866 = vpop.xlane.xlu0 %1865
        %1867 = vmax.xlane.f32.xlu0 %v1142
        %v1868 = vpop.xlane.xlu0 %1867
        %1869 = vmax.xlane.f32.xlu0 %v1143
        %v1870 = vpop.xlane.xlu0 %1869
        %1871 = vmax.xlane.f32.xlu0 %v1144
        %v1872 = vpop.xlane.xlu0 %1871
        %1873 = vmax.xlane.f32.xlu0 %v1145
        %v1874 = vpop.xlane.xlu0 %1873
        %1875 = vmax.xlane.f32.xlu0 %v1146
        %v1876 = vpop.xlane.xlu0 %1875
        %1877 = vmax.xlane.f32.xlu0 %v1147
        %v1878 = vpop.xlane.xlu0 %1877
        %1879 = vmax.xlane.f32.xlu0 %v1148
        %v1880 = vpop.xlane.xlu0 %1879
        %1881 = vmax.xlane.f32.xlu0 %v1149
        %v1882 = vpop.xlane.xlu0 %1881
        %1883 = vmax.xlane.f32.xlu0 %v1150
        %v1884 = vpop.xlane.xlu0 %1883
        %1885 = vmax.xlane.f32.xlu0 %v1151
        %v1886 = vpop.xlane.xlu0 %1885
        %1887 = vmax.xlane.f32.xlu0 %v1152
        %v1888 = vpop.xlane.xlu0 %1887
        %1889 = vmax.xlane.f32.xlu0 %v1153
        %v1890 = vpop.xlane.xlu0 %1889
        %1891 = vmax.xlane.f32.xlu0 %v1154
        %v1892 = vpop.xlane.xlu0 %1891
        %1893 = vmax.xlane.f32.xlu0 %v1155
        %v1894 = vpop.xlane.xlu0 %1893
        %1895 = vmax.xlane.f32.xlu0 %v1156
        %v1896 = vpop.xlane.xlu0 %1895
        %1897 = vmax.xlane.f32.xlu0 %v1157
        %v1898 = vpop.xlane.xlu0 %1897
        %1899 = vmax.xlane.f32.xlu0 %v1158
        %v1900 = vpop.xlane.xlu0 %1899
        %1901 = vmax.xlane.f32.xlu0 %v1159
        %v1902 = vpop.xlane.xlu0 %1901
        %1903 = vmax.xlane.f32.xlu0 %v1160
        %v1904 = vpop.xlane.xlu0 %1903
        %1905 = vmax.xlane.f32.xlu0 %v1161
        %v1906 = vpop.xlane.xlu0 %1905
        %1907 = vmax.xlane.f32.xlu0 %v1162
        %v1908 = vpop.xlane.xlu0 %1907
        %1909 = vmax.xlane.f32.xlu0 %v1163
        %v1910 = vpop.xlane.xlu0 %1909
        %1911 = vmax.xlane.f32.xlu0 %v1164
        %v1912 = vpop.xlane.xlu0 %1911
        %1913 = vmax.xlane.f32.xlu0 %v1165
        %v1914 = vpop.xlane.xlu0 %1913
        %1915 = vmax.xlane.f32.xlu0 %v1166
        %v1916 = vpop.xlane.xlu0 %1915
        %1917 = vmax.xlane.f32.xlu0 %v1167
        %v1918 = vpop.xlane.xlu0 %1917
        %1919 = vmax.xlane.f32.xlu0 %v1168
        %v1920 = vpop.xlane.xlu0 %1919
        %1921 = vmax.xlane.f32.xlu0 %v1169
        %v1922 = vpop.xlane.xlu0 %1921
        %1923 = vmax.xlane.f32.xlu0 %v1170
        %v1924 = vpop.xlane.xlu0 %1923
        %1925 = vmax.xlane.f32.xlu0 %v1171
        %v1926 = vpop.xlane.xlu0 %1925
        %1927 = vmax.xlane.f32.xlu0 %v1172
        %v1928 = vpop.xlane.xlu0 %1927
        %1929 = vmax.xlane.f32.xlu0 %v1173
        %v1930 = vpop.xlane.xlu0 %1929
        %1931 = vmax.xlane.f32.xlu0 %v1174
        %v1932 = vpop.xlane.xlu0 %1931
        %1933 = vmax.xlane.f32.xlu0 %v1175
        %v1934 = vpop.xlane.xlu0 %1933
        %1935 = vmax.xlane.f32.xlu0 %v1176
        %v1936 = vpop.xlane.xlu0 %1935
        %1937 = vmax.xlane.f32.xlu0 %v1177
        %v1938 = vpop.xlane.xlu0 %1937
        %1939 = vmax.xlane.f32.xlu0 %v1178
        %v1940 = vpop.xlane.xlu0 %1939
        %1941 = vmax.xlane.f32.xlu0 %v1179
        %v1942 = vpop.xlane.xlu0 %1941
        %1943 = vmax.xlane.f32.xlu0 %v1180
        %v1944 = vpop.xlane.xlu0 %1943
        %1945 = vmax.xlane.f32.xlu0 %v1181
        %v1946 = vpop.xlane.xlu0 %1945
        %1947 = vmax.xlane.f32.xlu0 %v1182
        %v1948 = vpop.xlane.xlu0 %1947
        %1949 = vmax.xlane.f32.xlu0 %v1183
        %v1950 = vpop.xlane.xlu0 %1949
        %1951 = vmax.xlane.f32.xlu0 %v1184
        %v1952 = vpop.xlane.xlu0 %1951
        %1953 = vmax.xlane.f32.xlu0 %v1185
        %v1954 = vpop.xlane.xlu0 %1953
        %1955 = vmax.xlane.f32.xlu0 %v1186
        %v1956 = vpop.xlane.xlu0 %1955
        %1957 = vmax.xlane.f32.xlu0 %v1187
        %v1958 = vpop.xlane.xlu0 %1957
        %1959 = vmax.xlane.f32.xlu0 %v1188
        %v1960 = vpop.xlane.xlu0 %1959
        %1961 = vmax.xlane.f32.xlu0 %v1189
        %v1962 = vpop.xlane.xlu0 %1961
        %1963 = vmax.xlane.f32.xlu0 %v1190
        %v1964 = vpop.xlane.xlu0 %1963
        %1965 = vmax.xlane.f32.xlu0 %v1191
        %v1966 = vpop.xlane.xlu0 %1965
        %1967 = vmax.xlane.f32.xlu0 %v1192
        %v1968 = vpop.xlane.xlu0 %1967
        %1969 = vmax.xlane.f32.xlu0 %v1193
        %v1970 = vpop.xlane.xlu0 %1969
        %1971 = vmax.xlane.f32.xlu0 %v1194
        %v1972 = vpop.xlane.xlu0 %1971
        %1973 = vmax.xlane.f32.xlu0 %v1195
        %v1974 = vpop.xlane.xlu0 %1973
        %1975 = vmax.xlane.f32.xlu0 %v1196
        %v1976 = vpop.xlane.xlu0 %1975
        %1977 = vmax.xlane.f32.xlu0 %v1197
        %v1978 = vpop.xlane.xlu0 %1977
        %1979 = vmax.xlane.f32.xlu0 %v1198
        %v1980 = vpop.xlane.xlu0 %1979
        %1981 = vmax.xlane.f32.xlu0 %v1199
        %v1982 = vpop.xlane.xlu0 %1981
        %1983 = vmax.xlane.f32.xlu0 %v1200
        %v1984 = vpop.xlane.xlu0 %1983
        %1985 = vmax.xlane.f32.xlu0 %v1201
        %v1986 = vpop.xlane.xlu0 %1985
        %1987 = vmax.xlane.f32.xlu0 %v1202
        %v1988 = vpop.xlane.xlu0 %1987
        %1989 = vmax.xlane.f32.xlu0 %v1203
        %v1990 = vpop.xlane.xlu0 %1989
        %1991 = vmax.xlane.f32.xlu0 %v1204
        %v1992 = vpop.xlane.xlu0 %1991
        %1993 = vmax.xlane.f32.xlu0 %v1205
        %v1994 = vpop.xlane.xlu0 %1993
        %1995 = vmax.xlane.f32.xlu0 %v1206
        %v1996 = vpop.xlane.xlu0 %1995
        %1997 = vmax.xlane.f32.xlu0 %v1207
        %v1998 = vpop.xlane.xlu0 %1997
        %1999 = vmax.xlane.f32.xlu0 %v1208
        %v2000 = vpop.xlane.xlu0 %1999
        %2001 = vmax.xlane.f32.xlu0 %v1209
        %v2002 = vpop.xlane.xlu0 %2001
        %2003 = vmax.xlane.f32.xlu0 %v1210
        %v2004 = vpop.xlane.xlu0 %2003
        %2005 = vmax.xlane.f32.xlu0 %v1211
        %v2006 = vpop.xlane.xlu0 %2005
        %2007 = vmax.xlane.f32.xlu0 %v1212
        %v2008 = vpop.xlane.xlu0 %2007
        %2009 = vmax.xlane.f32.xlu0 %v1213
        %v2010 = vpop.xlane.xlu0 %2009
        %2011 = vmax.xlane.f32.xlu0 %v1214
        %v2012 = vpop.xlane.xlu0 %2011
        %2013 = vmax.xlane.f32.xlu0 %v1215
        %v2014 = vpop.xlane.xlu0 %2013
        %2015 = vmax.xlane.f32.xlu0 %v1216
        %v2016 = vpop.xlane.xlu0 %2015
        %2017 = vmax.xlane.f32.xlu0 %v1217
        %v2018 = vpop.xlane.xlu0 %2017
        %2019 = vmax.xlane.f32.xlu0 %v1218
        %v2020 = vpop.xlane.xlu0 %2019
        %2021 = vmax.xlane.f32.xlu0 %v1219
        %v2022 = vpop.xlane.xlu0 %2021
        %2023 = vmax.xlane.f32.xlu0 %v1220
        %v2024 = vpop.xlane.xlu0 %2023
        %2025 = vmax.xlane.f32.xlu0 %v1221
        %v2026 = vpop.xlane.xlu0 %2025
        %2027 = vmax.xlane.f32.xlu0 %v1222
        %v2028 = vpop.xlane.xlu0 %2027
        %2029 = vmax.xlane.f32.xlu0 %v1223
        %v2030 = vpop.xlane.xlu0 %2029
        %2031 = vmax.xlane.f32.xlu0 %v1224
        %v2032 = vpop.xlane.xlu0 %2031
        %2033 = vmax.xlane.f32.xlu0 %v1225
        %v2034 = vpop.xlane.xlu0 %2033
        %2035 = vmax.xlane.f32.xlu0 %v1226
        %v2036 = vpop.xlane.xlu0 %2035
        %2037 = vmax.xlane.f32.xlu0 %v1227
        %v2038 = vpop.xlane.xlu0 %2037
        %2039 = vmax.xlane.f32.xlu0 %v1228
        %v2040 = vpop.xlane.xlu0 %2039
        %2041 = vmax.xlane.f32.xlu0 %v1229
        %v2042 = vpop.xlane.xlu0 %2041
        %2043 = vmax.xlane.f32.xlu0 %v1230
        %v2044 = vpop.xlane.xlu0 %2043
        %2045 = vmax.xlane.f32.xlu0 %v1231
        %v2046 = vpop.xlane.xlu0 %2045
        %2047 = vmax.xlane.f32.xlu0 %v1232
        %v2048 = vpop.xlane.xlu0 %2047
        %2049 = vmax.xlane.f32.xlu0 %v1233
        %v2050 = vpop.xlane.xlu0 %2049
        %2051 = vmax.xlane.f32.xlu0 %v1234
        %v2052 = vpop.xlane.xlu0 %2051
        %2053 = vmax.xlane.f32.xlu0 %v1235
        %v2054 = vpop.xlane.xlu0 %2053
        %2055 = vmax.xlane.f32.xlu0 %v1236
        %v2056 = vpop.xlane.xlu0 %2055
        %2057 = vmax.xlane.f32.xlu0 %v1237
        %v2058 = vpop.xlane.xlu0 %2057
        %2059 = vmax.xlane.f32.xlu0 %v1238
        %v2060 = vpop.xlane.xlu0 %2059
        %2061 = vmax.xlane.f32.xlu0 %v1239
        %v2062 = vpop.xlane.xlu0 %2061
        %2063 = vmax.xlane.f32.xlu0 %v1240
        %v2064 = vpop.xlane.xlu0 %2063
        %2065 = vmax.xlane.f32.xlu0 %v1241
        %v2066 = vpop.xlane.xlu0 %2065
        %2067 = vmax.xlane.f32.xlu0 %v1242
        %v2068 = vpop.xlane.xlu0 %2067
        %2069 = vmax.xlane.f32.xlu0 %v1243
        %v2070 = vpop.xlane.xlu0 %2069
        %2071 = vmax.xlane.f32.xlu0 %v1244
        %v2072 = vpop.xlane.xlu0 %2071
        %2073 = vmax.xlane.f32.xlu0 %v1245
        %v2074 = vpop.xlane.xlu0 %2073
        %2075 = vmax.xlane.f32.xlu0 %v1246
        %v2076 = vpop.xlane.xlu0 %2075
        %2077 = vmax.xlane.f32.xlu0 %v1247
        %v2078 = vpop.xlane.xlu0 %2077
        %2079 = vmax.xlane.f32.xlu0 %v1248
        %v2080 = vpop.xlane.xlu0 %2079
        %2081 = vmax.xlane.f32.xlu0 %v1249
        %v2082 = vpop.xlane.xlu0 %2081
        %2083 = vmax.xlane.f32.xlu0 %v1250
        %v2084 = vpop.xlane.xlu0 %2083
        %2085 = vmax.xlane.f32.xlu0 %v1251
        %v2086 = vpop.xlane.xlu0 %2085
        %2087 = vmax.xlane.f32.xlu0 %v1252
        %v2088 = vpop.xlane.xlu0 %2087
        %2089 = vmax.xlane.f32.xlu0 %v1253
        %v2090 = vpop.xlane.xlu0 %2089
        %2091 = vmax.xlane.f32.xlu0 %v1254
        %v2092 = vpop.xlane.xlu0 %2091
        %2093 = vmax.xlane.f32.xlu0 %v1255
        %v2094 = vpop.xlane.xlu0 %2093
        %2095 = vmax.xlane.f32.xlu0 %v1256
        %v2096 = vpop.xlane.xlu0 %2095
        %2097 = vmax.xlane.f32.xlu0 %v1257
        %v2098 = vpop.xlane.xlu0 %2097
        %2099 = vmax.xlane.f32.xlu0 %v1258
        %v2100 = vpop.xlane.xlu0 %2099
        %2101 = vmax.xlane.f32.xlu0 %v1259
        %v2102 = vpop.xlane.xlu0 %2101
        %2103 = vmax.xlane.f32.xlu0 %v1260
        %v2104 = vpop.xlane.xlu0 %2103
        %2105 = vmax.xlane.f32.xlu0 %v1261
        %v2106 = vpop.xlane.xlu0 %2105
        %2107 = vmax.xlane.f32.xlu0 %v1262
        %v2108 = vpop.xlane.xlu0 %2107
        %2109 = vmax.xlane.f32.xlu0 %v1263
        %v2110 = vpop.xlane.xlu0 %2109
        %2111 = vmax.xlane.f32.xlu0 %v1264
        %v2112 = vpop.xlane.xlu0 %2111
        %2113 = vmax.xlane.f32.xlu0 %v1265
        %v2114 = vpop.xlane.xlu0 %2113
        %2115 = vmax.xlane.f32.xlu0 %v1266
        %v2116 = vpop.xlane.xlu0 %2115
        %2117 = vmax.xlane.f32.xlu0 %v1267
        %v2118 = vpop.xlane.xlu0 %2117
        %2119 = vmax.xlane.f32.xlu0 %v1268
        %v2120 = vpop.xlane.xlu0 %2119
        %2121 = vmax.xlane.f32.xlu0 %v1269
        %v2122 = vpop.xlane.xlu0 %2121
        %2123 = vmax.xlane.f32.xlu0 %v1270
        %v2124 = vpop.xlane.xlu0 %2123
        %2125 = vmax.xlane.f32.xlu0 %v1271
        %v2126 = vpop.xlane.xlu0 %2125
        %2127 = vmax.xlane.f32.xlu0 %v1272
        %v2128 = vpop.xlane.xlu0 %2127
        %2129 = vmax.xlane.f32.xlu0 %v1273
        %v2130 = vpop.xlane.xlu0 %2129
        %2131 = vmax.xlane.f32.xlu0 %v1274
        %v2132 = vpop.xlane.xlu0 %2131
        %2133 = vmax.xlane.f32.xlu0 %v1275
        %v2134 = vpop.xlane.xlu0 %2133
        %2135 = vmax.xlane.f32.xlu0 %v1276
        %v2136 = vpop.xlane.xlu0 %2135
        %2137 = vmax.xlane.f32.xlu0 %v1277
        %v2138 = vpop.xlane.xlu0 %2137
        %2139 = vmax.xlane.f32.xlu0 %v1278
        %v2140 = vpop.xlane.xlu0 %2139
        %2141 = vmax.xlane.f32.xlu0 %v1279
        %v2142 = vpop.xlane.xlu0 %2141
        %2143 = vmax.xlane.f32.xlu0 %v1280
        %v2144 = vpop.xlane.xlu0 %2143
        %2145 = vmax.xlane.f32.xlu0 %v1281
        %v2146 = vpop.xlane.xlu0 %2145
        %2147 = vmax.xlane.f32.xlu0 %v1282
        %v2148 = vpop.xlane.xlu0 %2147
        %2149 = vmax.xlane.f32.xlu0 %v1283
        %v2150 = vpop.xlane.xlu0 %2149
        %2151 = vmax.xlane.f32.xlu0 %v1284
        %v2152 = vpop.xlane.xlu0 %2151
        %2153 = vmax.xlane.f32.xlu0 %v1285
        %v2154 = vpop.xlane.xlu0 %2153
        %2155 = vmax.xlane.f32.xlu0 %v1286
        %v2156 = vpop.xlane.xlu0 %2155
        %2157 = vmax.xlane.f32.xlu0 %v1287
        %v2158 = vpop.xlane.xlu0 %2157
        %2159 = vmax.xlane.f32.xlu0 %v1288
        %v2160 = vpop.xlane.xlu0 %2159
        %2161 = vmax.xlane.f32.xlu0 %v1289
        %v2162 = vpop.xlane.xlu0 %2161
        %2163 = vmax.xlane.f32.xlu0 %v1290
        %v2164 = vpop.xlane.xlu0 %2163
        %2165 = vmax.xlane.f32.xlu0 %v1291
        %v2166 = vpop.xlane.xlu0 %2165
        %2167 = vmax.xlane.f32.xlu0 %v1292
        %v2168 = vpop.xlane.xlu0 %2167
        %2169 = vmax.xlane.f32.xlu0 %v1293
        %v2170 = vpop.xlane.xlu0 %2169
        %2171 = vmax.xlane.f32.xlu0 %v1294
        %v2172 = vpop.xlane.xlu0 %2171
        %2173 = vmax.xlane.f32.xlu0 %v1295
        %v2174 = vpop.xlane.xlu0 %2173
        %2175 = vmax.xlane.f32.xlu0 %v1296
        %v2176 = vpop.xlane.xlu0 %2175
        %2177 = vmax.xlane.f32.xlu0 %v1297
        %v2178 = vpop.xlane.xlu0 %2177
        %2179 = vmax.xlane.f32.xlu0 %v1298
        %v2180 = vpop.xlane.xlu0 %2179
        %2181 = vmax.xlane.f32.xlu0 %v1299
        %v2182 = vpop.xlane.xlu0 %2181
        %2183 = vmax.xlane.f32.xlu0 %v1300
        %v2184 = vpop.xlane.xlu0 %2183
        %2185 = vmax.xlane.f32.xlu0 %v1301
        %v2186 = vpop.xlane.xlu0 %2185
        %2187 = vmax.xlane.f32.xlu0 %v1302
        %v2188 = vpop.xlane.xlu0 %2187
        %2189 = vmax.xlane.f32.xlu0 %v1303
        %v2190 = vpop.xlane.xlu0 %2189
        %2191 = vmax.xlane.f32.xlu0 %v1304
        %v2192 = vpop.xlane.xlu0 %2191
        %2193 = vmax.xlane.f32.xlu0 %v1305
        %v2194 = vpop.xlane.xlu0 %2193
        %2195 = vmax.xlane.f32.xlu0 %v1306
        %v2196 = vpop.xlane.xlu0 %2195
        %2197 = vmax.xlane.f32.xlu0 %v1307
        %v2198 = vpop.xlane.xlu0 %2197
        %2199 = vmax.xlane.f32.xlu0 %v1308
        %v2200 = vpop.xlane.xlu0 %2199
        %2201 = vmax.xlane.f32.xlu0 %v1309
        %v2202 = vpop.xlane.xlu0 %2201
        %2203 = vmax.xlane.f32.xlu0 %v1310
        %v2204 = vpop.xlane.xlu0 %2203
        %2205 = vmax.xlane.f32.xlu0 %v1311
        %v2206 = vpop.xlane.xlu0 %2205
        %2207 = vmax.xlane.f32.xlu0 %v1312
        %v2208 = vpop.xlane.xlu0 %2207
        %2209 = vmax.xlane.f32.xlu0 %v1313
        %v2210 = vpop.xlane.xlu0 %2209
        %2211 = vmax.xlane.f32.xlu0 %v1314
        %v2212 = vpop.xlane.xlu0 %2211
        %2213 = vmax.xlane.f32.xlu0 %v1315
        %v2214 = vpop.xlane.xlu0 %2213
        %2215 = vmax.xlane.f32.xlu0 %v1316
        %v2216 = vpop.xlane.xlu0 %2215
        %2217 = vmax.xlane.f32.xlu0 %v1317
        %v2218 = vpop.xlane.xlu0 %2217
        %2219 = vmax.xlane.f32.xlu0 %v1318
        %v2220 = vpop.xlane.xlu0 %2219
        %2221 = vmax.xlane.f32.xlu0 %v1319
        %v2222 = vpop.xlane.xlu0 %2221
        %2223 = vmax.xlane.f32.xlu0 %v1320
        %v2224 = vpop.xlane.xlu0 %2223
        %2225 = vmax.xlane.f32.xlu0 %v1321
        %v2226 = vpop.xlane.xlu0 %2225
        %2227 = vmax.xlane.f32.xlu0 %v1322
        %v2228 = vpop.xlane.xlu0 %2227
        %2229 = vmax.xlane.f32.xlu0 %v1323
        %v2230 = vpop.xlane.xlu0 %2229
        %2231 = vmax.xlane.f32.xlu0 %v1324
        %v2232 = vpop.xlane.xlu0 %2231
        %2233 = vmax.xlane.f32.xlu0 %v1325
        %v2234 = vpop.xlane.xlu0 %2233
        %2235 = vmax.xlane.f32.xlu0 %v1326
        %v2236 = vpop.xlane.xlu0 %2235
        %2237 = vmax.xlane.f32.xlu0 %v1327
        %v2238 = vpop.xlane.xlu0 %2237
        %2239 = vmax.xlane.f32.xlu0 %v1328
        %v2240 = vpop.xlane.xlu0 %2239
        %2241 = vmax.xlane.f32.xlu0 %v1329
        %v2242 = vpop.xlane.xlu0 %2241
        %2243 = vmax.xlane.f32.xlu0 %v1330
        %v2244 = vpop.xlane.xlu0 %2243
        %2245 = vmax.xlane.f32.xlu0 %v1331
        %v2246 = vpop.xlane.xlu0 %2245
        %2247 = vmax.xlane.f32.xlu0 %v1332
        %v2248 = vpop.xlane.xlu0 %2247
        %2249 = vmax.xlane.f32.xlu0 %v1333
        %v2250 = vpop.xlane.xlu0 %2249
        %2251 = vmax.xlane.f32.xlu0 %v1334
        %v2252 = vpop.xlane.xlu0 %2251
        %2253 = vmax.xlane.f32.xlu0 %v1335
        %v2254 = vpop.xlane.xlu0 %2253
        %2255 = vmax.xlane.f32.xlu0 %v1336
        %v2256 = vpop.xlane.xlu0 %2255
        %2257 = vmax.xlane.f32.xlu0 %v1337
        %v2258 = vpop.xlane.xlu0 %2257
        %2259 = vmax.xlane.f32.xlu0 %v1338
        %v2260 = vpop.xlane.xlu0 %2259
        %2261 = vmax.xlane.f32.xlu0 %v1339
        %v2262 = vpop.xlane.xlu0 %2261
        %2263 = vmax.xlane.f32.xlu0 %v1340
        %v2264 = vpop.xlane.xlu0 %2263
        %2265 = vmax.xlane.f32.xlu0 %v1341
        %v2266 = vpop.xlane.xlu0 %2265
        %2267 = vmax.xlane.f32.xlu0 %v1342
        %v2268 = vpop.xlane.xlu0 %2267
        %2269 = vmax.xlane.f32.xlu0 %v1343
        %v2270 = vpop.xlane.xlu0 %2269
        %2271 = vmax.xlane.f32.xlu0 %v1344
        %v2272 = vpop.xlane.xlu0 %2271
        %2273 = vmax.xlane.f32.xlu0 %v1345
        %v2274 = vpop.xlane.xlu0 %2273
        %2275 = vmax.xlane.f32.xlu0 %v1346
        %v2276 = vpop.xlane.xlu0 %2275
        %2277 = vmax.xlane.f32.xlu0 %v1347
        %v2278 = vpop.xlane.xlu0 %2277
        %2279 = vmax.xlane.f32.xlu0 %v1348
        %v2280 = vpop.xlane.xlu0 %2279
        %2281 = vmax.xlane.f32.xlu0 %v1349
        %v2282 = vpop.xlane.xlu0 %2281
        %2283 = vmax.xlane.f32.xlu0 %v1350
        %v2284 = vpop.xlane.xlu0 %2283
        %2285 = vmax.xlane.f32.xlu0 %v1351
        %v2286 = vpop.xlane.xlu0 %2285
        %2287 = vmax.xlane.f32.xlu0 %v1352
        %v2288 = vpop.xlane.xlu0 %2287
        %2289 = vmax.xlane.f32.xlu0 %v1353
        %v2290 = vpop.xlane.xlu0 %2289
        %2291 = vmax.xlane.f32.xlu0 %v1354
        %v2292 = vpop.xlane.xlu0 %2291
        %2293 = vmax.xlane.f32.xlu0 %v1355
        %v2294 = vpop.xlane.xlu0 %2293
        %2295 = vmax.xlane.f32.xlu0 %v1356
        %v2296 = vpop.xlane.xlu0 %2295
        %2297 = vmax.xlane.f32.xlu0 %v1357
        %v2298 = vpop.xlane.xlu0 %2297
        %2299 = vmax.xlane.f32.xlu0 %v1358
        %v2300 = vpop.xlane.xlu0 %2299
        %2301 = vmax.xlane.f32.xlu0 %v1359
        %v2302 = vpop.xlane.xlu0 %2301
        %2303 = vmax.xlane.f32.xlu0 %v1360
        %v2304 = vpop.xlane.xlu0 %2303
        %2305 = vmax.xlane.f32.xlu0 %v1361
        %v2306 = vpop.xlane.xlu0 %2305
        %2307 = vmax.xlane.f32.xlu0 %v1362
        %v2308 = vpop.xlane.xlu0 %2307
        %2309 = vmax.xlane.f32.xlu0 %v1363
        %v2310 = vpop.xlane.xlu0 %2309
        %2311 = vmax.xlane.f32.xlu0 %v1364
        %v2312 = vpop.xlane.xlu0 %2311
        %2313 = vmax.xlane.f32.xlu0 %v1365
        %v2314 = vpop.xlane.xlu0 %2313
        %2315 = vmax.xlane.f32.xlu0 %v1366
        %v2316 = vpop.xlane.xlu0 %2315
        %2317 = vmax.xlane.f32.xlu0 %v1367
        %v2318 = vpop.xlane.xlu0 %2317
        %2319 = vmax.xlane.f32.xlu0 %v1368
        %v2320 = vpop.xlane.xlu0 %2319
        %2321 = vmax.xlane.f32.xlu0 %v1369
        %v2322 = vpop.xlane.xlu0 %2321
        %2323 = vmax.xlane.f32.xlu0 %v1370
        %v2324 = vpop.xlane.xlu0 %2323
        %2325 = vmax.xlane.f32.xlu0 %v1371
        %v2326 = vpop.xlane.xlu0 %2325
        %2327 = vmax.xlane.f32.xlu0 %v1372
        %v2328 = vpop.xlane.xlu0 %2327
        %2329 = vmax.xlane.f32.xlu0 %v1373
        %v2330 = vpop.xlane.xlu0 %2329
        %2331 = vmax.xlane.f32.xlu0 %v1374
        %v2332 = vpop.xlane.xlu0 %2331
        %2333 = vmax.xlane.f32.xlu0 %v1375
        %v2334 = vpop.xlane.xlu0 %2333
        %2335 = vmax.xlane.f32.xlu0 %v1376
        %v2336 = vpop.xlane.xlu0 %2335
        %2337 = vmax.xlane.f32.xlu0 %v1377
        %v2338 = vpop.xlane.xlu0 %2337
        %2339 = vmax.xlane.f32.xlu0 %v1378
        %v2340 = vpop.xlane.xlu0 %2339
        %2341 = vmax.xlane.f32.xlu0 %v1379
        %v2342 = vpop.xlane.xlu0 %2341
        %2343 = vmax.xlane.f32.xlu0 %v1380
        %v2344 = vpop.xlane.xlu0 %2343
        %2345 = vmax.xlane.f32.xlu0 %v1381
        %v2346 = vpop.xlane.xlu0 %2345
        %2347 = vmax.xlane.f32.xlu0 %v1382
        %v2348 = vpop.xlane.xlu0 %2347
        %2349 = vmax.xlane.f32.xlu0 %v1383
        %v2350 = vpop.xlane.xlu0 %2349
        %2351 = vmax.xlane.f32.xlu0 %v1384
        %v2352 = vpop.xlane.xlu0 %2351
        %2353 = vmax.xlane.f32.xlu0 %v1385
        %v2354 = vpop.xlane.xlu0 %2353
        %2355 = vmax.xlane.f32.xlu0 %v1386
        %v2356 = vpop.xlane.xlu0 %2355
        %2357 = vmax.xlane.f32.xlu0 %v1387
        %v2358 = vpop.xlane.xlu0 %2357
        %2359 = vmax.xlane.f32.xlu0 %v1388
        %v2360 = vpop.xlane.xlu0 %2359
        %2361 = vmax.xlane.f32.xlu0 %v1389
        %v2362 = vpop.xlane.xlu0 %2361
        %2363 = vmax.xlane.f32.xlu0 %v1390
        %v2364 = vpop.xlane.xlu0 %2363
        %2365 = vmax.xlane.f32.xlu0 %v1391
        %v2366 = vpop.xlane.xlu0 %2365
        %2367 = vmax.xlane.f32.xlu0 %v1392
        %v2368 = vpop.xlane.xlu0 %2367
        %2369 = vmax.xlane.f32.xlu0 %v1393
        %v2370 = vpop.xlane.xlu0 %2369
        %2371 = vmax.xlane.f32.xlu0 %v1394
        %v2372 = vpop.xlane.xlu0 %2371
        %2373 = vmax.xlane.f32.xlu0 %v1395
        %v2374 = vpop.xlane.xlu0 %2373
        %2375 = vmax.xlane.f32.xlu0 %v1396
        %v2376 = vpop.xlane.xlu0 %2375
        %2377 = vmax.xlane.f32.xlu0 %v1397
        %v2378 = vpop.xlane.xlu0 %2377
        %2379 = vmax.xlane.f32.xlu0 %v1398
        %v2380 = vpop.xlane.xlu0 %2379
        %2381 = vmax.xlane.f32.xlu0 %v1399
        %v2382 = vpop.xlane.xlu0 %2381
        %2383 = vmax.xlane.f32.xlu0 %v1400
        %v2384 = vpop.xlane.xlu0 %2383
        %2385 = vmax.xlane.f32.xlu0 %v1401
        %v2386 = vpop.xlane.xlu0 %2385
        %2387 = vmax.xlane.f32.xlu0 %v1402
        %v2388 = vpop.xlane.xlu0 %2387
        %2389 = vmax.xlane.f32.xlu0 %v1403
        %v2390 = vpop.xlane.xlu0 %2389
        %2391 = vmax.xlane.f32.xlu0 %v1404
        %v2392 = vpop.xlane.xlu0 %2391
        %2393 = vmax.xlane.f32.xlu0 %v1405
        %v2394 = vpop.xlane.xlu0 %2393
        %2395 = vmax.xlane.f32.xlu0 %v1406
        %v2396 = vpop.xlane.xlu0 %2395
        %2397 = vmax.xlane.f32.xlu0 %v1407
        %v2398 = vpop.xlane.xlu0 %2397
        %2399 = vmax.xlane.f32.xlu0 %v1408
        %v2400 = vpop.xlane.xlu0 %2399
        %2401 = vmax.xlane.f32.xlu0 %v1409
        %v2402 = vpop.xlane.xlu0 %2401
        %2403 = vmax.xlane.f32.xlu0 %v1410
        %v2404 = vpop.xlane.xlu0 %2403
        %2405 = vmax.xlane.f32.xlu0 %v1411
        %v2406 = vpop.xlane.xlu0 %2405
        %2407 = vmax.xlane.f32.xlu0 %v1412
        %v2408 = vpop.xlane.xlu0 %2407
        %2409 = vmax.xlane.f32.xlu0 %v1413
        %v2410 = vpop.xlane.xlu0 %2409
        %2411 = vmax.xlane.f32.xlu0 %v1414
        %v2412 = vpop.xlane.xlu0 %2411
        %2413 = vmax.xlane.f32.xlu0 %v1415
        %v2414 = vpop.xlane.xlu0 %2413
        %2415 = vmax.xlane.f32.xlu0 %v1416
        %v2416 = vpop.xlane.xlu0 %2415
        %2417 = vmax.xlane.f32.xlu0 %v1417
        %v2418 = vpop.xlane.xlu0 %2417
        %2419 = vmax.xlane.f32.xlu0 %v1418
        %v2420 = vpop.xlane.xlu0 %2419
        %2421 = vmax.xlane.f32.xlu0 %v1419
        %v2422 = vpop.xlane.xlu0 %2421
        %2423 = vmax.xlane.f32.xlu0 %v1420
        %v2424 = vpop.xlane.xlu0 %2423
        %2425 = vmax.xlane.f32.xlu0 %v1421
        %v2426 = vpop.xlane.xlu0 %2425
        %2427 = vmax.xlane.f32.xlu0 %v1422
        %v2428 = vpop.xlane.xlu0 %2427
        %2429 = vmax.xlane.f32.xlu0 %v1423
        %v2430 = vpop.xlane.xlu0 %2429
        %2431 = vmax.xlane.f32.xlu0 %v1424
        %v2432 = vpop.xlane.xlu0 %2431
        %2433 = vmax.xlane.f32.xlu0 %v1425
        %v2434 = vpop.xlane.xlu0 %2433
        %2435 = vmax.xlane.f32.xlu0 %v1426
        %v2436 = vpop.xlane.xlu0 %2435
        %2437 = vmax.xlane.f32.xlu0 %v1427
        %v2438 = vpop.xlane.xlu0 %2437
        %2439 = vmax.xlane.f32.xlu0 %v1428
        %v2440 = vpop.xlane.xlu0 %2439
        %2441 = vmax.xlane.f32.xlu0 %v1429
        %v2442 = vpop.xlane.xlu0 %2441
        %2443 = vmax.xlane.f32.xlu0 %v1430
        %v2444 = vpop.xlane.xlu0 %2443
        %2445 = vmax.xlane.f32.xlu0 %v1431
        %v2446 = vpop.xlane.xlu0 %2445
        %2447 = vmax.xlane.f32.xlu0 %v1432
        %v2448 = vpop.xlane.xlu0 %2447
        %2449 = vmax.xlane.f32.xlu0 %v1433
        %v2450 = vpop.xlane.xlu0 %2449
        %2451 = vmax.xlane.f32.xlu0 %v1434
        %v2452 = vpop.xlane.xlu0 %2451
        %2453 = vmax.xlane.f32.xlu0 %v1435
        %v2454 = vpop.xlane.xlu0 %2453
        %2455 = vmax.xlane.f32.xlu0 %v1436
        %v2456 = vpop.xlane.xlu0 %2455
        %2457 = vmax.xlane.f32.xlu0 %v1437
        %v2458 = vpop.xlane.xlu0 %2457
        %2459 = vmax.xlane.f32.xlu0 %v1438
        %v2460 = vpop.xlane.xlu0 %2459
        %2461 = vmax.xlane.f32.xlu0 %v1439
        %v2462 = vpop.xlane.xlu0 %2461
        %2463 = vmax.xlane.f32.xlu0 %v1440
        %v2464 = vpop.xlane.xlu0 %2463
        // Predicated region
        $region45: #{tpu_custom_call.1} parent=39 // pred_check
          %p2465 = pneg %p495
        $region46: #{tpu_custom_call.1} parent=39 // pred_check_branch
          %2467 = sbr.rel (%p2465) target = $region48
        $region47: #{tpu_custom_call.1} parent=39 // pred_region
          %v2980 = vlaneseq
          %v2981 = vand.u32 %v2980, 127
          %v2982 = vperm.slane %v1442, %v2981
          %v2983 = vadd.s32 %v2981, 4294967288
          %v2984 = vperm.slane %v1444, %v2983
          %vm2985 = vcmask 130112
          %v2986 = vsel %vm2985, %v2984, %v2982
          %v2987 = vadd.s32 %v2981, 4294967280
          %v2988 = vperm.slane %v1446, %v2987
          %vm2989 = vcmask 195712
          %v2990 = vsel %vm2989, %v2988, %v2986
          %v2991 = vadd.s32 %v2981, 4294967272
          %v2992 = vperm.slane %v1448, %v2991
          %vm2993 = vcmask 261312
          %v2994 = vsel %vm2993, %v2992, %v2990
          %v2995 = vadd.s32 %v2981, 4294967264
          %v2996 = vperm.slane %v1450, %v2995
          %vm2997 = vcmask 326912
          %v2998 = vsel %vm2997, %v2996, %v2994
          %v2999 = vadd.s32 %v2981, 4294967256
          %v3000 = vperm.slane %v1452, %v2999
          %vm3001 = vcmask 392512
          %v3002 = vsel %vm3001, %v3000, %v2998
          %v3003 = vadd.s32 %v2981, 4294967248
          %v3004 = vperm.slane %v1454, %v3003
          %vm3005 = vcmask 458112
          %v3006 = vsel %vm3005, %v3004, %v3002
          %v3007 = vadd.s32 %v2981, 4294967240
          %v3008 = vperm.slane %v1456, %v3007
          %vm3009 = vcmask 523712
          %v3010 = vsel %vm3009, %v3008, %v3006
          %v3011 = vadd.s32 %v2981, 4294967232
          %v3012 = vperm.slane %v1458, %v3011
          %vm3013 = vcmask 589312
          %v3014 = vsel %vm3013, %v3012, %v3010
          %v3015 = vadd.s32 %v2981, 4294967224
          %v3016 = vperm.slane %v1460, %v3015
          %vm3017 = vcmask 654912
          %v3018 = vsel %vm3017, %v3016, %v3014
          %v3019 = vadd.s32 %v2981, 4294967216
          %v3020 = vperm.slane %v1462, %v3019
          %vm3021 = vcmask 720512
          %v3022 = vsel %vm3021, %v3020, %v3018
          %v3023 = vadd.s32 %v2981, 4294967208
          %v3024 = vperm.slane %v1464, %v3023
          %vm3025 = vcmask 786112
          %v3026 = vsel %vm3025, %v3024, %v3022
          %v3027 = vadd.s32 %v2981, 4294967200
          %v3028 = vperm.slane %v1466, %v3027
          %vm3029 = vcmask 851712
          %v3030 = vsel %vm3029, %v3028, %v3026
          %v3031 = vadd.s32 %v2981, 4294967192
          %v3032 = vperm.slane %v1468, %v3031
          %vm3033 = vcmask 917312
          %v3034 = vsel %vm3033, %v3032, %v3030
          %v3035 = vadd.s32 %v2981, 4294967184
          %v3036 = vperm.slane %v1470, %v3035
          %vm3037 = vcmask 982912
          %v3038 = vsel %vm3037, %v3036, %v3034
          %v3039 = vadd.s32 %v2981, 4294967176
          %v3040 = vperm.slane %v1472, %v3039
          %vm3041 = vcmask 1048512
          %v3042 = vsel %vm3041, %v3040, %v3038
          %v3043 = vperm.slane %v1474, %v2981
          %v3044 = vperm.slane %v1476, %v2983
          %v3045 = vsel %vm2985, %v3044, %v3043
          %v3046 = vperm.slane %v1478, %v2987
          %v3047 = vsel %vm2989, %v3046, %v3045
          %v3048 = vperm.slane %v1480, %v2991
          %v3049 = vsel %vm2993, %v3048, %v3047
          %v3050 = vperm.slane %v1482, %v2995
          %v3051 = vsel %vm2997, %v3050, %v3049
          %v3052 = vperm.slane %v1484, %v2999
          %v3053 = vsel %vm3001, %v3052, %v3051
          %v3054 = vperm.slane %v1486, %v3003
          %v3055 = vsel %vm3005, %v3054, %v3053
          %v3056 = vperm.slane %v1488, %v3007
          %v3057 = vsel %vm3009, %v3056, %v3055
          %v3058 = vperm.slane %v1490, %v3011
          %v3059 = vsel %vm3013, %v3058, %v3057
          %v3060 = vperm.slane %v1492, %v3015
          %v3061 = vsel %vm3017, %v3060, %v3059
          %v3062 = vperm.slane %v1494, %v3019
          %v3063 = vsel %vm3021, %v3062, %v3061
          %v3064 = vperm.slane %v1496, %v3023
          %v3065 = vsel %vm3025, %v3064, %v3063
          %v3066 = vperm.slane %v1498, %v3027
          %v3067 = vsel %vm3029, %v3066, %v3065
          %v3068 = vperm.slane %v1500, %v3031
          %v3069 = vsel %vm3033, %v3068, %v3067
          %v3070 = vperm.slane %v1502, %v3035
          %v3071 = vsel %vm3037, %v3070, %v3069
          %v3072 = vperm.slane %v1504, %v3039
          %v3073 = vsel %vm3041, %v3072, %v3071
          %v3074 = vperm.slane %v1506, %v2981
          %v3075 = vperm.slane %v1508, %v2983
          %v3076 = vsel %vm2985, %v3075, %v3074
          %v3077 = vperm.slane %v1510, %v2987
          %v3078 = vsel %vm2989, %v3077, %v3076
          %v3079 = vperm.slane %v1512, %v2991
          %v3080 = vsel %vm2993, %v3079, %v3078
          %v3081 = vperm.slane %v1514, %v2995
          %v3082 = vsel %vm2997, %v3081, %v3080
          %v3083 = vperm.slane %v1516, %v2999
          %v3084 = vsel %vm3001, %v3083, %v3082
          %v3085 = vperm.slane %v1518, %v3003
          %v3086 = vsel %vm3005, %v3085, %v3084
          %v3087 = vperm.slane %v1520, %v3007
          %v3088 = vsel %vm3009, %v3087, %v3086
          %v3089 = vperm.slane %v1522, %v3011
          %v3090 = vsel %vm3013, %v3089, %v3088
          %v3091 = vperm.slane %v1524, %v3015
          %v3092 = vsel %vm3017, %v3091, %v3090
          %v3093 = vperm.slane %v1526, %v3019
          %v3094 = vsel %vm3021, %v3093, %v3092
          %v3095 = vperm.slane %v1528, %v3023
          %v3096 = vsel %vm3025, %v3095, %v3094
          %v3097 = vperm.slane %v1530, %v3027
          %v3098 = vsel %vm3029, %v3097, %v3096
          %v3099 = vperm.slane %v1532, %v3031
          %v3100 = vsel %vm3033, %v3099, %v3098
          %v3101 = vperm.slane %v1534, %v3035
          %v3102 = vsel %vm3037, %v3101, %v3100
          %v3103 = vperm.slane %v1536, %v3039
          %v3104 = vsel %vm3041, %v3103, %v3102
          %v3105 = vperm.slane %v1538, %v2981
          %v3106 = vperm.slane %v1540, %v2983
          %v3107 = vsel %vm2985, %v3106, %v3105
          %v3108 = vperm.slane %v1542, %v2987
          %v3109 = vsel %vm2989, %v3108, %v3107
          %v3110 = vperm.slane %v1544, %v2991
          %v3111 = vsel %vm2993, %v3110, %v3109
          %v3112 = vperm.slane %v1546, %v2995
          %v3113 = vsel %vm2997, %v3112, %v3111
          %v3114 = vperm.slane %v1548, %v2999
          %v3115 = vsel %vm3001, %v3114, %v3113
          %v3116 = vperm.slane %v1550, %v3003
          %v3117 = vsel %vm3005, %v3116, %v3115
          %v3118 = vperm.slane %v1552, %v3007
          %v3119 = vsel %vm3009, %v3118, %v3117
          %v3120 = vperm.slane %v1554, %v3011
          %v3121 = vsel %vm3013, %v3120, %v3119
          %v3122 = vperm.slane %v1556, %v3015
          %v3123 = vsel %vm3017, %v3122, %v3121
          %v3124 = vperm.slane %v1558, %v3019
          %v3125 = vsel %vm3021, %v3124, %v3123
          %v3126 = vperm.slane %v1560, %v3023
          %v3127 = vsel %vm3025, %v3126, %v3125
          %v3128 = vperm.slane %v1562, %v3027
          %v3129 = vsel %vm3029, %v3128, %v3127
          %v3130 = vperm.slane %v1564, %v3031
          %v3131 = vsel %vm3033, %v3130, %v3129
          %v3132 = vperm.slane %v1566, %v3035
          %v3133 = vsel %vm3037, %v3132, %v3131
          %v3134 = vperm.slane %v1568, %v3039
          %v3135 = vsel %vm3041, %v3134, %v3133
          %v3136 = vperm.slane %v1570, %v2981
          %v3137 = vperm.slane %v1572, %v2983
          %v3138 = vsel %vm2985, %v3137, %v3136
          %v3139 = vperm.slane %v1574, %v2987
          %v3140 = vsel %vm2989, %v3139, %v3138
          %v3141 = vperm.slane %v1576, %v2991
          %v3142 = vsel %vm2993, %v3141, %v3140
          %v3143 = vperm.slane %v1578, %v2995
          %v3144 = vsel %vm2997, %v3143, %v3142
          %v3145 = vperm.slane %v1580, %v2999
          %v3146 = vsel %vm3001, %v3145, %v3144
          %v3147 = vperm.slane %v1582, %v3003
          %v3148 = vsel %vm3005, %v3147, %v3146
          %v3149 = vperm.slane %v1584, %v3007
          %v3150 = vsel %vm3009, %v3149, %v3148
          %v3151 = vperm.slane %v1586, %v3011
          %v3152 = vsel %vm3013, %v3151, %v3150
          %v3153 = vperm.slane %v1588, %v3015
          %v3154 = vsel %vm3017, %v3153, %v3152
          %v3155 = vperm.slane %v1590, %v3019
          %v3156 = vsel %vm3021, %v3155, %v3154
          %v3157 = vperm.slane %v1592, %v3023
          %v3158 = vsel %vm3025, %v3157, %v3156
          %v3159 = vperm.slane %v1594, %v3027
          %v3160 = vsel %vm3029, %v3159, %v3158
          %v3161 = vperm.slane %v1596, %v3031
          %v3162 = vsel %vm3033, %v3161, %v3160
          %v3163 = vperm.slane %v1598, %v3035
          %v3164 = vsel %vm3037, %v3163, %v3162
          %v3165 = vperm.slane %v1600, %v3039
          %v3166 = vsel %vm3041, %v3165, %v3164
          %v3167 = vperm.slane %v1602, %v2981
          %v3168 = vperm.slane %v1604, %v2983
          %v3169 = vsel %vm2985, %v3168, %v3167
          %v3170 = vperm.slane %v1606, %v2987
          %v3171 = vsel %vm2989, %v3170, %v3169
          %v3172 = vperm.slane %v1608, %v2991
          %v3173 = vsel %vm2993, %v3172, %v3171
          %v3174 = vperm.slane %v1610, %v2995
          %v3175 = vsel %vm2997, %v3174, %v3173
          %v3176 = vperm.slane %v1612, %v2999
          %v3177 = vsel %vm3001, %v3176, %v3175
          %v3178 = vperm.slane %v1614, %v3003
          %v3179 = vsel %vm3005, %v3178, %v3177
          %v3180 = vperm.slane %v1616, %v3007
          %v3181 = vsel %vm3009, %v3180, %v3179
          %v3182 = vperm.slane %v1618, %v3011
          %v3183 = vsel %vm3013, %v3182, %v3181
          %v3184 = vperm.slane %v1620, %v3015
          %v3185 = vsel %vm3017, %v3184, %v3183
          %v3186 = vperm.slane %v1622, %v3019
          %v3187 = vsel %vm3021, %v3186, %v3185
          %v3188 = vperm.slane %v1624, %v3023
          %v3189 = vsel %vm3025, %v3188, %v3187
          %v3190 = vperm.slane %v1626, %v3027
          %v3191 = vsel %vm3029, %v3190, %v3189
          %v3192 = vperm.slane %v1628, %v3031
          %v3193 = vsel %vm3033, %v3192, %v3191
          %v3194 = vperm.slane %v1630, %v3035
          %v3195 = vsel %vm3037, %v3194, %v3193
          %v3196 = vperm.slane %v1632, %v3039
          %v3197 = vsel %vm3041, %v3196, %v3195
          %v3198 = vperm.slane %v1634, %v2981
          %v3199 = vperm.slane %v1636, %v2983
          %v3200 = vsel %vm2985, %v3199, %v3198
          %v3201 = vperm.slane %v1638, %v2987
          %v3202 = vsel %vm2989, %v3201, %v3200
          %v3203 = vperm.slane %v1640, %v2991
          %v3204 = vsel %vm2993, %v3203, %v3202
          %v3205 = vperm.slane %v1642, %v2995
          %v3206 = vsel %vm2997, %v3205, %v3204
          %v3207 = vperm.slane %v1644, %v2999
          %v3208 = vsel %vm3001, %v3207, %v3206
          %v3209 = vperm.slane %v1646, %v3003
          %v3210 = vsel %vm3005, %v3209, %v3208
          %v3211 = vperm.slane %v1648, %v3007
          %v3212 = vsel %vm3009, %v3211, %v3210
          %v3213 = vperm.slane %v1650, %v3011
          %v3214 = vsel %vm3013, %v3213, %v3212
          %v3215 = vperm.slane %v1652, %v3015
          %v3216 = vsel %vm3017, %v3215, %v3214
          %v3217 = vperm.slane %v1654, %v3019
          %v3218 = vsel %vm3021, %v3217, %v3216
          %v3219 = vperm.slane %v1656, %v3023
          %v3220 = vsel %vm3025, %v3219, %v3218
          %v3221 = vperm.slane %v1658, %v3027
          %v3222 = vsel %vm3029, %v3221, %v3220
          %v3223 = vperm.slane %v1660, %v3031
          %v3224 = vsel %vm3033, %v3223, %v3222
          %v3225 = vperm.slane %v1662, %v3035
          %v3226 = vsel %vm3037, %v3225, %v3224
          %v3227 = vperm.slane %v1664, %v3039
          %v3228 = vsel %vm3041, %v3227, %v3226
          %v3229 = vperm.slane %v1666, %v2981
          %v3230 = vperm.slane %v1668, %v2983
          %v3231 = vsel %vm2985, %v3230, %v3229
          %v3232 = vperm.slane %v1670, %v2987
          %v3233 = vsel %vm2989, %v3232, %v3231
          %v3234 = vperm.slane %v1672, %v2991
          %v3235 = vsel %vm2993, %v3234, %v3233
          %v3236 = vperm.slane %v1674, %v2995
          %v3237 = vsel %vm2997, %v3236, %v3235
          %v3238 = vperm.slane %v1676, %v2999
          %v3239 = vsel %vm3001, %v3238, %v3237
          %v3240 = vperm.slane %v1678, %v3003
          %v3241 = vsel %vm3005, %v3240, %v3239
          %v3242 = vperm.slane %v1680, %v3007
          %v3243 = vsel %vm3009, %v3242, %v3241
          %v3244 = vperm.slane %v1682, %v3011
          %v3245 = vsel %vm3013, %v3244, %v3243
          %v3246 = vperm.slane %v1684, %v3015
          %v3247 = vsel %vm3017, %v3246, %v3245
          %v3248 = vperm.slane %v1686, %v3019
          %v3249 = vsel %vm3021, %v3248, %v3247
          %v3250 = vperm.slane %v1688, %v3023
          %v3251 = vsel %vm3025, %v3250, %v3249
          %v3252 = vperm.slane %v1690, %v3027
          %v3253 = vsel %vm3029, %v3252, %v3251
          %v3254 = vperm.slane %v1692, %v3031
          %v3255 = vsel %vm3033, %v3254, %v3253
          %v3256 = vperm.slane %v1694, %v3035
          %v3257 = vsel %vm3037, %v3256, %v3255
          %v3258 = vperm.slane %v1696, %v3039
          %v3259 = vsel %vm3041, %v3258, %v3257
          %v3260 = vperm.slane %v1698, %v2981
          %v3261 = vperm.slane %v1700, %v2983
          %v3262 = vsel %vm2985, %v3261, %v3260
          %v3263 = vperm.slane %v1702, %v2987
          %v3264 = vsel %vm2989, %v3263, %v3262
          %v3265 = vperm.slane %v1704, %v2991
          %v3266 = vsel %vm2993, %v3265, %v3264
          %v3267 = vperm.slane %v1706, %v2995
          %v3268 = vsel %vm2997, %v3267, %v3266
          %v3269 = vperm.slane %v1708, %v2999
          %v3270 = vsel %vm3001, %v3269, %v3268
          %v3271 = vperm.slane %v1710, %v3003
          %v3272 = vsel %vm3005, %v3271, %v3270
          %v3273 = vperm.slane %v1712, %v3007
          %v3274 = vsel %vm3009, %v3273, %v3272
          %v3275 = vperm.slane %v1714, %v3011
          %v3276 = vsel %vm3013, %v3275, %v3274
          %v3277 = vperm.slane %v1716, %v3015
          %v3278 = vsel %vm3017, %v3277, %v3276
          %v3279 = vperm.slane %v1718, %v3019
          %v3280 = vsel %vm3021, %v3279, %v3278
          %v3281 = vperm.slane %v1720, %v3023
          %v3282 = vsel %vm3025, %v3281, %v3280
          %v3283 = vperm.slane %v1722, %v3027
          %v3284 = vsel %vm3029, %v3283, %v3282
          %v3285 = vperm.slane %v1724, %v3031
          %v3286 = vsel %vm3033, %v3285, %v3284
          %v3287 = vperm.slane %v1726, %v3035
          %v3288 = vsel %vm3037, %v3287, %v3286
          %v3289 = vperm.slane %v1728, %v3039
          %v3290 = vsel %vm3041, %v3289, %v3288
          %v3291 = vperm.slane %v1730, %v2981
          %v3292 = vperm.slane %v1732, %v2983
          %v3293 = vsel %vm2985, %v3292, %v3291
          %v3294 = vperm.slane %v1734, %v2987
          %v3295 = vsel %vm2989, %v3294, %v3293
          %v3296 = vperm.slane %v1736, %v2991
          %v3297 = vsel %vm2993, %v3296, %v3295
          %v3298 = vperm.slane %v1738, %v2995
          %v3299 = vsel %vm2997, %v3298, %v3297
          %v3300 = vperm.slane %v1740, %v2999
          %v3301 = vsel %vm3001, %v3300, %v3299
          %v3302 = vperm.slane %v1742, %v3003
          %v3303 = vsel %vm3005, %v3302, %v3301
          %v3304 = vperm.slane %v1744, %v3007
          %v3305 = vsel %vm3009, %v3304, %v3303
          %v3306 = vperm.slane %v1746, %v3011
          %v3307 = vsel %vm3013, %v3306, %v3305
          %v3308 = vperm.slane %v1748, %v3015
          %v3309 = vsel %vm3017, %v3308, %v3307
          %v3310 = vperm.slane %v1750, %v3019
          %v3311 = vsel %vm3021, %v3310, %v3309
          %v3312 = vperm.slane %v1752, %v3023
          %v3313 = vsel %vm3025, %v3312, %v3311
          %v3314 = vperm.slane %v1754, %v3027
          %v3315 = vsel %vm3029, %v3314, %v3313
          %v3316 = vperm.slane %v1756, %v3031
          %v3317 = vsel %vm3033, %v3316, %v3315
          %v3318 = vperm.slane %v1758, %v3035
          %v3319 = vsel %vm3037, %v3318, %v3317
          %v3320 = vperm.slane %v1760, %v3039
          %v3321 = vsel %vm3041, %v3320, %v3319
          %v3322 = vperm.slane %v1762, %v2981
          %v3323 = vperm.slane %v1764, %v2983
          %v3324 = vsel %vm2985, %v3323, %v3322
          %v3325 = vperm.slane %v1766, %v2987
          %v3326 = vsel %vm2989, %v3325, %v3324
          %v3327 = vperm.slane %v1768, %v2991
          %v3328 = vsel %vm2993, %v3327, %v3326
          %v3329 = vperm.slane %v1770, %v2995
          %v3330 = vsel %vm2997, %v3329, %v3328
          %v3331 = vperm.slane %v1772, %v2999
          %v3332 = vsel %vm3001, %v3331, %v3330
          %v3333 = vperm.slane %v1774, %v3003
          %v3334 = vsel %vm3005, %v3333, %v3332
          %v3335 = vperm.slane %v1776, %v3007
          %v3336 = vsel %vm3009, %v3335, %v3334
          %v3337 = vperm.slane %v1778, %v3011
          %v3338 = vsel %vm3013, %v3337, %v3336
          %v3339 = vperm.slane %v1780, %v3015
          %v3340 = vsel %vm3017, %v3339, %v3338
          %v3341 = vperm.slane %v1782, %v3019
          %v3342 = vsel %vm3021, %v3341, %v3340
          %v3343 = vperm.slane %v1784, %v3023
          %v3344 = vsel %vm3025, %v3343, %v3342
          %v3345 = vperm.slane %v1786, %v3027
          %v3346 = vsel %vm3029, %v3345, %v3344
          %v3347 = vperm.slane %v1788, %v3031
          %v3348 = vsel %vm3033, %v3347, %v3346
          %v3349 = vperm.slane %v1790, %v3035
          %v3350 = vsel %vm3037, %v3349, %v3348
          %v3351 = vperm.slane %v1792, %v3039
          %v3352 = vsel %vm3041, %v3351, %v3350
          %v3353 = vperm.slane %v1794, %v2981
          %v3354 = vperm.slane %v1796, %v2983
          %v3355 = vsel %vm2985, %v3354, %v3353
          %v3356 = vperm.slane %v1798, %v2987
          %v3357 = vsel %vm2989, %v3356, %v3355
          %v3358 = vperm.slane %v1800, %v2991
          %v3359 = vsel %vm2993, %v3358, %v3357
          %v3360 = vperm.slane %v1802, %v2995
          %v3361 = vsel %vm2997, %v3360, %v3359
          %v3362 = vperm.slane %v1804, %v2999
          %v3363 = vsel %vm3001, %v3362, %v3361
          %v3364 = vperm.slane %v1806, %v3003
          %v3365 = vsel %vm3005, %v3364, %v3363
          %v3366 = vperm.slane %v1808, %v3007
          %v3367 = vsel %vm3009, %v3366, %v3365
          %v3368 = vperm.slane %v1810, %v3011
          %v3369 = vsel %vm3013, %v3368, %v3367
          %v3370 = vperm.slane %v1812, %v3015
          %v3371 = vsel %vm3017, %v3370, %v3369
          %v3372 = vperm.slane %v1814, %v3019
          %v3373 = vsel %vm3021, %v3372, %v3371
          %v3374 = vperm.slane %v1816, %v3023
          %v3375 = vsel %vm3025, %v3374, %v3373
          %v3376 = vperm.slane %v1818, %v3027
          %v3377 = vsel %vm3029, %v3376, %v3375
          %v3378 = vperm.slane %v1820, %v3031
          %v3379 = vsel %vm3033, %v3378, %v3377
          %v3380 = vperm.slane %v1822, %v3035
          %v3381 = vsel %vm3037, %v3380, %v3379
          %v3382 = vperm.slane %v1824, %v3039
          %v3383 = vsel %vm3041, %v3382, %v3381
          %v3384 = vperm.slane %v1826, %v2981
          %v3385 = vperm.slane %v1828, %v2983
          %v3386 = vsel %vm2985, %v3385, %v3384
          %v3387 = vperm.slane %v1830, %v2987
          %v3388 = vsel %vm2989, %v3387, %v3386
          %v3389 = vperm.slane %v1832, %v2991
          %v3390 = vsel %vm2993, %v3389, %v3388
          %v3391 = vperm.slane %v1834, %v2995
          %v3392 = vsel %vm2997, %v3391, %v3390
          %v3393 = vperm.slane %v1836, %v2999
          %v3394 = vsel %vm3001, %v3393, %v3392
          %v3395 = vperm.slane %v1838, %v3003
          %v3396 = vsel %vm3005, %v3395, %v3394
          %v3397 = vperm.slane %v1840, %v3007
          %v3398 = vsel %vm3009, %v3397, %v3396
          %v3399 = vperm.slane %v1842, %v3011
          %v3400 = vsel %vm3013, %v3399, %v3398
          %v3401 = vperm.slane %v1844, %v3015
          %v3402 = vsel %vm3017, %v3401, %v3400
          %v3403 = vperm.slane %v1846, %v3019
          %v3404 = vsel %vm3021, %v3403, %v3402
          %v3405 = vperm.slane %v1848, %v3023
          %v3406 = vsel %vm3025, %v3405, %v3404
          %v3407 = vperm.slane %v1850, %v3027
          %v3408 = vsel %vm3029, %v3407, %v3406
          %v3409 = vperm.slane %v1852, %v3031
          %v3410 = vsel %vm3033, %v3409, %v3408
          %v3411 = vperm.slane %v1854, %v3035
          %v3412 = vsel %vm3037, %v3411, %v3410
          %v3413 = vperm.slane %v1856, %v3039
          %v3414 = vsel %vm3041, %v3413, %v3412
          %v3415 = vperm.slane %v1858, %v2981
          %v3416 = vperm.slane %v1860, %v2983
          %v3417 = vsel %vm2985, %v3416, %v3415
          %v3418 = vperm.slane %v1862, %v2987
          %v3419 = vsel %vm2989, %v3418, %v3417
          %v3420 = vperm.slane %v1864, %v2991
          %v3421 = vsel %vm2993, %v3420, %v3419
          %v3422 = vperm.slane %v1866, %v2995
          %v3423 = vsel %vm2997, %v3422, %v3421
          %v3424 = vperm.slane %v1868, %v2999
          %v3425 = vsel %vm3001, %v3424, %v3423
          %v3426 = vperm.slane %v1870, %v3003
          %v3427 = vsel %vm3005, %v3426, %v3425
          %v3428 = vperm.slane %v1872, %v3007
          %v3429 = vsel %vm3009, %v3428, %v3427
          %v3430 = vperm.slane %v1874, %v3011
          %v3431 = vsel %vm3013, %v3430, %v3429
          %v3432 = vperm.slane %v1876, %v3015
          %v3433 = vsel %vm3017, %v3432, %v3431
          %v3434 = vperm.slane %v1878, %v3019
          %v3435 = vsel %vm3021, %v3434, %v3433
          %v3436 = vperm.slane %v1880, %v3023
          %v3437 = vsel %vm3025, %v3436, %v3435
          %v3438 = vperm.slane %v1882, %v3027
          %v3439 = vsel %vm3029, %v3438, %v3437
          %v3440 = vperm.slane %v1884, %v3031
          %v3441 = vsel %vm3033, %v3440, %v3439
          %v3442 = vperm.slane %v1886, %v3035
          %v3443 = vsel %vm3037, %v3442, %v3441
          %v3444 = vperm.slane %v1888, %v3039
          %v3445 = vsel %vm3041, %v3444, %v3443
          %v3446 = vperm.slane %v1890, %v2981
          %v3447 = vperm.slane %v1892, %v2983
          %v3448 = vsel %vm2985, %v3447, %v3446
          %v3449 = vperm.slane %v1894, %v2987
          %v3450 = vsel %vm2989, %v3449, %v3448
          %v3451 = vperm.slane %v1896, %v2991
          %v3452 = vsel %vm2993, %v3451, %v3450
          %v3453 = vperm.slane %v1898, %v2995
          %v3454 = vsel %vm2997, %v3453, %v3452
          %v3455 = vperm.slane %v1900, %v2999
          %v3456 = vsel %vm3001, %v3455, %v3454
          %v3457 = vperm.slane %v1902, %v3003
          %v3458 = vsel %vm3005, %v3457, %v3456
          %v3459 = vperm.slane %v1904, %v3007
          %v3460 = vsel %vm3009, %v3459, %v3458
          %v3461 = vperm.slane %v1906, %v3011
          %v3462 = vsel %vm3013, %v3461, %v3460
          %v3463 = vperm.slane %v1908, %v3015
          %v3464 = vsel %vm3017, %v3463, %v3462
          %v3465 = vperm.slane %v1910, %v3019
          %v3466 = vsel %vm3021, %v3465, %v3464
          %v3467 = vperm.slane %v1912, %v3023
          %v3468 = vsel %vm3025, %v3467, %v3466
          %v3469 = vperm.slane %v1914, %v3027
          %v3470 = vsel %vm3029, %v3469, %v3468
          %v3471 = vperm.slane %v1916, %v3031
          %v3472 = vsel %vm3033, %v3471, %v3470
          %v3473 = vperm.slane %v1918, %v3035
          %v3474 = vsel %vm3037, %v3473, %v3472
          %v3475 = vperm.slane %v1920, %v3039
          %v3476 = vsel %vm3041, %v3475, %v3474
          %v3477 = vperm.slane %v1922, %v2981
          %v3478 = vperm.slane %v1924, %v2983
          %v3479 = vsel %vm2985, %v3478, %v3477
          %v3480 = vperm.slane %v1926, %v2987
          %v3481 = vsel %vm2989, %v3480, %v3479
          %v3482 = vperm.slane %v1928, %v2991
          %v3483 = vsel %vm2993, %v3482, %v3481
          %v3484 = vperm.slane %v1930, %v2995
          %v3485 = vsel %vm2997, %v3484, %v3483
          %v3486 = vperm.slane %v1932, %v2999
          %v3487 = vsel %vm3001, %v3486, %v3485
          %v3488 = vperm.slane %v1934, %v3003
          %v3489 = vsel %vm3005, %v3488, %v3487
          %v3490 = vperm.slane %v1936, %v3007
          %v3491 = vsel %vm3009, %v3490, %v3489
          %v3492 = vperm.slane %v1938, %v3011
          %v3493 = vsel %vm3013, %v3492, %v3491
          %v3494 = vperm.slane %v1940, %v3015
          %v3495 = vsel %vm3017, %v3494, %v3493
          %v3496 = vperm.slane %v1942, %v3019
          %v3497 = vsel %vm3021, %v3496, %v3495
          %v3498 = vperm.slane %v1944, %v3023
          %v3499 = vsel %vm3025, %v3498, %v3497
          %v3500 = vperm.slane %v1946, %v3027
          %v3501 = vsel %vm3029, %v3500, %v3499
          %v3502 = vperm.slane %v1948, %v3031
          %v3503 = vsel %vm3033, %v3502, %v3501
          %v3504 = vperm.slane %v1950, %v3035
          %v3505 = vsel %vm3037, %v3504, %v3503
          %v3506 = vperm.slane %v1952, %v3039
          %v3507 = vsel %vm3041, %v3506, %v3505
          %v3508 = vperm.slane %v1954, %v2981
          %v3509 = vperm.slane %v1956, %v2983
          %v3510 = vsel %vm2985, %v3509, %v3508
          %v3511 = vperm.slane %v1958, %v2987
          %v3512 = vsel %vm2989, %v3511, %v3510
          %v3513 = vperm.slane %v1960, %v2991
          %v3514 = vsel %vm2993, %v3513, %v3512
          %v3515 = vperm.slane %v1962, %v2995
          %v3516 = vsel %vm2997, %v3515, %v3514
          %v3517 = vperm.slane %v1964, %v2999
          %v3518 = vsel %vm3001, %v3517, %v3516
          %v3519 = vperm.slane %v1966, %v3003
          %v3520 = vsel %vm3005, %v3519, %v3518
          %v3521 = vperm.slane %v1968, %v3007
          %v3522 = vsel %vm3009, %v3521, %v3520
          %v3523 = vperm.slane %v1970, %v3011
          %v3524 = vsel %vm3013, %v3523, %v3522
          %v3525 = vperm.slane %v1972, %v3015
          %v3526 = vsel %vm3017, %v3525, %v3524
          %v3527 = vperm.slane %v1974, %v3019
          %v3528 = vsel %vm3021, %v3527, %v3526
          %v3529 = vperm.slane %v1976, %v3023
          %v3530 = vsel %vm3025, %v3529, %v3528
          %v3531 = vperm.slane %v1978, %v3027
          %v3532 = vsel %vm3029, %v3531, %v3530
          %v3533 = vperm.slane %v1980, %v3031
          %v3534 = vsel %vm3033, %v3533, %v3532
          %v3535 = vperm.slane %v1982, %v3035
          %v3536 = vsel %vm3037, %v3535, %v3534
          %v3537 = vperm.slane %v1984, %v3039
          %v3538 = vsel %vm3041, %v3537, %v3536
          %v3539 = vperm.slane %v1986, %v2981
          %v3540 = vperm.slane %v1988, %v2983
          %v3541 = vsel %vm2985, %v3540, %v3539
          %v3542 = vperm.slane %v1990, %v2987
          %v3543 = vsel %vm2989, %v3542, %v3541
          %v3544 = vperm.slane %v1992, %v2991
          %v3545 = vsel %vm2993, %v3544, %v3543
          %v3546 = vperm.slane %v1994, %v2995
          %v3547 = vsel %vm2997, %v3546, %v3545
          %v3548 = vperm.slane %v1996, %v2999
          %v3549 = vsel %vm3001, %v3548, %v3547
          %v3550 = vperm.slane %v1998, %v3003
          %v3551 = vsel %vm3005, %v3550, %v3549
          %v3552 = vperm.slane %v2000, %v3007
          %v3553 = vsel %vm3009, %v3552, %v3551
          %v3554 = vperm.slane %v2002, %v3011
          %v3555 = vsel %vm3013, %v3554, %v3553
          %v3556 = vperm.slane %v2004, %v3015
          %v3557 = vsel %vm3017, %v3556, %v3555
          %v3558 = vperm.slane %v2006, %v3019
          %v3559 = vsel %vm3021, %v3558, %v3557
          %v3560 = vperm.slane %v2008, %v3023
          %v3561 = vsel %vm3025, %v3560, %v3559
          %v3562 = vperm.slane %v2010, %v3027
          %v3563 = vsel %vm3029, %v3562, %v3561
          %v3564 = vperm.slane %v2012, %v3031
          %v3565 = vsel %vm3033, %v3564, %v3563
          %v3566 = vperm.slane %v2014, %v3035
          %v3567 = vsel %vm3037, %v3566, %v3565
          %v3568 = vperm.slane %v2016, %v3039
          %v3569 = vsel %vm3041, %v3568, %v3567
          %v3570 = vperm.slane %v2018, %v2981
          %v3571 = vperm.slane %v2020, %v2983
          %v3572 = vsel %vm2985, %v3571, %v3570
          %v3573 = vperm.slane %v2022, %v2987
          %v3574 = vsel %vm2989, %v3573, %v3572
          %v3575 = vperm.slane %v2024, %v2991
          %v3576 = vsel %vm2993, %v3575, %v3574
          %v3577 = vperm.slane %v2026, %v2995
          %v3578 = vsel %vm2997, %v3577, %v3576
          %v3579 = vperm.slane %v2028, %v2999
          %v3580 = vsel %vm3001, %v3579, %v3578
          %v3581 = vperm.slane %v2030, %v3003
          %v3582 = vsel %vm3005, %v3581, %v3580
          %v3583 = vperm.slane %v2032, %v3007
          %v3584 = vsel %vm3009, %v3583, %v3582
          %v3585 = vperm.slane %v2034, %v3011
          %v3586 = vsel %vm3013, %v3585, %v3584
          %v3587 = vperm.slane %v2036, %v3015
          %v3588 = vsel %vm3017, %v3587, %v3586
          %v3589 = vperm.slane %v2038, %v3019
          %v3590 = vsel %vm3021, %v3589, %v3588
          %v3591 = vperm.slane %v2040, %v3023
          %v3592 = vsel %vm3025, %v3591, %v3590
          %v3593 = vperm.slane %v2042, %v3027
          %v3594 = vsel %vm3029, %v3593, %v3592
          %v3595 = vperm.slane %v2044, %v3031
          %v3596 = vsel %vm3033, %v3595, %v3594
          %v3597 = vperm.slane %v2046, %v3035
          %v3598 = vsel %vm3037, %v3597, %v3596
          %v3599 = vperm.slane %v2048, %v3039
          %v3600 = vsel %vm3041, %v3599, %v3598
          %v3601 = vperm.slane %v2050, %v2981
          %v3602 = vperm.slane %v2052, %v2983
          %v3603 = vsel %vm2985, %v3602, %v3601
          %v3604 = vperm.slane %v2054, %v2987
          %v3605 = vsel %vm2989, %v3604, %v3603
          %v3606 = vperm.slane %v2056, %v2991
          %v3607 = vsel %vm2993, %v3606, %v3605
          %v3608 = vperm.slane %v2058, %v2995
          %v3609 = vsel %vm2997, %v3608, %v3607
          %v3610 = vperm.slane %v2060, %v2999
          %v3611 = vsel %vm3001, %v3610, %v3609
          %v3612 = vperm.slane %v2062, %v3003
          %v3613 = vsel %vm3005, %v3612, %v3611
          %v3614 = vperm.slane %v2064, %v3007
          %v3615 = vsel %vm3009, %v3614, %v3613
          %v3616 = vperm.slane %v2066, %v3011
          %v3617 = vsel %vm3013, %v3616, %v3615
          %v3618 = vperm.slane %v2068, %v3015
          %v3619 = vsel %vm3017, %v3618, %v3617
          %v3620 = vperm.slane %v2070, %v3019
          %v3621 = vsel %vm3021, %v3620, %v3619
          %v3622 = vperm.slane %v2072, %v3023
          %v3623 = vsel %vm3025, %v3622, %v3621
          %v3624 = vperm.slane %v2074, %v3027
          %v3625 = vsel %vm3029, %v3624, %v3623
          %v3626 = vperm.slane %v2076, %v3031
          %v3627 = vsel %vm3033, %v3626, %v3625
          %v3628 = vperm.slane %v2078, %v3035
          %v3629 = vsel %vm3037, %v3628, %v3627
          %v3630 = vperm.slane %v2080, %v3039
          %v3631 = vsel %vm3041, %v3630, %v3629
          %v3632 = vperm.slane %v2082, %v2981
          %v3633 = vperm.slane %v2084, %v2983
          %v3634 = vsel %vm2985, %v3633, %v3632
          %v3635 = vperm.slane %v2086, %v2987
          %v3636 = vsel %vm2989, %v3635, %v3634
          %v3637 = vperm.slane %v2088, %v2991
          %v3638 = vsel %vm2993, %v3637, %v3636
          %v3639 = vperm.slane %v2090, %v2995
          %v3640 = vsel %vm2997, %v3639, %v3638
          %v3641 = vperm.slane %v2092, %v2999
          %v3642 = vsel %vm3001, %v3641, %v3640
          %v3643 = vperm.slane %v2094, %v3003
          %v3644 = vsel %vm3005, %v3643, %v3642
          %v3645 = vperm.slane %v2096, %v3007
          %v3646 = vsel %vm3009, %v3645, %v3644
          %v3647 = vperm.slane %v2098, %v3011
          %v3648 = vsel %vm3013, %v3647, %v3646
          %v3649 = vperm.slane %v2100, %v3015
          %v3650 = vsel %vm3017, %v3649, %v3648
          %v3651 = vperm.slane %v2102, %v3019
          %v3652 = vsel %vm3021, %v3651, %v3650
          %v3653 = vperm.slane %v2104, %v3023
          %v3654 = vsel %vm3025, %v3653, %v3652
          %v3655 = vperm.slane %v2106, %v3027
          %v3656 = vsel %vm3029, %v3655, %v3654
          %v3657 = vperm.slane %v2108, %v3031
          %v3658 = vsel %vm3033, %v3657, %v3656
          %v3659 = vperm.slane %v2110, %v3035
          %v3660 = vsel %vm3037, %v3659, %v3658
          %v3661 = vperm.slane %v2112, %v3039
          %v3662 = vsel %vm3041, %v3661, %v3660
          %v3663 = vperm.slane %v2114, %v2981
          %v3664 = vperm.slane %v2116, %v2983
          %v3665 = vsel %vm2985, %v3664, %v3663
          %v3666 = vperm.slane %v2118, %v2987
          %v3667 = vsel %vm2989, %v3666, %v3665
          %v3668 = vperm.slane %v2120, %v2991
          %v3669 = vsel %vm2993, %v3668, %v3667
          %v3670 = vperm.slane %v2122, %v2995
          %v3671 = vsel %vm2997, %v3670, %v3669
          %v3672 = vperm.slane %v2124, %v2999
          %v3673 = vsel %vm3001, %v3672, %v3671
          %v3674 = vperm.slane %v2126, %v3003
          %v3675 = vsel %vm3005, %v3674, %v3673
          %v3676 = vperm.slane %v2128, %v3007
          %v3677 = vsel %vm3009, %v3676, %v3675
          %v3678 = vperm.slane %v2130, %v3011
          %v3679 = vsel %vm3013, %v3678, %v3677
          %v3680 = vperm.slane %v2132, %v3015
          %v3681 = vsel %vm3017, %v3680, %v3679
          %v3682 = vperm.slane %v2134, %v3019
          %v3683 = vsel %vm3021, %v3682, %v3681
          %v3684 = vperm.slane %v2136, %v3023
          %v3685 = vsel %vm3025, %v3684, %v3683
          %v3686 = vperm.slane %v2138, %v3027
          %v3687 = vsel %vm3029, %v3686, %v3685
          %v3688 = vperm.slane %v2140, %v3031
          %v3689 = vsel %vm3033, %v3688, %v3687
          %v3690 = vperm.slane %v2142, %v3035
          %v3691 = vsel %vm3037, %v3690, %v3689
          %v3692 = vperm.slane %v2144, %v3039
          %v3693 = vsel %vm3041, %v3692, %v3691
          %v3694 = vperm.slane %v2146, %v2981
          %v3695 = vperm.slane %v2148, %v2983
          %v3696 = vsel %vm2985, %v3695, %v3694
          %v3697 = vperm.slane %v2150, %v2987
          %v3698 = vsel %vm2989, %v3697, %v3696
          %v3699 = vperm.slane %v2152, %v2991
          %v3700 = vsel %vm2993, %v3699, %v3698
          %v3701 = vperm.slane %v2154, %v2995
          %v3702 = vsel %vm2997, %v3701, %v3700
          %v3703 = vperm.slane %v2156, %v2999
          %v3704 = vsel %vm3001, %v3703, %v3702
          %v3705 = vperm.slane %v2158, %v3003
          %v3706 = vsel %vm3005, %v3705, %v3704
          %v3707 = vperm.slane %v2160, %v3007
          %v3708 = vsel %vm3009, %v3707, %v3706
          %v3709 = vperm.slane %v2162, %v3011
          %v3710 = vsel %vm3013, %v3709, %v3708
          %v3711 = vperm.slane %v2164, %v3015
          %v3712 = vsel %vm3017, %v3711, %v3710
          %v3713 = vperm.slane %v2166, %v3019
          %v3714 = vsel %vm3021, %v3713, %v3712
          %v3715 = vperm.slane %v2168, %v3023
          %v3716 = vsel %vm3025, %v3715, %v3714
          %v3717 = vperm.slane %v2170, %v3027
          %v3718 = vsel %vm3029, %v3717, %v3716
          %v3719 = vperm.slane %v2172, %v3031
          %v3720 = vsel %vm3033, %v3719, %v3718
          %v3721 = vperm.slane %v2174, %v3035
          %v3722 = vsel %vm3037, %v3721, %v3720
          %v3723 = vperm.slane %v2176, %v3039
          %v3724 = vsel %vm3041, %v3723, %v3722
          %v3725 = vperm.slane %v2178, %v2981
          %v3726 = vperm.slane %v2180, %v2983
          %v3727 = vsel %vm2985, %v3726, %v3725
          %v3728 = vperm.slane %v2182, %v2987
          %v3729 = vsel %vm2989, %v3728, %v3727
          %v3730 = vperm.slane %v2184, %v2991
          %v3731 = vsel %vm2993, %v3730, %v3729
          %v3732 = vperm.slane %v2186, %v2995
          %v3733 = vsel %vm2997, %v3732, %v3731
          %v3734 = vperm.slane %v2188, %v2999
          %v3735 = vsel %vm3001, %v3734, %v3733
          %v3736 = vperm.slane %v2190, %v3003
          %v3737 = vsel %vm3005, %v3736, %v3735
          %v3738 = vperm.slane %v2192, %v3007
          %v3739 = vsel %vm3009, %v3738, %v3737
          %v3740 = vperm.slane %v2194, %v3011
          %v3741 = vsel %vm3013, %v3740, %v3739
          %v3742 = vperm.slane %v2196, %v3015
          %v3743 = vsel %vm3017, %v3742, %v3741
          %v3744 = vperm.slane %v2198, %v3019
          %v3745 = vsel %vm3021, %v3744, %v3743
          %v3746 = vperm.slane %v2200, %v3023
          %v3747 = vsel %vm3025, %v3746, %v3745
          %v3748 = vperm.slane %v2202, %v3027
          %v3749 = vsel %vm3029, %v3748, %v3747
          %v3750 = vperm.slane %v2204, %v3031
          %v3751 = vsel %vm3033, %v3750, %v3749
          %v3752 = vperm.slane %v2206, %v3035
          %v3753 = vsel %vm3037, %v3752, %v3751
          %v3754 = vperm.slane %v2208, %v3039
          %v3755 = vsel %vm3041, %v3754, %v3753
          %v3756 = vperm.slane %v2210, %v2981
          %v3757 = vperm.slane %v2212, %v2983
          %v3758 = vsel %vm2985, %v3757, %v3756
          %v3759 = vperm.slane %v2214, %v2987
          %v3760 = vsel %vm2989, %v3759, %v3758
          %v3761 = vperm.slane %v2216, %v2991
          %v3762 = vsel %vm2993, %v3761, %v3760
          %v3763 = vperm.slane %v2218, %v2995
          %v3764 = vsel %vm2997, %v3763, %v3762
          %v3765 = vperm.slane %v2220, %v2999
          %v3766 = vsel %vm3001, %v3765, %v3764
          %v3767 = vperm.slane %v2222, %v3003
          %v3768 = vsel %vm3005, %v3767, %v3766
          %v3769 = vperm.slane %v2224, %v3007
          %v3770 = vsel %vm3009, %v3769, %v3768
          %v3771 = vperm.slane %v2226, %v3011
          %v3772 = vsel %vm3013, %v3771, %v3770
          %v3773 = vperm.slane %v2228, %v3015
          %v3774 = vsel %vm3017, %v3773, %v3772
          %v3775 = vperm.slane %v2230, %v3019
          %v3776 = vsel %vm3021, %v3775, %v3774
          %v3777 = vperm.slane %v2232, %v3023
          %v3778 = vsel %vm3025, %v3777, %v3776
          %v3779 = vperm.slane %v2234, %v3027
          %v3780 = vsel %vm3029, %v3779, %v3778
          %v3781 = vperm.slane %v2236, %v3031
          %v3782 = vsel %vm3033, %v3781, %v3780
          %v3783 = vperm.slane %v2238, %v3035
          %v3784 = vsel %vm3037, %v3783, %v3782
          %v3785 = vperm.slane %v2240, %v3039
          %v3786 = vsel %vm3041, %v3785, %v3784
          %v3787 = vperm.slane %v2242, %v2981
          %v3788 = vperm.slane %v2244, %v2983
          %v3789 = vsel %vm2985, %v3788, %v3787
          %v3790 = vperm.slane %v2246, %v2987
          %v3791 = vsel %vm2989, %v3790, %v3789
          %v3792 = vperm.slane %v2248, %v2991
          %v3793 = vsel %vm2993, %v3792, %v3791
          %v3794 = vperm.slane %v2250, %v2995
          %v3795 = vsel %vm2997, %v3794, %v3793
          %v3796 = vperm.slane %v2252, %v2999
          %v3797 = vsel %vm3001, %v3796, %v3795
          %v3798 = vperm.slane %v2254, %v3003
          %v3799 = vsel %vm3005, %v3798, %v3797
          %v3800 = vperm.slane %v2256, %v3007
          %v3801 = vsel %vm3009, %v3800, %v3799
          %v3802 = vperm.slane %v2258, %v3011
          %v3803 = vsel %vm3013, %v3802, %v3801
          %v3804 = vperm.slane %v2260, %v3015
          %v3805 = vsel %vm3017, %v3804, %v3803
          %v3806 = vperm.slane %v2262, %v3019
          %v3807 = vsel %vm3021, %v3806, %v3805
          %v3808 = vperm.slane %v2264, %v3023
          %v3809 = vsel %vm3025, %v3808, %v3807
          %v3810 = vperm.slane %v2266, %v3027
          %v3811 = vsel %vm3029, %v3810, %v3809
          %v3812 = vperm.slane %v2268, %v3031
          %v3813 = vsel %vm3033, %v3812, %v3811
          %v3814 = vperm.slane %v2270, %v3035
          %v3815 = vsel %vm3037, %v3814, %v3813
          %v3816 = vperm.slane %v2272, %v3039
          %v3817 = vsel %vm3041, %v3816, %v3815
          %v3818 = vperm.slane %v2274, %v2981
          %v3819 = vperm.slane %v2276, %v2983
          %v3820 = vsel %vm2985, %v3819, %v3818
          %v3821 = vperm.slane %v2278, %v2987
          %v3822 = vsel %vm2989, %v3821, %v3820
          %v3823 = vperm.slane %v2280, %v2991
          %v3824 = vsel %vm2993, %v3823, %v3822
          %v3825 = vperm.slane %v2282, %v2995
          %v3826 = vsel %vm2997, %v3825, %v3824
          %v3827 = vperm.slane %v2284, %v2999
          %v3828 = vsel %vm3001, %v3827, %v3826
          %v3829 = vperm.slane %v2286, %v3003
          %v3830 = vsel %vm3005, %v3829, %v3828
          %v3831 = vperm.slane %v2288, %v3007
          %v3832 = vsel %vm3009, %v3831, %v3830
          %v3833 = vperm.slane %v2290, %v3011
          %v3834 = vsel %vm3013, %v3833, %v3832
          %v3835 = vperm.slane %v2292, %v3015
          %v3836 = vsel %vm3017, %v3835, %v3834
          %v3837 = vperm.slane %v2294, %v3019
          %v3838 = vsel %vm3021, %v3837, %v3836
          %v3839 = vperm.slane %v2296, %v3023
          %v3840 = vsel %vm3025, %v3839, %v3838
          %v3841 = vperm.slane %v2298, %v3027
          %v3842 = vsel %vm3029, %v3841, %v3840
          %v3843 = vperm.slane %v2300, %v3031
          %v3844 = vsel %vm3033, %v3843, %v3842
          %v3845 = vperm.slane %v2302, %v3035
          %v3846 = vsel %vm3037, %v3845, %v3844
          %v3847 = vperm.slane %v2304, %v3039
          %v3848 = vsel %vm3041, %v3847, %v3846
          %v3849 = vperm.slane %v2306, %v2981
          %v3850 = vperm.slane %v2308, %v2983
          %v3851 = vsel %vm2985, %v3850, %v3849
          %v3852 = vperm.slane %v2310, %v2987
          %v3853 = vsel %vm2989, %v3852, %v3851
          %v3854 = vperm.slane %v2312, %v2991
          %v3855 = vsel %vm2993, %v3854, %v3853
          %v3856 = vperm.slane %v2314, %v2995
          %v3857 = vsel %vm2997, %v3856, %v3855
          %v3858 = vperm.slane %v2316, %v2999
          %v3859 = vsel %vm3001, %v3858, %v3857
          %v3860 = vperm.slane %v2318, %v3003
          %v3861 = vsel %vm3005, %v3860, %v3859
          %v3862 = vperm.slane %v2320, %v3007
          %v3863 = vsel %vm3009, %v3862, %v3861
          %v3864 = vperm.slane %v2322, %v3011
          %v3865 = vsel %vm3013, %v3864, %v3863
          %v3866 = vperm.slane %v2324, %v3015
          %v3867 = vsel %vm3017, %v3866, %v3865
          %v3868 = vperm.slane %v2326, %v3019
          %v3869 = vsel %vm3021, %v3868, %v3867
          %v3870 = vperm.slane %v2328, %v3023
          %v3871 = vsel %vm3025, %v3870, %v3869
          %v3872 = vperm.slane %v2330, %v3027
          %v3873 = vsel %vm3029, %v3872, %v3871
          %v3874 = vperm.slane %v2332, %v3031
          %v3875 = vsel %vm3033, %v3874, %v3873
          %v3876 = vperm.slane %v2334, %v3035
          %v3877 = vsel %vm3037, %v3876, %v3875
          %v3878 = vperm.slane %v2336, %v3039
          %v3879 = vsel %vm3041, %v3878, %v3877
          %v3880 = vperm.slane %v2338, %v2981
          %v3881 = vperm.slane %v2340, %v2983
          %v3882 = vsel %vm2985, %v3881, %v3880
          %v3883 = vperm.slane %v2342, %v2987
          %v3884 = vsel %vm2989, %v3883, %v3882
          %v3885 = vperm.slane %v2344, %v2991
          %v3886 = vsel %vm2993, %v3885, %v3884
          %v3887 = vperm.slane %v2346, %v2995
          %v3888 = vsel %vm2997, %v3887, %v3886
          %v3889 = vperm.slane %v2348, %v2999
          %v3890 = vsel %vm3001, %v3889, %v3888
          %v3891 = vperm.slane %v2350, %v3003
          %v3892 = vsel %vm3005, %v3891, %v3890
          %v3893 = vperm.slane %v2352, %v3007
          %v3894 = vsel %vm3009, %v3893, %v3892
          %v3895 = vperm.slane %v2354, %v3011
          %v3896 = vsel %vm3013, %v3895, %v3894
          %v3897 = vperm.slane %v2356, %v3015
          %v3898 = vsel %vm3017, %v3897, %v3896
          %v3899 = vperm.slane %v2358, %v3019
          %v3900 = vsel %vm3021, %v3899, %v3898
          %v3901 = vperm.slane %v2360, %v3023
          %v3902 = vsel %vm3025, %v3901, %v3900
          %v3903 = vperm.slane %v2362, %v3027
          %v3904 = vsel %vm3029, %v3903, %v3902
          %v3905 = vperm.slane %v2364, %v3031
          %v3906 = vsel %vm3033, %v3905, %v3904
          %v3907 = vperm.slane %v2366, %v3035
          %v3908 = vsel %vm3037, %v3907, %v3906
          %v3909 = vperm.slane %v2368, %v3039
          %v3910 = vsel %vm3041, %v3909, %v3908
          %v3911 = vperm.slane %v2370, %v2981
          %v3912 = vperm.slane %v2372, %v2983
          %v3913 = vsel %vm2985, %v3912, %v3911
          %v3914 = vperm.slane %v2374, %v2987
          %v3915 = vsel %vm2989, %v3914, %v3913
          %v3916 = vperm.slane %v2376, %v2991
          %v3917 = vsel %vm2993, %v3916, %v3915
          %v3918 = vperm.slane %v2378, %v2995
          %v3919 = vsel %vm2997, %v3918, %v3917
          %v3920 = vperm.slane %v2380, %v2999
          %v3921 = vsel %vm3001, %v3920, %v3919
          %v3922 = vperm.slane %v2382, %v3003
          %v3923 = vsel %vm3005, %v3922, %v3921
          %v3924 = vperm.slane %v2384, %v3007
          %v3925 = vsel %vm3009, %v3924, %v3923
          %v3926 = vperm.slane %v2386, %v3011
          %v3927 = vsel %vm3013, %v3926, %v3925
          %v3928 = vperm.slane %v2388, %v3015
          %v3929 = vsel %vm3017, %v3928, %v3927
          %v3930 = vperm.slane %v2390, %v3019
          %v3931 = vsel %vm3021, %v3930, %v3929
          %v3932 = vperm.slane %v2392, %v3023
          %v3933 = vsel %vm3025, %v3932, %v3931
          %v3934 = vperm.slane %v2394, %v3027
          %v3935 = vsel %vm3029, %v3934, %v3933
          %v3936 = vperm.slane %v2396, %v3031
          %v3937 = vsel %vm3033, %v3936, %v3935
          %v3938 = vperm.slane %v2398, %v3035
          %v3939 = vsel %vm3037, %v3938, %v3937
          %v3940 = vperm.slane %v2400, %v3039
          %v3941 = vsel %vm3041, %v3940, %v3939
          %v3942 = vperm.slane %v2402, %v2981
          %v3943 = vperm.slane %v2404, %v2983
          %v3944 = vsel %vm2985, %v3943, %v3942
          %v3945 = vperm.slane %v2406, %v2987
          %v3946 = vsel %vm2989, %v3945, %v3944
          %v3947 = vperm.slane %v2408, %v2991
          %v3948 = vsel %vm2993, %v3947, %v3946
          %v3949 = vperm.slane %v2410, %v2995
          %v3950 = vsel %vm2997, %v3949, %v3948
          %v3951 = vperm.slane %v2412, %v2999
          %v3952 = vsel %vm3001, %v3951, %v3950
          %v3953 = vperm.slane %v2414, %v3003
          %v3954 = vsel %vm3005, %v3953, %v3952
          %v3955 = vperm.slane %v2416, %v3007
          %v3956 = vsel %vm3009, %v3955, %v3954
          %v3957 = vperm.slane %v2418, %v3011
          %v3958 = vsel %vm3013, %v3957, %v3956
          %v3959 = vperm.slane %v2420, %v3015
          %v3960 = vsel %vm3017, %v3959, %v3958
          %v3961 = vperm.slane %v2422, %v3019
          %v3962 = vsel %vm3021, %v3961, %v3960
          %v3963 = vperm.slane %v2424, %v3023
          %v3964 = vsel %vm3025, %v3963, %v3962
          %v3965 = vperm.slane %v2426, %v3027
          %v3966 = vsel %vm3029, %v3965, %v3964
          %v3967 = vperm.slane %v2428, %v3031
          %v3968 = vsel %vm3033, %v3967, %v3966
          %v3969 = vperm.slane %v2430, %v3035
          %v3970 = vsel %vm3037, %v3969, %v3968
          %v3971 = vperm.slane %v2432, %v3039
          %v3972 = vsel %vm3041, %v3971, %v3970
          %v3973 = vperm.slane %v2434, %v2981
          %v3974 = vperm.slane %v2436, %v2983
          %v3975 = vsel %vm2985, %v3974, %v3973
          %v3976 = vperm.slane %v2438, %v2987
          %v3977 = vsel %vm2989, %v3976, %v3975
          %v3978 = vperm.slane %v2440, %v2991
          %v3979 = vsel %vm2993, %v3978, %v3977
          %v3980 = vperm.slane %v2442, %v2995
          %v3981 = vsel %vm2997, %v3980, %v3979
          %v3982 = vperm.slane %v2444, %v2999
          %v3983 = vsel %vm3001, %v3982, %v3981
          %v3984 = vperm.slane %v2446, %v3003
          %v3985 = vsel %vm3005, %v3984, %v3983
          %v3986 = vperm.slane %v2448, %v3007
          %v3987 = vsel %vm3009, %v3986, %v3985
          %v3988 = vperm.slane %v2450, %v3011
          %v3989 = vsel %vm3013, %v3988, %v3987
          %v3990 = vperm.slane %v2452, %v3015
          %v3991 = vsel %vm3017, %v3990, %v3989
          %v3992 = vperm.slane %v2454, %v3019
          %v3993 = vsel %vm3021, %v3992, %v3991
          %v3994 = vperm.slane %v2456, %v3023
          %v3995 = vsel %vm3025, %v3994, %v3993
          %v3996 = vperm.slane %v2458, %v3027
          %v3997 = vsel %vm3029, %v3996, %v3995
          %v3998 = vperm.slane %v2460, %v3031
          %v3999 = vsel %vm3033, %v3998, %v3997
          %v4000 = vperm.slane %v2462, %v3035
          %v4001 = vsel %vm3037, %v4000, %v3999
          %v4002 = vperm.slane %v2464, %v3039
          %v4003 = vsel %vm3041, %v4002, %v4001
          %vm4004 = vcmask 1041409
          %v4005 = vsel %vm4004, %v3073, %v3042
          %vm4006 = vcmask 1042434
          %v4007 = vsel %vm4006, %v3104, %v4005
          %vm4008 = vcmask 1043459
          %v4009 = vsel %vm4008, %v3135, %v4007
          %vm4010 = vcmask 1044484
          %v4011 = vsel %vm4010, %v3166, %v4009
          %vm4012 = vcmask 1045509
          %v4013 = vsel %vm4012, %v3197, %v4011
          %vm4014 = vcmask 1046534
          %v4015 = vsel %vm4014, %v3228, %v4013
          %vm4016 = vcmask 1047559
          %v4017 = vsel %vm4016, %v3259, %v4015
          %v4018 = vsel %vm4004, %v3321, %v3290
          %v4019 = vsel %vm4006, %v3352, %v4018
          %v4020 = vsel %vm4008, %v3383, %v4019
          %v4021 = vsel %vm4010, %v3414, %v4020
          %v4022 = vsel %vm4012, %v3445, %v4021
          %v4023 = vsel %vm4014, %v3476, %v4022
          %v4024 = vsel %vm4016, %v3507, %v4023
          %v4025 = vsel %vm4004, %v3569, %v3538
          %v4026 = vsel %vm4006, %v3600, %v4025
          %v4027 = vsel %vm4008, %v3631, %v4026
          %v4028 = vsel %vm4010, %v3662, %v4027
          %v4029 = vsel %vm4012, %v3693, %v4028
          %v4030 = vsel %vm4014, %v3724, %v4029
          %v4031 = vsel %vm4016, %v3755, %v4030
          %v4032 = vsel %vm4004, %v3817, %v3786
          %v4033 = vsel %vm4006, %v3848, %v4032
          %v4034 = vsel %vm4008, %v3879, %v4033
          %v4035 = vsel %vm4010, %v3910, %v4034
          %v4036 = vsel %vm4012, %v3941, %v4035
          %v4037 = vsel %vm4014, %v3972, %v4036
          %v4038 = vsel %vm4016, %v4003, %v4037
          %4043 = vst [vmem:[#allocation2] sm:$0xff] %v4017
          %4044 = vst [vmem:[#allocation2 + $0x8] sm:$0xff] %v4024
          %4045 = vst [vmem:[#allocation2 + $0x10] sm:$0xff] %v4031
          %4046 = vst [vmem:[#allocation2 + $0x18] sm:$0xff] %v4038
        $region48: #{tpu_custom_call.1} parent=39 // pred_fallthru
          _
        %p4047 = scmp.gt.s32.totalorder %s26, 0
        // Predicated region
        $region49: #{tpu_custom_call.1} parent=39 // pred_check
          %p4048 = pneg %p4047
        $region50: #{tpu_custom_call.1} parent=39 // pred_check_branch
          %4050 = sbr.rel (%p4048) target = $region52
        $region51: #{tpu_custom_call.1} parent=39 // pred_region
          %v4051 = vld [vmem:[#allocation2] sm:$0xff]
          %v4052 = vld [vmem:[#allocation2 + $0x8] sm:$0xff]
          %v4053 = vld [vmem:[#allocation2 + $0x10] sm:$0xff]
          %v4054 = vld [vmem:[#allocation2 + $0x18] sm:$0xff]
          %v4567 = vlaneseq
          %v4568 = vand.u32 %v4567, 127
          %v4569 = vperm.slane %v1442, %v4568
          %v4570 = vadd.s32 %v4568, 4294967288
          %v4571 = vperm.slane %v1444, %v4570
          %vm4572 = vcmask 130112
          %v4573 = vsel %vm4572, %v4571, %v4569
          %v4574 = vadd.s32 %v4568, 4294967280
          %v4575 = vperm.slane %v1446, %v4574
          %vm4576 = vcmask 195712
          %v4577 = vsel %vm4576, %v4575, %v4573
          %v4578 = vadd.s32 %v4568, 4294967272
          %v4579 = vperm.slane %v1448, %v4578
          %vm4580 = vcmask 261312
          %v4581 = vsel %vm4580, %v4579, %v4577
          %v4582 = vadd.s32 %v4568, 4294967264
          %v4583 = vperm.slane %v1450, %v4582
          %vm4584 = vcmask 326912
          %v4585 = vsel %vm4584, %v4583, %v4581
          %v4586 = vadd.s32 %v4568, 4294967256
          %v4587 = vperm.slane %v1452, %v4586
          %vm4588 = vcmask 392512
          %v4589 = vsel %vm4588, %v4587, %v4585
          %v4590 = vadd.s32 %v4568, 4294967248
          %v4591 = vperm.slane %v1454, %v4590
          %vm4592 = vcmask 458112
          %v4593 = vsel %vm4592, %v4591, %v4589
          %v4594 = vadd.s32 %v4568, 4294967240
          %v4595 = vperm.slane %v1456, %v4594
          %vm4596 = vcmask 523712
          %v4597 = vsel %vm4596, %v4595, %v4593
          %v4598 = vadd.s32 %v4568, 4294967232
          %v4599 = vperm.slane %v1458, %v4598
          %vm4600 = vcmask 589312
          %v4601 = vsel %vm4600, %v4599, %v4597
          %v4602 = vadd.s32 %v4568, 4294967224
          %v4603 = vperm.slane %v1460, %v4602
          %vm4604 = vcmask 654912
          %v4605 = vsel %vm4604, %v4603, %v4601
          %v4606 = vadd.s32 %v4568, 4294967216
          %v4607 = vperm.slane %v1462, %v4606
          %vm4608 = vcmask 720512
          %v4609 = vsel %vm4608, %v4607, %v4605
          %v4610 = vadd.s32 %v4568, 4294967208
          %v4611 = vperm.slane %v1464, %v4610
          %vm4612 = vcmask 786112
          %v4613 = vsel %vm4612, %v4611, %v4609
          %v4614 = vadd.s32 %v4568, 4294967200
          %v4615 = vperm.slane %v1466, %v4614
          %vm4616 = vcmask 851712
          %v4617 = vsel %vm4616, %v4615, %v4613
          %v4618 = vadd.s32 %v4568, 4294967192
          %v4619 = vperm.slane %v1468, %v4618
          %vm4620 = vcmask 917312
          %v4621 = vsel %vm4620, %v4619, %v4617
          %v4622 = vadd.s32 %v4568, 4294967184
          %v4623 = vperm.slane %v1470, %v4622
          %vm4624 = vcmask 982912
          %v4625 = vsel %vm4624, %v4623, %v4621
          %v4626 = vadd.s32 %v4568, 4294967176
          %v4627 = vperm.slane %v1472, %v4626
          %vm4628 = vcmask 1048512
          %v4629 = vsel %vm4628, %v4627, %v4625
          %v4630 = vperm.slane %v1474, %v4568
          %v4631 = vperm.slane %v1476, %v4570
          %v4632 = vsel %vm4572, %v4631, %v4630
          %v4633 = vperm.slane %v1478, %v4574
          %v4634 = vsel %vm4576, %v4633, %v4632
          %v4635 = vperm.slane %v1480, %v4578
          %v4636 = vsel %vm4580, %v4635, %v4634
          %v4637 = vperm.slane %v1482, %v4582
          %v4638 = vsel %vm4584, %v4637, %v4636
          %v4639 = vperm.slane %v1484, %v4586
          %v4640 = vsel %vm4588, %v4639, %v4638
          %v4641 = vperm.slane %v1486, %v4590
          %v4642 = vsel %vm4592, %v4641, %v4640
          %v4643 = vperm.slane %v1488, %v4594
          %v4644 = vsel %vm4596, %v4643, %v4642
          %v4645 = vperm.slane %v1490, %v4598
          %v4646 = vsel %vm4600, %v4645, %v4644
          %v4647 = vperm.slane %v1492, %v4602
          %v4648 = vsel %vm4604, %v4647, %v4646
          %v4649 = vperm.slane %v1494, %v4606
          %v4650 = vsel %vm4608, %v4649, %v4648
          %v4651 = vperm.slane %v1496, %v4610
          %v4652 = vsel %vm4612, %v4651, %v4650
          %v4653 = vperm.slane %v1498, %v4614
          %v4654 = vsel %vm4616, %v4653, %v4652
          %v4655 = vperm.slane %v1500, %v4618
          %v4656 = vsel %vm4620, %v4655, %v4654
          %v4657 = vperm.slane %v1502, %v4622
          %v4658 = vsel %vm4624, %v4657, %v4656
          %v4659 = vperm.slane %v1504, %v4626
          %v4660 = vsel %vm4628, %v4659, %v4658
          %v4661 = vperm.slane %v1506, %v4568
          %v4662 = vperm.slane %v1508, %v4570
          %v4663 = vsel %vm4572, %v4662, %v4661
          %v4664 = vperm.slane %v1510, %v4574
          %v4665 = vsel %vm4576, %v4664, %v4663
          %v4666 = vperm.slane %v1512, %v4578
          %v4667 = vsel %vm4580, %v4666, %v4665
          %v4668 = vperm.slane %v1514, %v4582
          %v4669 = vsel %vm4584, %v4668, %v4667
          %v4670 = vperm.slane %v1516, %v4586
          %v4671 = vsel %vm4588, %v4670, %v4669
          %v4672 = vperm.slane %v1518, %v4590
          %v4673 = vsel %vm4592, %v4672, %v4671
          %v4674 = vperm.slane %v1520, %v4594
          %v4675 = vsel %vm4596, %v4674, %v4673
          %v4676 = vperm.slane %v1522, %v4598
          %v4677 = vsel %vm4600, %v4676, %v4675
          %v4678 = vperm.slane %v1524, %v4602
          %v4679 = vsel %vm4604, %v4678, %v4677
          %v4680 = vperm.slane %v1526, %v4606
          %v4681 = vsel %vm4608, %v4680, %v4679
          %v4682 = vperm.slane %v1528, %v4610
          %v4683 = vsel %vm4612, %v4682, %v4681
          %v4684 = vperm.slane %v1530, %v4614
          %v4685 = vsel %vm4616, %v4684, %v4683
          %v4686 = vperm.slane %v1532, %v4618
          %v4687 = vsel %vm4620, %v4686, %v4685
          %v4688 = vperm.slane %v1534, %v4622
          %v4689 = vsel %vm4624, %v4688, %v4687
          %v4690 = vperm.slane %v1536, %v4626
          %v4691 = vsel %vm4628, %v4690, %v4689
          %v4692 = vperm.slane %v1538, %v4568
          %v4693 = vperm.slane %v1540, %v4570
          %v4694 = vsel %vm4572, %v4693, %v4692
          %v4695 = vperm.slane %v1542, %v4574
          %v4696 = vsel %vm4576, %v4695, %v4694
          %v4697 = vperm.slane %v1544, %v4578
          %v4698 = vsel %vm4580, %v4697, %v4696
          %v4699 = vperm.slane %v1546, %v4582
          %v4700 = vsel %vm4584, %v4699, %v4698
          %v4701 = vperm.slane %v1548, %v4586
          %v4702 = vsel %vm4588, %v4701, %v4700
          %v4703 = vperm.slane %v1550, %v4590
          %v4704 = vsel %vm4592, %v4703, %v4702
          %v4705 = vperm.slane %v1552, %v4594
          %v4706 = vsel %vm4596, %v4705, %v4704
          %v4707 = vperm.slane %v1554, %v4598
          %v4708 = vsel %vm4600, %v4707, %v4706
          %v4709 = vperm.slane %v1556, %v4602
          %v4710 = vsel %vm4604, %v4709, %v4708
          %v4711 = vperm.slane %v1558, %v4606
          %v4712 = vsel %vm4608, %v4711, %v4710
          %v4713 = vperm.slane %v1560, %v4610
          %v4714 = vsel %vm4612, %v4713, %v4712
          %v4715 = vperm.slane %v1562, %v4614
          %v4716 = vsel %vm4616, %v4715, %v4714
          %v4717 = vperm.slane %v1564, %v4618
          %v4718 = vsel %vm4620, %v4717, %v4716
          %v4719 = vperm.slane %v1566, %v4622
          %v4720 = vsel %vm4624, %v4719, %v4718
          %v4721 = vperm.slane %v1568, %v4626
          %v4722 = vsel %vm4628, %v4721, %v4720
          %v4723 = vperm.slane %v1570, %v4568
          %v4724 = vperm.slane %v1572, %v4570
          %v4725 = vsel %vm4572, %v4724, %v4723
          %v4726 = vperm.slane %v1574, %v4574
          %v4727 = vsel %vm4576, %v4726, %v4725
          %v4728 = vperm.slane %v1576, %v4578
          %v4729 = vsel %vm4580, %v4728, %v4727
          %v4730 = vperm.slane %v1578, %v4582
          %v4731 = vsel %vm4584, %v4730, %v4729
          %v4732 = vperm.slane %v1580, %v4586
          %v4733 = vsel %vm4588, %v4732, %v4731
          %v4734 = vperm.slane %v1582, %v4590
          %v4735 = vsel %vm4592, %v4734, %v4733
          %v4736 = vperm.slane %v1584, %v4594
          %v4737 = vsel %vm4596, %v4736, %v4735
          %v4738 = vperm.slane %v1586, %v4598
          %v4739 = vsel %vm4600, %v4738, %v4737
          %v4740 = vperm.slane %v1588, %v4602
          %v4741 = vsel %vm4604, %v4740, %v4739
          %v4742 = vperm.slane %v1590, %v4606
          %v4743 = vsel %vm4608, %v4742, %v4741
          %v4744 = vperm.slane %v1592, %v4610
          %v4745 = vsel %vm4612, %v4744, %v4743
          %v4746 = vperm.slane %v1594, %v4614
          %v4747 = vsel %vm4616, %v4746, %v4745
          %v4748 = vperm.slane %v1596, %v4618
          %v4749 = vsel %vm4620, %v4748, %v4747
          %v4750 = vperm.slane %v1598, %v4622
          %v4751 = vsel %vm4624, %v4750, %v4749
          %v4752 = vperm.slane %v1600, %v4626
          %v4753 = vsel %vm4628, %v4752, %v4751
          %v4754 = vperm.slane %v1602, %v4568
          %v4755 = vperm.slane %v1604, %v4570
          %v4756 = vsel %vm4572, %v4755, %v4754
          %v4757 = vperm.slane %v1606, %v4574
          %v4758 = vsel %vm4576, %v4757, %v4756
          %v4759 = vperm.slane %v1608, %v4578
          %v4760 = vsel %vm4580, %v4759, %v4758
          %v4761 = vperm.slane %v1610, %v4582
          %v4762 = vsel %vm4584, %v4761, %v4760
          %v4763 = vperm.slane %v1612, %v4586
          %v4764 = vsel %vm4588, %v4763, %v4762
          %v4765 = vperm.slane %v1614, %v4590
          %v4766 = vsel %vm4592, %v4765, %v4764
          %v4767 = vperm.slane %v1616, %v4594
          %v4768 = vsel %vm4596, %v4767, %v4766
          %v4769 = vperm.slane %v1618, %v4598
          %v4770 = vsel %vm4600, %v4769, %v4768
          %v4771 = vperm.slane %v1620, %v4602
          %v4772 = vsel %vm4604, %v4771, %v4770
          %v4773 = vperm.slane %v1622, %v4606
          %v4774 = vsel %vm4608, %v4773, %v4772
          %v4775 = vperm.slane %v1624, %v4610
          %v4776 = vsel %vm4612, %v4775, %v4774
          %v4777 = vperm.slane %v1626, %v4614
          %v4778 = vsel %vm4616, %v4777, %v4776
          %v4779 = vperm.slane %v1628, %v4618
          %v4780 = vsel %vm4620, %v4779, %v4778
          %v4781 = vperm.slane %v1630, %v4622
          %v4782 = vsel %vm4624, %v4781, %v4780
          %v4783 = vperm.slane %v1632, %v4626
          %v4784 = vsel %vm4628, %v4783, %v4782
          %v4785 = vperm.slane %v1634, %v4568
          %v4786 = vperm.slane %v1636, %v4570
          %v4787 = vsel %vm4572, %v4786, %v4785
          %v4788 = vperm.slane %v1638, %v4574
          %v4789 = vsel %vm4576, %v4788, %v4787
          %v4790 = vperm.slane %v1640, %v4578
          %v4791 = vsel %vm4580, %v4790, %v4789
          %v4792 = vperm.slane %v1642, %v4582
          %v4793 = vsel %vm4584, %v4792, %v4791
          %v4794 = vperm.slane %v1644, %v4586
          %v4795 = vsel %vm4588, %v4794, %v4793
          %v4796 = vperm.slane %v1646, %v4590
          %v4797 = vsel %vm4592, %v4796, %v4795
          %v4798 = vperm.slane %v1648, %v4594
          %v4799 = vsel %vm4596, %v4798, %v4797
          %v4800 = vperm.slane %v1650, %v4598
          %v4801 = vsel %vm4600, %v4800, %v4799
          %v4802 = vperm.slane %v1652, %v4602
          %v4803 = vsel %vm4604, %v4802, %v4801
          %v4804 = vperm.slane %v1654, %v4606
          %v4805 = vsel %vm4608, %v4804, %v4803
          %v4806 = vperm.slane %v1656, %v4610
          %v4807 = vsel %vm4612, %v4806, %v4805
          %v4808 = vperm.slane %v1658, %v4614
          %v4809 = vsel %vm4616, %v4808, %v4807
          %v4810 = vperm.slane %v1660, %v4618
          %v4811 = vsel %vm4620, %v4810, %v4809
          %v4812 = vperm.slane %v1662, %v4622
          %v4813 = vsel %vm4624, %v4812, %v4811
          %v4814 = vperm.slane %v1664, %v4626
          %v4815 = vsel %vm4628, %v4814, %v4813
          %v4816 = vperm.slane %v1666, %v4568
          %v4817 = vperm.slane %v1668, %v4570
          %v4818 = vsel %vm4572, %v4817, %v4816
          %v4819 = vperm.slane %v1670, %v4574
          %v4820 = vsel %vm4576, %v4819, %v4818
          %v4821 = vperm.slane %v1672, %v4578
          %v4822 = vsel %vm4580, %v4821, %v4820
          %v4823 = vperm.slane %v1674, %v4582
          %v4824 = vsel %vm4584, %v4823, %v4822
          %v4825 = vperm.slane %v1676, %v4586
          %v4826 = vsel %vm4588, %v4825, %v4824
          %v4827 = vperm.slane %v1678, %v4590
          %v4828 = vsel %vm4592, %v4827, %v4826
          %v4829 = vperm.slane %v1680, %v4594
          %v4830 = vsel %vm4596, %v4829, %v4828
          %v4831 = vperm.slane %v1682, %v4598
          %v4832 = vsel %vm4600, %v4831, %v4830
          %v4833 = vperm.slane %v1684, %v4602
          %v4834 = vsel %vm4604, %v4833, %v4832
          %v4835 = vperm.slane %v1686, %v4606
          %v4836 = vsel %vm4608, %v4835, %v4834
          %v4837 = vperm.slane %v1688, %v4610
          %v4838 = vsel %vm4612, %v4837, %v4836
          %v4839 = vperm.slane %v1690, %v4614
          %v4840 = vsel %vm4616, %v4839, %v4838
          %v4841 = vperm.slane %v1692, %v4618
          %v4842 = vsel %vm4620, %v4841, %v4840
          %v4843 = vperm.slane %v1694, %v4622
          %v4844 = vsel %vm4624, %v4843, %v4842
          %v4845 = vperm.slane %v1696, %v4626
          %v4846 = vsel %vm4628, %v4845, %v4844
          %v4847 = vperm.slane %v1698, %v4568
          %v4848 = vperm.slane %v1700, %v4570
          %v4849 = vsel %vm4572, %v4848, %v4847
          %v4850 = vperm.slane %v1702, %v4574
          %v4851 = vsel %vm4576, %v4850, %v4849
          %v4852 = vperm.slane %v1704, %v4578
          %v4853 = vsel %vm4580, %v4852, %v4851
          %v4854 = vperm.slane %v1706, %v4582
          %v4855 = vsel %vm4584, %v4854, %v4853
          %v4856 = vperm.slane %v1708, %v4586
          %v4857 = vsel %vm4588, %v4856, %v4855
          %v4858 = vperm.slane %v1710, %v4590
          %v4859 = vsel %vm4592, %v4858, %v4857
          %v4860 = vperm.slane %v1712, %v4594
          %v4861 = vsel %vm4596, %v4860, %v4859
          %v4862 = vperm.slane %v1714, %v4598
          %v4863 = vsel %vm4600, %v4862, %v4861
          %v4864 = vperm.slane %v1716, %v4602
          %v4865 = vsel %vm4604, %v4864, %v4863
          %v4866 = vperm.slane %v1718, %v4606
          %v4867 = vsel %vm4608, %v4866, %v4865
          %v4868 = vperm.slane %v1720, %v4610
          %v4869 = vsel %vm4612, %v4868, %v4867
          %v4870 = vperm.slane %v1722, %v4614
          %v4871 = vsel %vm4616, %v4870, %v4869
          %v4872 = vperm.slane %v1724, %v4618
          %v4873 = vsel %vm4620, %v4872, %v4871
          %v4874 = vperm.slane %v1726, %v4622
          %v4875 = vsel %vm4624, %v4874, %v4873
          %v4876 = vperm.slane %v1728, %v4626
          %v4877 = vsel %vm4628, %v4876, %v4875
          %v4878 = vperm.slane %v1730, %v4568
          %v4879 = vperm.slane %v1732, %v4570
          %v4880 = vsel %vm4572, %v4879, %v4878
          %v4881 = vperm.slane %v1734, %v4574
          %v4882 = vsel %vm4576, %v4881, %v4880
          %v4883 = vperm.slane %v1736, %v4578
          %v4884 = vsel %vm4580, %v4883, %v4882
          %v4885 = vperm.slane %v1738, %v4582
          %v4886 = vsel %vm4584, %v4885, %v4884
          %v4887 = vperm.slane %v1740, %v4586
          %v4888 = vsel %vm4588, %v4887, %v4886
          %v4889 = vperm.slane %v1742, %v4590
          %v4890 = vsel %vm4592, %v4889, %v4888
          %v4891 = vperm.slane %v1744, %v4594
          %v4892 = vsel %vm4596, %v4891, %v4890
          %v4893 = vperm.slane %v1746, %v4598
          %v4894 = vsel %vm4600, %v4893, %v4892
          %v4895 = vperm.slane %v1748, %v4602
          %v4896 = vsel %vm4604, %v4895, %v4894
          %v4897 = vperm.slane %v1750, %v4606
          %v4898 = vsel %vm4608, %v4897, %v4896
          %v4899 = vperm.slane %v1752, %v4610
          %v4900 = vsel %vm4612, %v4899, %v4898
          %v4901 = vperm.slane %v1754, %v4614
          %v4902 = vsel %vm4616, %v4901, %v4900
          %v4903 = vperm.slane %v1756, %v4618
          %v4904 = vsel %vm4620, %v4903, %v4902
          %v4905 = vperm.slane %v1758, %v4622
          %v4906 = vsel %vm4624, %v4905, %v4904
          %v4907 = vperm.slane %v1760, %v4626
          %v4908 = vsel %vm4628, %v4907, %v4906
          %v4909 = vperm.slane %v1762, %v4568
          %v4910 = vperm.slane %v1764, %v4570
          %v4911 = vsel %vm4572, %v4910, %v4909
          %v4912 = vperm.slane %v1766, %v4574
          %v4913 = vsel %vm4576, %v4912, %v4911
          %v4914 = vperm.slane %v1768, %v4578
          %v4915 = vsel %vm4580, %v4914, %v4913
          %v4916 = vperm.slane %v1770, %v4582
          %v4917 = vsel %vm4584, %v4916, %v4915
          %v4918 = vperm.slane %v1772, %v4586
          %v4919 = vsel %vm4588, %v4918, %v4917
          %v4920 = vperm.slane %v1774, %v4590
          %v4921 = vsel %vm4592, %v4920, %v4919
          %v4922 = vperm.slane %v1776, %v4594
          %v4923 = vsel %vm4596, %v4922, %v4921
          %v4924 = vperm.slane %v1778, %v4598
          %v4925 = vsel %vm4600, %v4924, %v4923
          %v4926 = vperm.slane %v1780, %v4602
          %v4927 = vsel %vm4604, %v4926, %v4925
          %v4928 = vperm.slane %v1782, %v4606
          %v4929 = vsel %vm4608, %v4928, %v4927
          %v4930 = vperm.slane %v1784, %v4610
          %v4931 = vsel %vm4612, %v4930, %v4929
          %v4932 = vperm.slane %v1786, %v4614
          %v4933 = vsel %vm4616, %v4932, %v4931
          %v4934 = vperm.slane %v1788, %v4618
          %v4935 = vsel %vm4620, %v4934, %v4933
          %v4936 = vperm.slane %v1790, %v4622
          %v4937 = vsel %vm4624, %v4936, %v4935
          %v4938 = vperm.slane %v1792, %v4626
          %v4939 = vsel %vm4628, %v4938, %v4937
          %v4940 = vperm.slane %v1794, %v4568
          %v4941 = vperm.slane %v1796, %v4570
          %v4942 = vsel %vm4572, %v4941, %v4940
          %v4943 = vperm.slane %v1798, %v4574
          %v4944 = vsel %vm4576, %v4943, %v4942
          %v4945 = vperm.slane %v1800, %v4578
          %v4946 = vsel %vm4580, %v4945, %v4944
          %v4947 = vperm.slane %v1802, %v4582
          %v4948 = vsel %vm4584, %v4947, %v4946
          %v4949 = vperm.slane %v1804, %v4586
          %v4950 = vsel %vm4588, %v4949, %v4948
          %v4951 = vperm.slane %v1806, %v4590
          %v4952 = vsel %vm4592, %v4951, %v4950
          %v4953 = vperm.slane %v1808, %v4594
          %v4954 = vsel %vm4596, %v4953, %v4952
          %v4955 = vperm.slane %v1810, %v4598
          %v4956 = vsel %vm4600, %v4955, %v4954
          %v4957 = vperm.slane %v1812, %v4602
          %v4958 = vsel %vm4604, %v4957, %v4956
          %v4959 = vperm.slane %v1814, %v4606
          %v4960 = vsel %vm4608, %v4959, %v4958
          %v4961 = vperm.slane %v1816, %v4610
          %v4962 = vsel %vm4612, %v4961, %v4960
          %v4963 = vperm.slane %v1818, %v4614
          %v4964 = vsel %vm4616, %v4963, %v4962
          %v4965 = vperm.slane %v1820, %v4618
          %v4966 = vsel %vm4620, %v4965, %v4964
          %v4967 = vperm.slane %v1822, %v4622
          %v4968 = vsel %vm4624, %v4967, %v4966
          %v4969 = vperm.slane %v1824, %v4626
          %v4970 = vsel %vm4628, %v4969, %v4968
          %v4971 = vperm.slane %v1826, %v4568
          %v4972 = vperm.slane %v1828, %v4570
          %v4973 = vsel %vm4572, %v4972, %v4971
          %v4974 = vperm.slane %v1830, %v4574
          %v4975 = vsel %vm4576, %v4974, %v4973
          %v4976 = vperm.slane %v1832, %v4578
          %v4977 = vsel %vm4580, %v4976, %v4975
          %v4978 = vperm.slane %v1834, %v4582
          %v4979 = vsel %vm4584, %v4978, %v4977
          %v4980 = vperm.slane %v1836, %v4586
          %v4981 = vsel %vm4588, %v4980, %v4979
          %v4982 = vperm.slane %v1838, %v4590
          %v4983 = vsel %vm4592, %v4982, %v4981
          %v4984 = vperm.slane %v1840, %v4594
          %v4985 = vsel %vm4596, %v4984, %v4983
          %v4986 = vperm.slane %v1842, %v4598
          %v4987 = vsel %vm4600, %v4986, %v4985
          %v4988 = vperm.slane %v1844, %v4602
          %v4989 = vsel %vm4604, %v4988, %v4987
          %v4990 = vperm.slane %v1846, %v4606
          %v4991 = vsel %vm4608, %v4990, %v4989
          %v4992 = vperm.slane %v1848, %v4610
          %v4993 = vsel %vm4612, %v4992, %v4991
          %v4994 = vperm.slane %v1850, %v4614
          %v4995 = vsel %vm4616, %v4994, %v4993
          %v4996 = vperm.slane %v1852, %v4618
          %v4997 = vsel %vm4620, %v4996, %v4995
          %v4998 = vperm.slane %v1854, %v4622
          %v4999 = vsel %vm4624, %v4998, %v4997
          %v5000 = vperm.slane %v1856, %v4626
          %v5001 = vsel %vm4628, %v5000, %v4999
          %v5002 = vperm.slane %v1858, %v4568
          %v5003 = vperm.slane %v1860, %v4570
          %v5004 = vsel %vm4572, %v5003, %v5002
          %v5005 = vperm.slane %v1862, %v4574
          %v5006 = vsel %vm4576, %v5005, %v5004
          %v5007 = vperm.slane %v1864, %v4578
          %v5008 = vsel %vm4580, %v5007, %v5006
          %v5009 = vperm.slane %v1866, %v4582
          %v5010 = vsel %vm4584, %v5009, %v5008
          %v5011 = vperm.slane %v1868, %v4586
          %v5012 = vsel %vm4588, %v5011, %v5010
          %v5013 = vperm.slane %v1870, %v4590
          %v5014 = vsel %vm4592, %v5013, %v5012
          %v5015 = vperm.slane %v1872, %v4594
          %v5016 = vsel %vm4596, %v5015, %v5014
          %v5017 = vperm.slane %v1874, %v4598
          %v5018 = vsel %vm4600, %v5017, %v5016
          %v5019 = vperm.slane %v1876, %v4602
          %v5020 = vsel %vm4604, %v5019, %v5018
          %v5021 = vperm.slane %v1878, %v4606
          %v5022 = vsel %vm4608, %v5021, %v5020
          %v5023 = vperm.slane %v1880, %v4610
          %v5024 = vsel %vm4612, %v5023, %v5022
          %v5025 = vperm.slane %v1882, %v4614
          %v5026 = vsel %vm4616, %v5025, %v5024
          %v5027 = vperm.slane %v1884, %v4618
          %v5028 = vsel %vm4620, %v5027, %v5026
          %v5029 = vperm.slane %v1886, %v4622
          %v5030 = vsel %vm4624, %v5029, %v5028
          %v5031 = vperm.slane %v1888, %v4626
          %v5032 = vsel %vm4628, %v5031, %v5030
          %v5033 = vperm.slane %v1890, %v4568
          %v5034 = vperm.slane %v1892, %v4570
          %v5035 = vsel %vm4572, %v5034, %v5033
          %v5036 = vperm.slane %v1894, %v4574
          %v5037 = vsel %vm4576, %v5036, %v5035
          %v5038 = vperm.slane %v1896, %v4578
          %v5039 = vsel %vm4580, %v5038, %v5037
          %v5040 = vperm.slane %v1898, %v4582
          %v5041 = vsel %vm4584, %v5040, %v5039
          %v5042 = vperm.slane %v1900, %v4586
          %v5043 = vsel %vm4588, %v5042, %v5041
          %v5044 = vperm.slane %v1902, %v4590
          %v5045 = vsel %vm4592, %v5044, %v5043
          %v5046 = vperm.slane %v1904, %v4594
          %v5047 = vsel %vm4596, %v5046, %v5045
          %v5048 = vperm.slane %v1906, %v4598
          %v5049 = vsel %vm4600, %v5048, %v5047
          %v5050 = vperm.slane %v1908, %v4602
          %v5051 = vsel %vm4604, %v5050, %v5049
          %v5052 = vperm.slane %v1910, %v4606
          %v5053 = vsel %vm4608, %v5052, %v5051
          %v5054 = vperm.slane %v1912, %v4610
          %v5055 = vsel %vm4612, %v5054, %v5053
          %v5056 = vperm.slane %v1914, %v4614
          %v5057 = vsel %vm4616, %v5056, %v5055
          %v5058 = vperm.slane %v1916, %v4618
          %v5059 = vsel %vm4620, %v5058, %v5057
          %v5060 = vperm.slane %v1918, %v4622
          %v5061 = vsel %vm4624, %v5060, %v5059
          %v5062 = vperm.slane %v1920, %v4626
          %v5063 = vsel %vm4628, %v5062, %v5061
          %v5064 = vperm.slane %v1922, %v4568
          %v5065 = vperm.slane %v1924, %v4570
          %v5066 = vsel %vm4572, %v5065, %v5064
          %v5067 = vperm.slane %v1926, %v4574
          %v5068 = vsel %vm4576, %v5067, %v5066
          %v5069 = vperm.slane %v1928, %v4578
          %v5070 = vsel %vm4580, %v5069, %v5068
          %v5071 = vperm.slane %v1930, %v4582
          %v5072 = vsel %vm4584, %v5071, %v5070
          %v5073 = vperm.slane %v1932, %v4586
          %v5074 = vsel %vm4588, %v5073, %v5072
          %v5075 = vperm.slane %v1934, %v4590
          %v5076 = vsel %vm4592, %v5075, %v5074
          %v5077 = vperm.slane %v1936, %v4594
          %v5078 = vsel %vm4596, %v5077, %v5076
          %v5079 = vperm.slane %v1938, %v4598
          %v5080 = vsel %vm4600, %v5079, %v5078
          %v5081 = vperm.slane %v1940, %v4602
          %v5082 = vsel %vm4604, %v5081, %v5080
          %v5083 = vperm.slane %v1942, %v4606
          %v5084 = vsel %vm4608, %v5083, %v5082
          %v5085 = vperm.slane %v1944, %v4610
          %v5086 = vsel %vm4612, %v5085, %v5084
          %v5087 = vperm.slane %v1946, %v4614
          %v5088 = vsel %vm4616, %v5087, %v5086
          %v5089 = vperm.slane %v1948, %v4618
          %v5090 = vsel %vm4620, %v5089, %v5088
          %v5091 = vperm.slane %v1950, %v4622
          %v5092 = vsel %vm4624, %v5091, %v5090
          %v5093 = vperm.slane %v1952, %v4626
          %v5094 = vsel %vm4628, %v5093, %v5092
          %v5095 = vperm.slane %v1954, %v4568
          %v5096 = vperm.slane %v1956, %v4570
          %v5097 = vsel %vm4572, %v5096, %v5095
          %v5098 = vperm.slane %v1958, %v4574
          %v5099 = vsel %vm4576, %v5098, %v5097
          %v5100 = vperm.slane %v1960, %v4578
          %v5101 = vsel %vm4580, %v5100, %v5099
          %v5102 = vperm.slane %v1962, %v4582
          %v5103 = vsel %vm4584, %v5102, %v5101
          %v5104 = vperm.slane %v1964, %v4586
          %v5105 = vsel %vm4588, %v5104, %v5103
          %v5106 = vperm.slane %v1966, %v4590
          %v5107 = vsel %vm4592, %v5106, %v5105
          %v5108 = vperm.slane %v1968, %v4594
          %v5109 = vsel %vm4596, %v5108, %v5107
          %v5110 = vperm.slane %v1970, %v4598
          %v5111 = vsel %vm4600, %v5110, %v5109
          %v5112 = vperm.slane %v1972, %v4602
          %v5113 = vsel %vm4604, %v5112, %v5111
          %v5114 = vperm.slane %v1974, %v4606
          %v5115 = vsel %vm4608, %v5114, %v5113
          %v5116 = vperm.slane %v1976, %v4610
          %v5117 = vsel %vm4612, %v5116, %v5115
          %v5118 = vperm.slane %v1978, %v4614
          %v5119 = vsel %vm4616, %v5118, %v5117
          %v5120 = vperm.slane %v1980, %v4618
          %v5121 = vsel %vm4620, %v5120, %v5119
          %v5122 = vperm.slane %v1982, %v4622
          %v5123 = vsel %vm4624, %v5122, %v5121
          %v5124 = vperm.slane %v1984, %v4626
          %v5125 = vsel %vm4628, %v5124, %v5123
          %v5126 = vperm.slane %v1986, %v4568
          %v5127 = vperm.slane %v1988, %v4570
          %v5128 = vsel %vm4572, %v5127, %v5126
          %v5129 = vperm.slane %v1990, %v4574
          %v5130 = vsel %vm4576, %v5129, %v5128
          %v5131 = vperm.slane %v1992, %v4578
          %v5132 = vsel %vm4580, %v5131, %v5130
          %v5133 = vperm.slane %v1994, %v4582
          %v5134 = vsel %vm4584, %v5133, %v5132
          %v5135 = vperm.slane %v1996, %v4586
          %v5136 = vsel %vm4588, %v5135, %v5134
          %v5137 = vperm.slane %v1998, %v4590
          %v5138 = vsel %vm4592, %v5137, %v5136
          %v5139 = vperm.slane %v2000, %v4594
          %v5140 = vsel %vm4596, %v5139, %v5138
          %v5141 = vperm.slane %v2002, %v4598
          %v5142 = vsel %vm4600, %v5141, %v5140
          %v5143 = vperm.slane %v2004, %v4602
          %v5144 = vsel %vm4604, %v5143, %v5142
          %v5145 = vperm.slane %v2006, %v4606
          %v5146 = vsel %vm4608, %v5145, %v5144
          %v5147 = vperm.slane %v2008, %v4610
          %v5148 = vsel %vm4612, %v5147, %v5146
          %v5149 = vperm.slane %v2010, %v4614
          %v5150 = vsel %vm4616, %v5149, %v5148
          %v5151 = vperm.slane %v2012, %v4618
          %v5152 = vsel %vm4620, %v5151, %v5150
          %v5153 = vperm.slane %v2014, %v4622
          %v5154 = vsel %vm4624, %v5153, %v5152
          %v5155 = vperm.slane %v2016, %v4626
          %v5156 = vsel %vm4628, %v5155, %v5154
          %v5157 = vperm.slane %v2018, %v4568
          %v5158 = vperm.slane %v2020, %v4570
          %v5159 = vsel %vm4572, %v5158, %v5157
          %v5160 = vperm.slane %v2022, %v4574
          %v5161 = vsel %vm4576, %v5160, %v5159
          %v5162 = vperm.slane %v2024, %v4578
          %v5163 = vsel %vm4580, %v5162, %v5161
          %v5164 = vperm.slane %v2026, %v4582
          %v5165 = vsel %vm4584, %v5164, %v5163
          %v5166 = vperm.slane %v2028, %v4586
          %v5167 = vsel %vm4588, %v5166, %v5165
          %v5168 = vperm.slane %v2030, %v4590
          %v5169 = vsel %vm4592, %v5168, %v5167
          %v5170 = vperm.slane %v2032, %v4594
          %v5171 = vsel %vm4596, %v5170, %v5169
          %v5172 = vperm.slane %v2034, %v4598
          %v5173 = vsel %vm4600, %v5172, %v5171
          %v5174 = vperm.slane %v2036, %v4602
          %v5175 = vsel %vm4604, %v5174, %v5173
          %v5176 = vperm.slane %v2038, %v4606
          %v5177 = vsel %vm4608, %v5176, %v5175
          %v5178 = vperm.slane %v2040, %v4610
          %v5179 = vsel %vm4612, %v5178, %v5177
          %v5180 = vperm.slane %v2042, %v4614
          %v5181 = vsel %vm4616, %v5180, %v5179
          %v5182 = vperm.slane %v2044, %v4618
          %v5183 = vsel %vm4620, %v5182, %v5181
          %v5184 = vperm.slane %v2046, %v4622
          %v5185 = vsel %vm4624, %v5184, %v5183
          %v5186 = vperm.slane %v2048, %v4626
          %v5187 = vsel %vm4628, %v5186, %v5185
          %v5188 = vperm.slane %v2050, %v4568
          %v5189 = vperm.slane %v2052, %v4570
          %v5190 = vsel %vm4572, %v5189, %v5188
          %v5191 = vperm.slane %v2054, %v4574
          %v5192 = vsel %vm4576, %v5191, %v5190
          %v5193 = vperm.slane %v2056, %v4578
          %v5194 = vsel %vm4580, %v5193, %v5192
          %v5195 = vperm.slane %v2058, %v4582
          %v5196 = vsel %vm4584, %v5195, %v5194
          %v5197 = vperm.slane %v2060, %v4586
          %v5198 = vsel %vm4588, %v5197, %v5196
          %v5199 = vperm.slane %v2062, %v4590
          %v5200 = vsel %vm4592, %v5199, %v5198
          %v5201 = vperm.slane %v2064, %v4594
          %v5202 = vsel %vm4596, %v5201, %v5200
          %v5203 = vperm.slane %v2066, %v4598
          %v5204 = vsel %vm4600, %v5203, %v5202
          %v5205 = vperm.slane %v2068, %v4602
          %v5206 = vsel %vm4604, %v5205, %v5204
          %v5207 = vperm.slane %v2070, %v4606
          %v5208 = vsel %vm4608, %v5207, %v5206
          %v5209 = vperm.slane %v2072, %v4610
          %v5210 = vsel %vm4612, %v5209, %v5208
          %v5211 = vperm.slane %v2074, %v4614
          %v5212 = vsel %vm4616, %v5211, %v5210
          %v5213 = vperm.slane %v2076, %v4618
          %v5214 = vsel %vm4620, %v5213, %v5212
          %v5215 = vperm.slane %v2078, %v4622
          %v5216 = vsel %vm4624, %v5215, %v5214
          %v5217 = vperm.slane %v2080, %v4626
          %v5218 = vsel %vm4628, %v5217, %v5216
          %v5219 = vperm.slane %v2082, %v4568
          %v5220 = vperm.slane %v2084, %v4570
          %v5221 = vsel %vm4572, %v5220, %v5219
          %v5222 = vperm.slane %v2086, %v4574
          %v5223 = vsel %vm4576, %v5222, %v5221
          %v5224 = vperm.slane %v2088, %v4578
          %v5225 = vsel %vm4580, %v5224, %v5223
          %v5226 = vperm.slane %v2090, %v4582
          %v5227 = vsel %vm4584, %v5226, %v5225
          %v5228 = vperm.slane %v2092, %v4586
          %v5229 = vsel %vm4588, %v5228, %v5227
          %v5230 = vperm.slane %v2094, %v4590
          %v5231 = vsel %vm4592, %v5230, %v5229
          %v5232 = vperm.slane %v2096, %v4594
          %v5233 = vsel %vm4596, %v5232, %v5231
          %v5234 = vperm.slane %v2098, %v4598
          %v5235 = vsel %vm4600, %v5234, %v5233
          %v5236 = vperm.slane %v2100, %v4602
          %v5237 = vsel %vm4604, %v5236, %v5235
          %v5238 = vperm.slane %v2102, %v4606
          %v5239 = vsel %vm4608, %v5238, %v5237
          %v5240 = vperm.slane %v2104, %v4610
          %v5241 = vsel %vm4612, %v5240, %v5239
          %v5242 = vperm.slane %v2106, %v4614
          %v5243 = vsel %vm4616, %v5242, %v5241
          %v5244 = vperm.slane %v2108, %v4618
          %v5245 = vsel %vm4620, %v5244, %v5243
          %v5246 = vperm.slane %v2110, %v4622
          %v5247 = vsel %vm4624, %v5246, %v5245
          %v5248 = vperm.slane %v2112, %v4626
          %v5249 = vsel %vm4628, %v5248, %v5247
          %v5250 = vperm.slane %v2114, %v4568
          %v5251 = vperm.slane %v2116, %v4570
          %v5252 = vsel %vm4572, %v5251, %v5250
          %v5253 = vperm.slane %v2118, %v4574
          %v5254 = vsel %vm4576, %v5253, %v5252
          %v5255 = vperm.slane %v2120, %v4578
          %v5256 = vsel %vm4580, %v5255, %v5254
          %v5257 = vperm.slane %v2122, %v4582
          %v5258 = vsel %vm4584, %v5257, %v5256
          %v5259 = vperm.slane %v2124, %v4586
          %v5260 = vsel %vm4588, %v5259, %v5258
          %v5261 = vperm.slane %v2126, %v4590
          %v5262 = vsel %vm4592, %v5261, %v5260
          %v5263 = vperm.slane %v2128, %v4594
          %v5264 = vsel %vm4596, %v5263, %v5262
          %v5265 = vperm.slane %v2130, %v4598
          %v5266 = vsel %vm4600, %v5265, %v5264
          %v5267 = vperm.slane %v2132, %v4602
          %v5268 = vsel %vm4604, %v5267, %v5266
          %v5269 = vperm.slane %v2134, %v4606
          %v5270 = vsel %vm4608, %v5269, %v5268
          %v5271 = vperm.slane %v2136, %v4610
          %v5272 = vsel %vm4612, %v5271, %v5270
          %v5273 = vperm.slane %v2138, %v4614
          %v5274 = vsel %vm4616, %v5273, %v5272
          %v5275 = vperm.slane %v2140, %v4618
          %v5276 = vsel %vm4620, %v5275, %v5274
          %v5277 = vperm.slane %v2142, %v4622
          %v5278 = vsel %vm4624, %v5277, %v5276
          %v5279 = vperm.slane %v2144, %v4626
          %v5280 = vsel %vm4628, %v5279, %v5278
          %v5281 = vperm.slane %v2146, %v4568
          %v5282 = vperm.slane %v2148, %v4570
          %v5283 = vsel %vm4572, %v5282, %v5281
          %v5284 = vperm.slane %v2150, %v4574
          %v5285 = vsel %vm4576, %v5284, %v5283
          %v5286 = vperm.slane %v2152, %v4578
          %v5287 = vsel %vm4580, %v5286, %v5285
          %v5288 = vperm.slane %v2154, %v4582
          %v5289 = vsel %vm4584, %v5288, %v5287
          %v5290 = vperm.slane %v2156, %v4586
          %v5291 = vsel %vm4588, %v5290, %v5289
          %v5292 = vperm.slane %v2158, %v4590
          %v5293 = vsel %vm4592, %v5292, %v5291
          %v5294 = vperm.slane %v2160, %v4594
          %v5295 = vsel %vm4596, %v5294, %v5293
          %v5296 = vperm.slane %v2162, %v4598
          %v5297 = vsel %vm4600, %v5296, %v5295
          %v5298 = vperm.slane %v2164, %v4602
          %v5299 = vsel %vm4604, %v5298, %v5297
          %v5300 = vperm.slane %v2166, %v4606
          %v5301 = vsel %vm4608, %v5300, %v5299
          %v5302 = vperm.slane %v2168, %v4610
          %v5303 = vsel %vm4612, %v5302, %v5301
          %v5304 = vperm.slane %v2170, %v4614
          %v5305 = vsel %vm4616, %v5304, %v5303
          %v5306 = vperm.slane %v2172, %v4618
          %v5307 = vsel %vm4620, %v5306, %v5305
          %v5308 = vperm.slane %v2174, %v4622
          %v5309 = vsel %vm4624, %v5308, %v5307
          %v5310 = vperm.slane %v2176, %v4626
          %v5311 = vsel %vm4628, %v5310, %v5309
          %v5312 = vperm.slane %v2178, %v4568
          %v5313 = vperm.slane %v2180, %v4570
          %v5314 = vsel %vm4572, %v5313, %v5312
          %v5315 = vperm.slane %v2182, %v4574
          %v5316 = vsel %vm4576, %v5315, %v5314
          %v5317 = vperm.slane %v2184, %v4578
          %v5318 = vsel %vm4580, %v5317, %v5316
          %v5319 = vperm.slane %v2186, %v4582
          %v5320 = vsel %vm4584, %v5319, %v5318
          %v5321 = vperm.slane %v2188, %v4586
          %v5322 = vsel %vm4588, %v5321, %v5320
          %v5323 = vperm.slane %v2190, %v4590
          %v5324 = vsel %vm4592, %v5323, %v5322
          %v5325 = vperm.slane %v2192, %v4594
          %v5326 = vsel %vm4596, %v5325, %v5324
          %v5327 = vperm.slane %v2194, %v4598
          %v5328 = vsel %vm4600, %v5327, %v5326
          %v5329 = vperm.slane %v2196, %v4602
          %v5330 = vsel %vm4604, %v5329, %v5328
          %v5331 = vperm.slane %v2198, %v4606
          %v5332 = vsel %vm4608, %v5331, %v5330
          %v5333 = vperm.slane %v2200, %v4610
          %v5334 = vsel %vm4612, %v5333, %v5332
          %v5335 = vperm.slane %v2202, %v4614
          %v5336 = vsel %vm4616, %v5335, %v5334
          %v5337 = vperm.slane %v2204, %v4618
          %v5338 = vsel %vm4620, %v5337, %v5336
          %v5339 = vperm.slane %v2206, %v4622
          %v5340 = vsel %vm4624, %v5339, %v5338
          %v5341 = vperm.slane %v2208, %v4626
          %v5342 = vsel %vm4628, %v5341, %v5340
          %v5343 = vperm.slane %v2210, %v4568
          %v5344 = vperm.slane %v2212, %v4570
          %v5345 = vsel %vm4572, %v5344, %v5343
          %v5346 = vperm.slane %v2214, %v4574
          %v5347 = vsel %vm4576, %v5346, %v5345
          %v5348 = vperm.slane %v2216, %v4578
          %v5349 = vsel %vm4580, %v5348, %v5347
          %v5350 = vperm.slane %v2218, %v4582
          %v5351 = vsel %vm4584, %v5350, %v5349
          %v5352 = vperm.slane %v2220, %v4586
          %v5353 = vsel %vm4588, %v5352, %v5351
          %v5354 = vperm.slane %v2222, %v4590
          %v5355 = vsel %vm4592, %v5354, %v5353
          %v5356 = vperm.slane %v2224, %v4594
          %v5357 = vsel %vm4596, %v5356, %v5355
          %v5358 = vperm.slane %v2226, %v4598
          %v5359 = vsel %vm4600, %v5358, %v5357
          %v5360 = vperm.slane %v2228, %v4602
          %v5361 = vsel %vm4604, %v5360, %v5359
          %v5362 = vperm.slane %v2230, %v4606
          %v5363 = vsel %vm4608, %v5362, %v5361
          %v5364 = vperm.slane %v2232, %v4610
          %v5365 = vsel %vm4612, %v5364, %v5363
          %v5366 = vperm.slane %v2234, %v4614
          %v5367 = vsel %vm4616, %v5366, %v5365
          %v5368 = vperm.slane %v2236, %v4618
          %v5369 = vsel %vm4620, %v5368, %v5367
          %v5370 = vperm.slane %v2238, %v4622
          %v5371 = vsel %vm4624, %v5370, %v5369
          %v5372 = vperm.slane %v2240, %v4626
          %v5373 = vsel %vm4628, %v5372, %v5371
          %v5374 = vperm.slane %v2242, %v4568
          %v5375 = vperm.slane %v2244, %v4570
          %v5376 = vsel %vm4572, %v5375, %v5374
          %v5377 = vperm.slane %v2246, %v4574
          %v5378 = vsel %vm4576, %v5377, %v5376
          %v5379 = vperm.slane %v2248, %v4578
          %v5380 = vsel %vm4580, %v5379, %v5378
          %v5381 = vperm.slane %v2250, %v4582
          %v5382 = vsel %vm4584, %v5381, %v5380
          %v5383 = vperm.slane %v2252, %v4586
          %v5384 = vsel %vm4588, %v5383, %v5382
          %v5385 = vperm.slane %v2254, %v4590
          %v5386 = vsel %vm4592, %v5385, %v5384
          %v5387 = vperm.slane %v2256, %v4594
          %v5388 = vsel %vm4596, %v5387, %v5386
          %v5389 = vperm.slane %v2258, %v4598
          %v5390 = vsel %vm4600, %v5389, %v5388
          %v5391 = vperm.slane %v2260, %v4602
          %v5392 = vsel %vm4604, %v5391, %v5390
          %v5393 = vperm.slane %v2262, %v4606
          %v5394 = vsel %vm4608, %v5393, %v5392
          %v5395 = vperm.slane %v2264, %v4610
          %v5396 = vsel %vm4612, %v5395, %v5394
          %v5397 = vperm.slane %v2266, %v4614
          %v5398 = vsel %vm4616, %v5397, %v5396
          %v5399 = vperm.slane %v2268, %v4618
          %v5400 = vsel %vm4620, %v5399, %v5398
          %v5401 = vperm.slane %v2270, %v4622
          %v5402 = vsel %vm4624, %v5401, %v5400
          %v5403 = vperm.slane %v2272, %v4626
          %v5404 = vsel %vm4628, %v5403, %v5402
          %v5405 = vperm.slane %v2274, %v4568
          %v5406 = vperm.slane %v2276, %v4570
          %v5407 = vsel %vm4572, %v5406, %v5405
          %v5408 = vperm.slane %v2278, %v4574
          %v5409 = vsel %vm4576, %v5408, %v5407
          %v5410 = vperm.slane %v2280, %v4578
          %v5411 = vsel %vm4580, %v5410, %v5409
          %v5412 = vperm.slane %v2282, %v4582
          %v5413 = vsel %vm4584, %v5412, %v5411
          %v5414 = vperm.slane %v2284, %v4586
          %v5415 = vsel %vm4588, %v5414, %v5413
          %v5416 = vperm.slane %v2286, %v4590
          %v5417 = vsel %vm4592, %v5416, %v5415
          %v5418 = vperm.slane %v2288, %v4594
          %v5419 = vsel %vm4596, %v5418, %v5417
          %v5420 = vperm.slane %v2290, %v4598
          %v5421 = vsel %vm4600, %v5420, %v5419
          %v5422 = vperm.slane %v2292, %v4602
          %v5423 = vsel %vm4604, %v5422, %v5421
          %v5424 = vperm.slane %v2294, %v4606
          %v5425 = vsel %vm4608, %v5424, %v5423
          %v5426 = vperm.slane %v2296, %v4610
          %v5427 = vsel %vm4612, %v5426, %v5425
          %v5428 = vperm.slane %v2298, %v4614
          %v5429 = vsel %vm4616, %v5428, %v5427
          %v5430 = vperm.slane %v2300, %v4618
          %v5431 = vsel %vm4620, %v5430, %v5429
          %v5432 = vperm.slane %v2302, %v4622
          %v5433 = vsel %vm4624, %v5432, %v5431
          %v5434 = vperm.slane %v2304, %v4626
          %v5435 = vsel %vm4628, %v5434, %v5433
          %v5436 = vperm.slane %v2306, %v4568
          %v5437 = vperm.slane %v2308, %v4570
          %v5438 = vsel %vm4572, %v5437, %v5436
          %v5439 = vperm.slane %v2310, %v4574
          %v5440 = vsel %vm4576, %v5439, %v5438
          %v5441 = vperm.slane %v2312, %v4578
          %v5442 = vsel %vm4580, %v5441, %v5440
          %v5443 = vperm.slane %v2314, %v4582
          %v5444 = vsel %vm4584, %v5443, %v5442
          %v5445 = vperm.slane %v2316, %v4586
          %v5446 = vsel %vm4588, %v5445, %v5444
          %v5447 = vperm.slane %v2318, %v4590
          %v5448 = vsel %vm4592, %v5447, %v5446
          %v5449 = vperm.slane %v2320, %v4594
          %v5450 = vsel %vm4596, %v5449, %v5448
          %v5451 = vperm.slane %v2322, %v4598
          %v5452 = vsel %vm4600, %v5451, %v5450
          %v5453 = vperm.slane %v2324, %v4602
          %v5454 = vsel %vm4604, %v5453, %v5452
          %v5455 = vperm.slane %v2326, %v4606
          %v5456 = vsel %vm4608, %v5455, %v5454
          %v5457 = vperm.slane %v2328, %v4610
          %v5458 = vsel %vm4612, %v5457, %v5456
          %v5459 = vperm.slane %v2330, %v4614
          %v5460 = vsel %vm4616, %v5459, %v5458
          %v5461 = vperm.slane %v2332, %v4618
          %v5462 = vsel %vm4620, %v5461, %v5460
          %v5463 = vperm.slane %v2334, %v4622
          %v5464 = vsel %vm4624, %v5463, %v5462
          %v5465 = vperm.slane %v2336, %v4626
          %v5466 = vsel %vm4628, %v5465, %v5464
          %v5467 = vperm.slane %v2338, %v4568
          %v5468 = vperm.slane %v2340, %v4570
          %v5469 = vsel %vm4572, %v5468, %v5467
          %v5470 = vperm.slane %v2342, %v4574
          %v5471 = vsel %vm4576, %v5470, %v5469
          %v5472 = vperm.slane %v2344, %v4578
          %v5473 = vsel %vm4580, %v5472, %v5471
          %v5474 = vperm.slane %v2346, %v4582
          %v5475 = vsel %vm4584, %v5474, %v5473
          %v5476 = vperm.slane %v2348, %v4586
          %v5477 = vsel %vm4588, %v5476, %v5475
          %v5478 = vperm.slane %v2350, %v4590
          %v5479 = vsel %vm4592, %v5478, %v5477
          %v5480 = vperm.slane %v2352, %v4594
          %v5481 = vsel %vm4596, %v5480, %v5479
          %v5482 = vperm.slane %v2354, %v4598
          %v5483 = vsel %vm4600, %v5482, %v5481
          %v5484 = vperm.slane %v2356, %v4602
          %v5485 = vsel %vm4604, %v5484, %v5483
          %v5486 = vperm.slane %v2358, %v4606
          %v5487 = vsel %vm4608, %v5486, %v5485
          %v5488 = vperm.slane %v2360, %v4610
          %v5489 = vsel %vm4612, %v5488, %v5487
          %v5490 = vperm.slane %v2362, %v4614
          %v5491 = vsel %vm4616, %v5490, %v5489
          %v5492 = vperm.slane %v2364, %v4618
          %v5493 = vsel %vm4620, %v5492, %v5491
          %v5494 = vperm.slane %v2366, %v4622
          %v5495 = vsel %vm4624, %v5494, %v5493
          %v5496 = vperm.slane %v2368, %v4626
          %v5497 = vsel %vm4628, %v5496, %v5495
          %v5498 = vperm.slane %v2370, %v4568
          %v5499 = vperm.slane %v2372, %v4570
          %v5500 = vsel %vm4572, %v5499, %v5498
          %v5501 = vperm.slane %v2374, %v4574
          %v5502 = vsel %vm4576, %v5501, %v5500
          %v5503 = vperm.slane %v2376, %v4578
          %v5504 = vsel %vm4580, %v5503, %v5502
          %v5505 = vperm.slane %v2378, %v4582
          %v5506 = vsel %vm4584, %v5505, %v5504
          %v5507 = vperm.slane %v2380, %v4586
          %v5508 = vsel %vm4588, %v5507, %v5506
          %v5509 = vperm.slane %v2382, %v4590
          %v5510 = vsel %vm4592, %v5509, %v5508
          %v5511 = vperm.slane %v2384, %v4594
          %v5512 = vsel %vm4596, %v5511, %v5510
          %v5513 = vperm.slane %v2386, %v4598
          %v5514 = vsel %vm4600, %v5513, %v5512
          %v5515 = vperm.slane %v2388, %v4602
          %v5516 = vsel %vm4604, %v5515, %v5514
          %v5517 = vperm.slane %v2390, %v4606
          %v5518 = vsel %vm4608, %v5517, %v5516
          %v5519 = vperm.slane %v2392, %v4610
          %v5520 = vsel %vm4612, %v5519, %v5518
          %v5521 = vperm.slane %v2394, %v4614
          %v5522 = vsel %vm4616, %v5521, %v5520
          %v5523 = vperm.slane %v2396, %v4618
          %v5524 = vsel %vm4620, %v5523, %v5522
          %v5525 = vperm.slane %v2398, %v4622
          %v5526 = vsel %vm4624, %v5525, %v5524
          %v5527 = vperm.slane %v2400, %v4626
          %v5528 = vsel %vm4628, %v5527, %v5526
          %v5529 = vperm.slane %v2402, %v4568
          %v5530 = vperm.slane %v2404, %v4570
          %v5531 = vsel %vm4572, %v5530, %v5529
          %v5532 = vperm.slane %v2406, %v4574
          %v5533 = vsel %vm4576, %v5532, %v5531
          %v5534 = vperm.slane %v2408, %v4578
          %v5535 = vsel %vm4580, %v5534, %v5533
          %v5536 = vperm.slane %v2410, %v4582
          %v5537 = vsel %vm4584, %v5536, %v5535
          %v5538 = vperm.slane %v2412, %v4586
          %v5539 = vsel %vm4588, %v5538, %v5537
          %v5540 = vperm.slane %v2414, %v4590
          %v5541 = vsel %vm4592, %v5540, %v5539
          %v5542 = vperm.slane %v2416, %v4594
          %v5543 = vsel %vm4596, %v5542, %v5541
          %v5544 = vperm.slane %v2418, %v4598
          %v5545 = vsel %vm4600, %v5544, %v5543
          %v5546 = vperm.slane %v2420, %v4602
          %v5547 = vsel %vm4604, %v5546, %v5545
          %v5548 = vperm.slane %v2422, %v4606
          %v5549 = vsel %vm4608, %v5548, %v5547
          %v5550 = vperm.slane %v2424, %v4610
          %v5551 = vsel %vm4612, %v5550, %v5549
          %v5552 = vperm.slane %v2426, %v4614
          %v5553 = vsel %vm4616, %v5552, %v5551
          %v5554 = vperm.slane %v2428, %v4618
          %v5555 = vsel %vm4620, %v5554, %v5553
          %v5556 = vperm.slane %v2430, %v4622
          %v5557 = vsel %vm4624, %v5556, %v5555
          %v5558 = vperm.slane %v2432, %v4626
          %v5559 = vsel %vm4628, %v5558, %v5557
          %v5560 = vperm.slane %v2434, %v4568
          %v5561 = vperm.slane %v2436, %v4570
          %v5562 = vsel %vm4572, %v5561, %v5560
          %v5563 = vperm.slane %v2438, %v4574
          %v5564 = vsel %vm4576, %v5563, %v5562
          %v5565 = vperm.slane %v2440, %v4578
          %v5566 = vsel %vm4580, %v5565, %v5564
          %v5567 = vperm.slane %v2442, %v4582
          %v5568 = vsel %vm4584, %v5567, %v5566
          %v5569 = vperm.slane %v2444, %v4586
          %v5570 = vsel %vm4588, %v5569, %v5568
          %v5571 = vperm.slane %v2446, %v4590
          %v5572 = vsel %vm4592, %v5571, %v5570
          %v5573 = vperm.slane %v2448, %v4594
          %v5574 = vsel %vm4596, %v5573, %v5572
          %v5575 = vperm.slane %v2450, %v4598
          %v5576 = vsel %vm4600, %v5575, %v5574
          %v5577 = vperm.slane %v2452, %v4602
          %v5578 = vsel %vm4604, %v5577, %v5576
          %v5579 = vperm.slane %v2454, %v4606
          %v5580 = vsel %vm4608, %v5579, %v5578
          %v5581 = vperm.slane %v2456, %v4610
          %v5582 = vsel %vm4612, %v5581, %v5580
          %v5583 = vperm.slane %v2458, %v4614
          %v5584 = vsel %vm4616, %v5583, %v5582
          %v5585 = vperm.slane %v2460, %v4618
          %v5586 = vsel %vm4620, %v5585, %v5584
          %v5587 = vperm.slane %v2462, %v4622
          %v5588 = vsel %vm4624, %v5587, %v5586
          %v5589 = vperm.slane %v2464, %v4626
          %v5590 = vsel %vm4628, %v5589, %v5588
          %vm5591 = vcmask 1041409
          %v5592 = vsel %vm5591, %v4660, %v4629
          %vm5593 = vcmask 1042434
          %v5594 = vsel %vm5593, %v4691, %v5592
          %vm5595 = vcmask 1043459
          %v5596 = vsel %vm5595, %v4722, %v5594
          %vm5597 = vcmask 1044484
          %v5598 = vsel %vm5597, %v4753, %v5596
          %vm5599 = vcmask 1045509
          %v5600 = vsel %vm5599, %v4784, %v5598
          %vm5601 = vcmask 1046534
          %v5602 = vsel %vm5601, %v4815, %v5600
          %vm5603 = vcmask 1047559
          %v5604 = vsel %vm5603, %v4846, %v5602
          %v5605 = vsel %vm5591, %v4908, %v4877
          %v5606 = vsel %vm5593, %v4939, %v5605
          %v5607 = vsel %vm5595, %v4970, %v5606
          %v5608 = vsel %vm5597, %v5001, %v5607
          %v5609 = vsel %vm5599, %v5032, %v5608
          %v5610 = vsel %vm5601, %v5063, %v5609
          %v5611 = vsel %vm5603, %v5094, %v5610
          %v5612 = vsel %vm5591, %v5156, %v5125
          %v5613 = vsel %vm5593, %v5187, %v5612
          %v5614 = vsel %vm5595, %v5218, %v5613
          %v5615 = vsel %vm5597, %v5249, %v5614
          %v5616 = vsel %vm5599, %v5280, %v5615
          %v5617 = vsel %vm5601, %v5311, %v5616
          %v5618 = vsel %vm5603, %v5342, %v5617
          %v5619 = vsel %vm5591, %v5404, %v5373
          %v5620 = vsel %vm5593, %v5435, %v5619
          %v5621 = vsel %vm5595, %v5466, %v5620
          %v5622 = vsel %vm5597, %v5497, %v5621
          %v5623 = vsel %vm5599, %v5528, %v5622
          %v5624 = vsel %vm5601, %v5559, %v5623
          %v5625 = vsel %vm5603, %v5590, %v5624
          %v5630 = vmax.f32 %v4051, %v5604
          %v5631 = vmax.f32 %v4052, %v5611
          %v5632 = vmax.f32 %v4053, %v5618
          %v5633 = vmax.f32 %v4054, %v5625
          %5634 = vst [vmem:[#allocation2] sm:$0xff] %v5630
          %5635 = vst [vmem:[#allocation2 + $0x8] sm:$0xff] %v5631
          %5636 = vst [vmem:[#allocation2 + $0x10] sm:$0xff] %v5632
          %5637 = vst [vmem:[#allocation2 + $0x18] sm:$0xff] %v5633
        $region52: #{tpu_custom_call.1} parent=39 // pred_fallthru
          _
        %v5638 = vadd.f32 %v753, %v536
        %v5639 = vadd.f32 %v754, %v537
        %v5640 = vadd.f32 %v755, %v538
        %v5641 = vadd.f32 %v756, %v539
        %v5642 = vadd.f32 %v757, %v540
        %v5643 = vadd.f32 %v758, %v541
        %v5644 = vadd.f32 %v759, %v542
        %v5645 = vadd.f32 %v760, %v543
        %v5646 = vadd.f32 %v761, %v544
        %v5647 = vadd.f32 %v762, %v545
        %v5648 = vadd.f32 %v763, %v546
        %v5649 = vadd.f32 %v764, %v547
        %v5650 = vadd.f32 %v765, %v548
        %v5651 = vadd.f32 %v766, %v549
        %v5652 = vadd.f32 %v767, %v550
        %v5653 = vadd.f32 %v768, %v551
        %5670 = vrot.lane.b32.xlu0 %v5638, 1
        %v5671 = vpop.permute.xlu0 %5670
        %5672 = vrot.lane.b32.xlu0 %v5639, 1
        %v5673 = vpop.permute.xlu0 %5672
        %5674 = vrot.lane.b32.xlu0 %v5640, 1
        %v5675 = vpop.permute.xlu0 %5674
        %5676 = vrot.lane.b32.xlu0 %v5641, 1
        %v5677 = vpop.permute.xlu0 %5676
        %5678 = vrot.lane.b32.xlu0 %v5642, 1
        %v5679 = vpop.permute.xlu0 %5678
        %5680 = vrot.lane.b32.xlu0 %v5643, 1
        %v5681 = vpop.permute.xlu0 %5680
        %5682 = vrot.lane.b32.xlu0 %v5644, 1
        %v5683 = vpop.permute.xlu0 %5682
        %5684 = vrot.lane.b32.xlu0 %v5645, 1
        %v5685 = vpop.permute.xlu0 %5684
        %5686 = vrot.lane.b32.xlu0 %v5646, 1
        %v5687 = vpop.permute.xlu0 %5686
        %5688 = vrot.lane.b32.xlu0 %v5647, 1
        %v5689 = vpop.permute.xlu0 %5688
        %5690 = vrot.lane.b32.xlu0 %v5648, 1
        %v5691 = vpop.permute.xlu0 %5690
        %5692 = vrot.lane.b32.xlu0 %v5649, 1
        %v5693 = vpop.permute.xlu0 %5692
        %5694 = vrot.lane.b32.xlu0 %v5650, 1
        %v5695 = vpop.permute.xlu0 %5694
        %5696 = vrot.lane.b32.xlu0 %v5651, 1
        %v5697 = vpop.permute.xlu0 %5696
        %5698 = vrot.lane.b32.xlu0 %v5652, 1
        %v5699 = vpop.permute.xlu0 %5698
        %5700 = vrot.lane.b32.xlu0 %v5653, 1
        %v5701 = vpop.permute.xlu0 %5700
        %vm5718 = vcmask 7168
        %5719 = vst.msk [vmem:[#allocation3] sm:$0xff] %vm5718, %v5671
        %5720 = vst.msk [vmem:[#allocation3 + $0x8] sm:$0xff] %vm5718, %v5673
        %5721 = vst.msk [vmem:[#allocation3 + $0x10] sm:$0xff] %vm5718, %v5675
        %5722 = vst.msk [vmem:[#allocation3 + $0x18] sm:$0xff] %vm5718, %v5677
        %5723 = vst.msk [vmem:[#allocation3 + $0x20] sm:$0xff] %vm5718, %v5679
        %5724 = vst.msk [vmem:[#allocation3 + $0x28] sm:$0xff] %vm5718, %v5681
        %5725 = vst.msk [vmem:[#allocation3 + $0x30] sm:$0xff] %vm5718, %v5683
        %5726 = vst.msk [vmem:[#allocation3 + $0x38] sm:$0xff] %vm5718, %v5685
        %5727 = vst.msk [vmem:[#allocation3 + $0x40] sm:$0xff] %vm5718, %v5687
        %5728 = vst.msk [vmem:[#allocation3 + $0x48] sm:$0xff] %vm5718, %v5689
        %5729 = vst.msk [vmem:[#allocation3 + $0x50] sm:$0xff] %vm5718, %v5691
        %5730 = vst.msk [vmem:[#allocation3 + $0x58] sm:$0xff] %vm5718, %v5693
        %5731 = vst.msk [vmem:[#allocation3 + $0x60] sm:$0xff] %vm5718, %v5695
        %5732 = vst.msk [vmem:[#allocation3 + $0x68] sm:$0xff] %vm5718, %v5697
        %5733 = vst.msk [vmem:[#allocation3 + $0x70] sm:$0xff] %vm5718, %v5699
        %5734 = vst.msk [vmem:[#allocation3 + $0x78] sm:$0xff] %vm5718, %v5701
        // Predicated region
        $region53: #{tpu_custom_call.1} parent=39 // pred_check
          %p5735 = pneg %p495
        $region54: #{tpu_custom_call.1} parent=39 // pred_check_branch
          %5737 = sbr.rel (%p5735) target = $region56
        $region55: #{tpu_custom_call.1} parent=39 // pred_region
          %v5738 = vld [vmem:[%s3] sm:$0xff]
          %v5739 = vld [vmem:[%s3 + $0x8] sm:$0xff]
          %v5740 = vld [vmem:[%s3 + $0x10] sm:$0xff]
          %v5741 = vld [vmem:[%s3 + $0x18] sm:$0xff]
          %vm5742 = vcmask 97280
          %v5744 = vsel %vm5742, %v5738, 0
          %v5747 = vsel %vm5742, %v5739, 0
          %v5750 = vsel %vm5742, %v5740, 0
          %v5753 = vsel %vm5742, %v5741, 0
          %vm5755 = vcmask 1043456
          %v5757 = vsel %vm5755, %v323, 0
          %5759 = vmatpush.msra.mxu0 0.0
          %5760 = vmatpush.msra.mxu0 0.0
          %5761 = vmatpush.msra.mxu0 0.0
          %5762 = vmatpush.msra.mxu0 0.0
          %5763 = vmatpush.msra.mxu0 0.0
          %5764 = vmatpush.msra.mxu0 0.0
          %5765 = vmatpush.msra.mxu0 0.0
          %5766 = vmatpush.msra.mxu0 0.0
          %5767 = vmatpush.msra.mxu0 0.0
          %5768 = vmatpush.msra.mxu0 0.0
          %5769 = vmatpush.msra.mxu0 0.0
          %5770 = vmatpush.msra.mxu0 0.0
          %5771 = vmatpush.msra.mxu0 0.0
          %5772 = vmatpush.msra.mxu0 0.0
          %5773 = vmatpush.msra.mxu0 %v5757
          %5774 = vmatpush.msra.mxu0 %v322
          %5775 = vmatmul.f32.gmra.mxu0 %v5744
          %v5776 = vpop.f32.mrf.mxu0
          %v5777 = vadd.f32 0.0, %v5776
          %5778 = vmatmul.f32.gmra.mxu0 %v5747
          %v5779 = vpop.f32.mrf.mxu0
          %v5780 = vadd.f32 0.0, %v5779
          %5781 = vmatmul.f32.gmra.mxu0 %v5750
          %v5782 = vpop.f32.mrf.mxu0
          %v5783 = vadd.f32 0.0, %v5782
          %5784 = vmatmul.f32.gmra.mxu0 %v5753
          %v5785 = vpop.f32.mrf.mxu0
          %v5786 = vadd.f32 0.0, %v5785
          %5787 = vdwg.mxu0
          %v5788 = vld [vmem:[#allocation2] sm:$0xff]
          %v5789 = vld [vmem:[#allocation2 + $0x8] sm:$0xff]
          %v5790 = vld [vmem:[#allocation2 + $0x10] sm:$0xff]
          %v5791 = vld [vmem:[#allocation2 + $0x18] sm:$0xff]
          %vm5792 = vcmp.eq.f32.partialorder %v5788, -inf
          %v5793 = vld [vmem:[#allocation4] sm:$0xff]
          %v5794 = vld [vmem:[#allocation4 + $0x8] sm:$0xff]
          %v5795 = vld [vmem:[#allocation4 + $0x10] sm:$0xff]
          %v5796 = vld [vmem:[#allocation4 + $0x18] sm:$0xff]
          %v5797 = vsel %vm5792, 1, 0
          %v5798 = vperm.slane %v5797, 0
          %vm5799 = vcmp.eq.s32.totalorder %v5798, 1
          %5801 = vset.pattern.permute.xlu0 0
          %5802 = vperm.xlu0 %5801, %v5793
          %v5803 = vpop.permute.xlu0 %5802
          %5806 = vset.pattern.permute.xlu0 0
          %5807 = vperm.xlu0 %5806, %v5794
          %v5808 = vpop.permute.xlu0 %5807
          %5811 = vset.pattern.permute.xlu0 0
          %5812 = vperm.xlu0 %5811, %v5795
          %v5813 = vpop.permute.xlu0 %5812
          %5816 = vset.pattern.permute.xlu0 0
          %5817 = vperm.xlu0 %5816, %v5796
          %v5818 = vpop.permute.xlu0 %5817
          %v5820 = vsel %vm5799, %v5803, %v5788
          %v5821 = vsel %vm5799, %v5808, %v5789
          %v5822 = vsel %vm5799, %v5813, %v5790
          %v5823 = vsel %vm5799, %v5818, %v5791
          %v5824 = vadd.f32 %v5820, %v5777
          %v5825 = vadd.f32 %v5821, %v5780
          %v5826 = vadd.f32 %v5822, %v5783
          %v5827 = vadd.f32 %v5823, %v5786
          %5828 = vst [vmem:[%s295] sm:$0xff] %v5824
          %5829 = vst [vmem:[%s295 + $0x8] sm:$0xff] %v5825
          %5830 = vst [vmem:[%s295 + $0x10] sm:$0xff] %v5826
          %5831 = vst [vmem:[%s295 + $0x18] sm:$0xff] %v5827
        $region56: #{tpu_custom_call.1} parent=39 // pred_fallthru
          _
        %s5832 = sand.u32 %s174, 1
        %s5833 = scalar_lea.sflag [#allocation6], %s5832
        %s5834 = sand.u32 %s174, 1
        %s5835 = smul.addr %s5834, 32
        %s5836 = scalar_lea.vmem [#allocation5], %s5835
        // Predicated region
        $region57: #{tpu_custom_call.1} parent=39 // pred_check
          %p5837 = pneg %p184
        $region58: #{tpu_custom_call.1} parent=39 // pred_check_branch
          %5839 = sbr.rel (%p5837) target = $region60
        $region59: #{tpu_custom_call.1} parent=39 // pred_region
          %5841 = vsyncadd %s5833, 0
          %s5842 = smul.addr %s24, 4
          %s5843 = sadd.s32 %s25, %s5842
          %s5844 = smul.addr %s5843, 8
          %s5845 = scalar_lea.hbm %s5, %s5844
          %s5846 = sshll.u32 %s5836, 4
          %s5847 = int_to_ptr.vmem [resolvable:$true] %s5846
          %s5848 = sshll.u32 %s5845, 4
          %s5849 = int_to_ptr.hbm [resolvable:$true] %s5848
          %5854 = dma.vmem_to_hbm [thread:$0]  %s5847, 512, %s5849, %s5833, 128, 128, 8
        $region60: #{tpu_custom_call.1} parent=39 // pred_fallthru
          _
      $region40: #{tpu_custom_call.1} parent=5 // pred_fallthru
        _
      %p5855 = scmp.le.s32.totalorder 2, %s14
      // Predicated region
      $region61: #{tpu_custom_call.1} parent=5 // pred_check
        %p5856 = pneg %p5855
      $region62: #{tpu_custom_call.1} parent=5 // pred_check_branch
        %5858 = sbr.rel (%p5856) target = $region64
      $region63: #{tpu_custom_call.1} parent=5 // pred_region
        %s5859 = ssub.s32 %s14, 2
        // Predicated region
        $region65: #{tpu_custom_call.1} parent=63 // pred_check
          %p5860 = pneg %p190
        $region66: #{tpu_custom_call.1} parent=63 // pred_check_branch
          %5862 = sbr.rel (%p5860) target = $region68
        $region67: #{tpu_custom_call.1} parent=63 // pred_region
          %s5863 = sand.u32 %s175, 1
          %s5864 = scalar_lea.sflag [#allocation6], %s5863
          %s5865 = sand.u32 %s175, 1
          %s5866 = smul.addr %s5865, 32
          %s5867 = scalar_lea.vmem [#allocation5], %s5866
          %5869 = dma.done %s5864, 512
        $region68: #{tpu_custom_call.1} parent=63 // pred_fallthru
          _
      $region64: #{tpu_custom_call.1} parent=5 // pred_fallthru
        _
    $region6: #{tpu_custom_call.1} parent=1 // loop_footer
      %s18 = sadd.s32 1, %s14
    $region7: #{tpu_custom_call.1} parent=1 // loop_footer_branch
      %13 = sbr.rel target = $region3
    $region8: #{tpu_custom_call.1} parent=1 // loop_exit
      _
    %5870 = vsyncpa [#allocation6], 1
    %s5871 = scalar_lea.sflag [#allocation6], 1
    %5872 = vsyncpa %s5871, 1

</llo_original>
